<compile_context>
chip_gen: v7x
topology: tpu7x:2x2x1
jax: 0.10.0
libtpu: 0.0.40
codegen_flags: <defaults>
</compile_context>

<pallas_src>
import jax
import jax.numpy as jnp
from jax.experimental import pallas as pl
from jax.experimental.pallas import tpu as pltpu

_H1, _H2, _OUT_PAD = 512, 256, 128


def _round_up(x, m):
    return ((x + m - 1) // m) * m


def _leaky_relu(x, slope=0.2):
    return jnp.where(x > 0, x, slope * x)


# ---------------------------------------------------------------------------
# Kernels
# ---------------------------------------------------------------------------
def discriminator_kernel_fused(x_ref, w1_ref, b1_ref, w2_ref, b2_ref,
                               w3_ref, b3_ref, o_ref):
    """Single-K-tile fast path: grid = (batch tiles,).  All three layers run
    unconditionally; h1/h2 live in vregs (no VMEM scratch, no pl.when)."""
    x = x_ref[...].astype(jnp.bfloat16)                       # in-kernel cast
    h1 = jnp.dot(x, w1_ref[...], preferred_element_type=jnp.float32)
    h1 = _leaky_relu(h1 + b1_ref[...])
    h2 = jnp.dot(h1.astype(jnp.bfloat16), w2_ref[...],
                 preferred_element_type=jnp.float32)
    h2 = _leaky_relu(h2 + b2_ref[...])
    # w3/b3 zero-padded to 128 lanes; column 0 is the real output unit.
    logits = jnp.dot(h2.astype(jnp.bfloat16), w3_ref[...],
                     preferred_element_type=jnp.float32) + b3_ref[...]
    o_ref[...] = jax.nn.sigmoid(logits).astype(o_ref.dtype)


def discriminator_kernel_splitk(x_ref, w1_ref, b1_ref, w2_ref, b2_ref,
                                w3_ref, b3_ref, o_ref, h1_acc):
    """grid = (batch tiles, layer-1 K tiles).  Axis 1 reduces over layer-1
    input features: partial x @ w1 accumulates into h1_acc; layers 2/3 and the
    sigmoid run only on the last K tile, writing a lane-dense (tb, 128) block."""
    k = pl.program_id(1)

    @pl.when(k == 0)
    def _():
        h1_acc[...] = jnp.zeros_like(h1_acc)

    h1_acc[...] += jnp.dot(x_ref[...].astype(jnp.bfloat16), w1_ref[...],
                           preferred_element_type=jnp.float32)

    @pl.when(k == pl.num_programs(1) - 1)
    def _():
        h1 = _leaky_relu(h1_acc[...] + b1_ref[...])
        h2 = jnp.dot(h1.astype(jnp.bfloat16), w2_ref[...],
                     preferred_element_type=jnp.float32)
        h2 = _leaky_relu(h2 + b2_ref[...])
        logits = jnp.dot(h2.astype(jnp.bfloat16), w3_ref[...],
                         preferred_element_type=jnp.float32) + b3_ref[...]
        o_ref[...] = jax.nn.sigmoid(logits).astype(o_ref.dtype)


# ---------------------------------------------------------------------------
# Wrapper
# ---------------------------------------------------------------------------
def discriminator_forward(img, params, *, batch_tile=None, k_tile=4096):
    """img: (B, C, H, W) float32; returns (B, 1) float32."""
    B = img.shape[0]
    x = img.reshape(B, -1).astype(jnp.float32)   # nn.Flatten; bf16 cast in-kernel
    D = x.shape[1]
    w1, b1, w2, b2, w3, b3 = params

    # ---- batch tiling: multiples of 8 (sublane).  Target big tiles (amortize
    # the w1 stream) but keep >= 2 tiles whenever B allows (v7x megacore).
    if batch_tile is not None:
        tb = max(8, _round_up(int(batch_tile), 8))
    elif B <= 16:
        tb = _round_up(B, 8)
    elif B <= 1024:
        tb = _round_up(-(-B // 2), 8)             # two tiles, each <= 512
    else:
        tb = 512
    tb = min(tb, _round_up(B, 8))
    B_pad = _round_up(B, tb)

    # ---- layer-1 feature (K) tiling: only split when w1 doesn't fit one tile.
    split_k = D > k_tile
    dk = k_tile if split_k else D
    D_pad = _round_up(D, dk) if split_k else D

    if B_pad != B or D_pad != D:
        x = jnp.pad(x, ((0, B_pad - B), (0, D_pad - D)))

    # ---- parameter packing (bf16 weights, f32 biases, lane-padded last layer).
    w1p = w1.astype(jnp.bfloat16)
    if D_pad != D:
        w1p = jnp.pad(w1p, ((0, D_pad - D), (0, 0)))
    w2p = w2.astype(jnp.bfloat16)
    w3p = jnp.zeros((_H2, _OUT_PAD), jnp.bfloat16).at[:, 0].set(
        w3.reshape(_H2).astype(jnp.bfloat16))
    b1p = b1.reshape(1, _H1).astype(jnp.float32)
    b2p = b2.reshape(1, _H2).astype(jnp.float32)
    b3p = jnp.zeros((1, _OUT_PAD), jnp.float32).at[0, 0].set(
        b3.reshape(()).astype(jnp.float32))

    def call(single_buffer_consts):
        const_mode = ({"pipeline_mode": pl.Buffered(1)}
                      if single_buffer_consts else {})
        if split_k:
            grid = (B_pad // tb, D_pad // dk)
            in_specs = [
                pl.BlockSpec((tb, dk), lambda i, k: (i, k)),                # x
                pl.BlockSpec((dk, _H1), lambda i, k: (k, 0)),               # w1
                pl.BlockSpec((1, _H1), lambda i, k: (0, 0), **const_mode),  # b1
                pl.BlockSpec((_H1, _H2), lambda i, k: (0, 0), **const_mode),# w2
                pl.BlockSpec((1, _H2), lambda i, k: (0, 0), **const_mode),  # b2
                pl.BlockSpec((_H2, _OUT_PAD), lambda i, k: (0, 0), **const_mode),
                pl.BlockSpec((1, _OUT_PAD), lambda i, k: (0, 0), **const_mode),
            ]
            out_spec = pl.BlockSpec((tb, _OUT_PAD), lambda i, k: (i, 0))
            scratch = [pltpu.VMEM((tb, _H1), jnp.float32)]                  # h1 acc
            kernel = discriminator_kernel_splitk
            semantics = ("parallel", "arbitrary")
        else:
            grid = (B_pad // tb,)
            in_specs = [
                pl.BlockSpec((tb, dk), lambda i: (i, 0)),                   # x
                pl.BlockSpec((dk, _H1), lambda i: (0, 0), **const_mode),    # w1
                pl.BlockSpec((1, _H1), lambda i: (0, 0), **const_mode),     # b1
                pl.BlockSpec((_H1, _H2), lambda i: (0, 0), **const_mode),   # w2
                pl.BlockSpec((1, _H2), lambda i: (0, 0), **const_mode),     # b2
                pl.BlockSpec((_H2, _OUT_PAD), lambda i: (0, 0), **const_mode),
                pl.BlockSpec((1, _OUT_PAD), lambda i: (0, 0), **const_mode),
            ]
            out_spec = pl.BlockSpec((tb, _OUT_PAD), lambda i: (i, 0))
            scratch = []
            kernel = discriminator_kernel_fused
            semantics = ("parallel",)

        return pl.pallas_call(
            kernel,
            out_shape=jax.ShapeDtypeStruct((B_pad, _OUT_PAD), jnp.float32),
            grid_spec=pltpu.PrefetchScalarGridSpec(
                num_scalar_prefetch=0,
                grid=grid,
                in_specs=in_specs,
                out_specs=out_spec,
                scratch_shapes=scratch),
            compiler_params=pltpu.CompilerParams(
                dimension_semantics=semantics,
                vmem_limit_bytes=48 * 1024 * 1024),
        )(x, w1p, b1p, w2p, b2p, w3p, b3p)

    try:
        out = call(True)
    except Exception:
        # pipeline_mode=pl.Buffered(1) not supported by this jax build — fall
        # back to default double-buffering of the constant blocks.
        out = call(False)

    return out[:B, :1]


# ---------------------------------------------------------------------------
# Params + pure-JAX reference
# ---------------------------------------------------------------------------
def init_params(key, image_size):
    """Deterministic synthetic params, shapes matching the PyTorch module.
    Stored as (in_features, out_features) so the kernel does x @ W + b."""
    d0 = image_size * image_size
    k1, k2, k3, k4, k5, k6 = jax.random.split(key, 6)
    w1 = jax.random.normal(k1, (d0, _H1), jnp.float32) * (1.0 / jnp.sqrt(d0))
    b1 = jax.random.normal(k2, (_H1,), jnp.float32) * 0.01
    w2 = jax.random.normal(k3, (_H1, _H2), jnp.float32) * (1.0 / jnp.sqrt(_H1))
    b2 = jax.random.normal(k4, (_H2,), jnp.float32) * 0.01
    w3 = jax.random.normal(k5, (_H2, 1), jnp.float32) * (1.0 / jnp.sqrt(_H2))
    b3 = jax.random.normal(k6, (1,), jnp.float32) * 0.01
    return (w1, b1, w2, b2, w3, b3)


def reference_forward(img, params):
    """Pure-JAX reference, matching the kernel's bf16 matmul-input rounding."""
    w1, b1, w2, b2, w3, b3 = params
    q = lambda a: a.astype(jnp.bfloat16).astype(jnp.float32)
    x = img.reshape(img.shape[0], -1)
    h1 = _leaky_relu(q(x) @ q(w1) + b1)
    h2 = _leaky_relu(q(h1) @ q(w2) + b2)
    return jax.nn.sigmoid(q(h2) @ q(w3) + b3)


if __name__ == "__main__":
    # --- Test 1: small demo (single-K-tile fast path, 2 batch tiles). -------
    image_size, batch = 16, 256
    k_img, k_par = jax.random.split(jax.random.PRNGKey(0))
    img = jax.random.normal(k_img, (batch, 1, image_size, image_size),
                            jnp.float32)
    params = init_params(k_par, image_size)

    out = jax.block_until_ready(discriminator_forward(img, params))
    ref = reference_forward(img, params)
    assert out.shape == (batch, 1)
    assert jnp.allclose(out, ref, atol=5e-4, rtol=5e-4), float(
        jnp.max(jnp.abs(out - ref)))

    # --- Test 2: split-K path (D = 72*72 > k_tile forces the reduction axis).
    image_size2, batch2 = 72, 64
    k_img2, k_par2 = jax.random.split(jax.random.PRNGKey(1))
    img2 = jax.random.normal(k_img2, (batch2, 1, image_size2, image_size2),
                             jnp.float32)
    params2 = init_params(k_par2, image_size2)

    out2 = jax.block_until_ready(discriminator_forward(img2, params2))
    ref2 = reference_forward(img2, params2)
    assert out2.shape == (batch2, 1)
    assert jnp.allclose(out2, ref2, atol=2e-3, rtol=2e-3), float(
        jnp.max(jnp.abs(out2 - ref2)))

    print("KERNEL_OK")
</pallas_src>

<mosaic_0001>
module attributes {stable_mosaic.version = 11 : i64} {
  func.func @discriminator_kernel_fused(%arg0: i32, %arg1: memref<128x256xf32, #tpu.memory_space<vmem>>, %arg2: memref<256x512xbf16, #tpu.memory_space<vmem>>, %arg3: memref<1x512xf32, #tpu.memory_space<vmem>>, %arg4: memref<512x256xbf16, #tpu.memory_space<vmem>>, %arg5: memref<1x256xf32, #tpu.memory_space<vmem>>, %arg6: memref<256x128xbf16, #tpu.memory_space<vmem>>, %arg7: memref<1x128xf32, #tpu.memory_space<vmem>>, %arg8: memref<128x128xf32, #tpu.memory_space<vmem>>) attributes {dimension_semantics = [#tpu.dimension_semantics<parallel>], iteration_bounds = array<i64: 2>, scalar_prefetch = 0 : i64, scratch_operands = 0 : i64, tpu.core_type = #tpu.core_type<tc>, window_params = [{transform_indices = @transform_0, window_bounds = array<i64: 128, 256>}, {pipeline_mode = #tpu.pipeline_mode<synchronous>, transform_indices = @transform_1, window_bounds = array<i64: 256, 512>}, {pipeline_mode = #tpu.pipeline_mode<synchronous>, transform_indices = @transform_2, window_bounds = array<i64: 1, 512>}, {pipeline_mode = #tpu.pipeline_mode<synchronous>, transform_indices = @transform_3, window_bounds = array<i64: 512, 256>}, {pipeline_mode = #tpu.pipeline_mode<synchronous>, transform_indices = @transform_4, window_bounds = array<i64: 1, 256>}, {pipeline_mode = #tpu.pipeline_mode<synchronous>, transform_indices = @transform_5, window_bounds = array<i64: 256, 128>}, {pipeline_mode = #tpu.pipeline_mode<synchronous>, transform_indices = @transform_6, window_bounds = array<i64: 1, 128>}, {transform_indices = @transform_7, window_bounds = array<i64: 128, 128>}]} {
    %c0 = arith.constant 0 : index
    %c0_0 = arith.constant 0 : index
    %0 = vector.load %arg1[%c0, %c0_0] : memref<128x256xf32, #tpu.memory_space<vmem>>, vector<128x256xf32>
    %1 = arith.truncf %0 : vector<128x256xf32> to vector<128x256xbf16>
    %c0_1 = arith.constant 0 : index
    %c0_2 = arith.constant 0 : index
    %2 = vector.load %arg2[%c0_1, %c0_2] : memref<256x512xbf16, #tpu.memory_space<vmem>>, vector<256x512xbf16>
    %cst = arith.constant dense<0.000000e+00> : vector<128x512xf32>
    %3 = tpu.matmul %1, %2, %cst {dimension_numbers = #tpu.dot_dimension_numbers<[1], [0], [0], [1], [0, 0, 1, 1], [], []>} : vector<128x256xbf16>, vector<256x512xbf16>, vector<128x512xf32> -> vector<128x512xf32>
    %c0_3 = arith.constant 0 : index
    %c0_4 = arith.constant 0 : index
    %4 = vector.load %arg3[%c0_3, %c0_4] : memref<1x512xf32, #tpu.memory_space<vmem>>, vector<1x512xf32>
    %5 = vector.broadcast %4 : vector<1x512xf32> to vector<128x512xf32>
    %6 = arith.addf %3, %5 : vector<128x512xf32>
    %cst_5 = arith.constant 0.000000e+00 : f32
    %7 = vector.broadcast %cst_5 : f32 to vector<128x512xf32>
    %8 = arith.cmpf ogt, %6, %7 : vector<128x512xf32>
    %cst_6 = arith.constant 2.000000e-01 : f32
    %9 = vector.broadcast %cst_6 : f32 to vector<128x512xf32>
    %10 = arith.mulf %9, %6 : vector<128x512xf32>
    %11 = arith.select %8, %6, %10 : vector<128x512xi1>, vector<128x512xf32>
    %12 = arith.truncf %11 : vector<128x512xf32> to vector<128x512xbf16>
    %c0_7 = arith.constant 0 : index
    %c0_8 = arith.constant 0 : index
    %13 = vector.load %arg4[%c0_7, %c0_8] : memref<512x256xbf16, #tpu.memory_space<vmem>>, vector<512x256xbf16>
    %cst_9 = arith.constant dense<0.000000e+00> : vector<128x256xf32>
    %14 = tpu.matmul %12, %13, %cst_9 {dimension_numbers = #tpu.dot_dimension_numbers<[1], [0], [0], [1], [0, 0, 1, 1], [], []>} : vector<128x512xbf16>, vector<512x256xbf16>, vector<128x256xf32> -> vector<128x256xf32>
    %c0_10 = arith.constant 0 : index
    %c0_11 = arith.constant 0 : index
    %15 = vector.load %arg5[%c0_10, %c0_11] : memref<1x256xf32, #tpu.memory_space<vmem>>, vector<1x256xf32>
    %16 = vector.broadcast %15 : vector<1x256xf32> to vector<128x256xf32>
    %17 = arith.addf %14, %16 : vector<128x256xf32>
    %cst_12 = arith.constant 0.000000e+00 : f32
    %18 = vector.broadcast %cst_12 : f32 to vector<128x256xf32>
    %19 = arith.cmpf ogt, %17, %18 : vector<128x256xf32>
    %cst_13 = arith.constant 2.000000e-01 : f32
    %20 = vector.broadcast %cst_13 : f32 to vector<128x256xf32>
    %21 = arith.mulf %20, %17 : vector<128x256xf32>
    %22 = arith.select %19, %17, %21 : vector<128x256xi1>, vector<128x256xf32>
    %23 = arith.truncf %22 : vector<128x256xf32> to vector<128x256xbf16>
    %c0_14 = arith.constant 0 : index
    %c0_15 = arith.constant 0 : index
    %24 = vector.load %arg6[%c0_14, %c0_15] : memref<256x128xbf16, #tpu.memory_space<vmem>>, vector<256x128xbf16>
    %cst_16 = arith.constant dense<0.000000e+00> : vector<128x128xf32>
    %25 = tpu.matmul %23, %24, %cst_16 {dimension_numbers = #tpu.dot_dimension_numbers<[1], [0], [0], [1], [0, 0, 1, 1], [], []>} : vector<128x256xbf16>, vector<256x128xbf16>, vector<128x128xf32> -> vector<128x128xf32>
    %c0_17 = arith.constant 0 : index
    %c0_18 = arith.constant 0 : index
    %26 = vector.load %arg7[%c0_17, %c0_18] : memref<1x128xf32, #tpu.memory_space<vmem>>, vector<1x128xf32>
    %27 = vector.broadcast %26 : vector<1x128xf32> to vector<128x128xf32>
    %28 = arith.addf %25, %27 : vector<128x128xf32>
    %29 = arith.negf %28 : vector<128x128xf32>
    %30 = math.exp %29 : vector<128x128xf32>
    %cst_19 = arith.constant 1.000000e+00 : f32
    %31 = vector.broadcast %cst_19 : f32 to vector<128x128xf32>
    %32 = arith.addf %31, %30 : vector<128x128xf32>
    %33 = arith.divf %31, %32 : vector<128x128xf32>
    %c0_20 = arith.constant 0 : index
    %c0_21 = arith.constant 0 : index
    %34 = vector.load %arg8[%c0_20, %c0_21] : memref<128x128xf32, #tpu.memory_space<vmem>>, vector<128x128xf32>
    tpu.vector_store %arg8[%c0_20, %c0_21], %33 {strides = array<i32>} : memref<128x128xf32, #tpu.memory_space<vmem>>, vector<128x128xf32>,
    return
  }
  func.func @transform_0(%arg0: i32) -> (i32, i32) {
    %c0_i32 = arith.constant 0 : i32
    %c0_i32_0 = arith.constant 0 : i32
    return %arg0, %c0_i32 : i32, i32
  }
  func.func @transform_1(%arg0: i32) -> (i32, i32) {
    %c0_i32 = arith.constant 0 : i32
    %c0_i32_0 = arith.constant 0 : i32
    %c0_i32_1 = arith.constant 0 : i32
    return %c0_i32, %c0_i32_0 : i32, i32
  }
  func.func @transform_2(%arg0: i32) -> (i32, i32) {
    %c0_i32 = arith.constant 0 : i32
    %c0_i32_0 = arith.constant 0 : i32
    %c0_i32_1 = arith.constant 0 : i32
    return %c0_i32, %c0_i32_0 : i32, i32
  }
  func.func @transform_3(%arg0: i32) -> (i32, i32) {
    %c0_i32 = arith.constant 0 : i32
    %c0_i32_0 = arith.constant 0 : i32
    %c0_i32_1 = arith.constant 0 : i32
    return %c0_i32, %c0_i32_0 : i32, i32
  }
  func.func @transform_4(%arg0: i32) -> (i32, i32) {
    %c0_i32 = arith.constant 0 : i32
    %c0_i32_0 = arith.constant 0 : i32
    %c0_i32_1 = arith.constant 0 : i32
    return %c0_i32, %c0_i32_0 : i32, i32
  }
  func.func @transform_5(%arg0: i32) -> (i32, i32) {
    %c0_i32 = arith.constant 0 : i32
    %c0_i32_0 = arith.constant 0 : i32
    %c0_i32_1 = arith.constant 0 : i32
    return %c0_i32, %c0_i32_0 : i32, i32
  }
  func.func @transform_6(%arg0: i32) -> (i32, i32) {
    %c0_i32 = arith.constant 0 : i32
    %c0_i32_0 = arith.constant 0 : i32
    %c0_i32_1 = arith.constant 0 : i32
    return %c0_i32, %c0_i32_0 : i32, i32
  }
  func.func @transform_7(%arg0: i32) -> (i32, i32) {
    %c0_i32 = arith.constant 0 : i32
    %c0_i32_0 = arith.constant 0 : i32
    return %arg0, %c0_i32 : i32, i32
  }
}

module attributes {stable_mosaic.version = 11 : i64} {
  func.func @discriminator_kernel_fused(%arg0: i32, %arg1: memref<128x256xf32, #tpu.memory_space<vmem>>, %arg2: memref<256x512xbf16, #tpu.memory_space<vmem>>, %arg3: memref<1x512xf32, #tpu.memory_space<vmem>>, %arg4: memref<512x256xbf16, #tpu.memory_space<vmem>>, %arg5: memref<1x256xf32, #tpu.memory_space<vmem>>, %arg6: memref<256x128xbf16, #tpu.memory_space<vmem>>, %arg7: memref<1x128xf32, #tpu.memory_space<vmem>>, %arg8: memref<128x128xf32, #tpu.memory_space<vmem>>) attributes {dimension_semantics = [#tpu.dimension_semantics<parallel>], iteration_bounds = array<i64: 2>, scalar_prefetch = 0 : i64, scratch_operands = 0 : i64, tpu.core_type = #tpu.core_type<tc>, window_params = [{transform_indices = @transform_0, window_bounds = array<i64: 128, 256>}, {pipeline_mode = #tpu.pipeline_mode<synchronous>, transform_indices = @transform_1, window_bounds = array<i64: 256, 512>}, {pipeline_mode = #tpu.pipeline_mode<synchronous>, transform_indices = @transform_2, window_bounds = array<i64: 1, 512>}, {pipeline_mode = #tpu.pipeline_mode<synchronous>, transform_indices = @transform_3, window_bounds = array<i64: 512, 256>}, {pipeline_mode = #tpu.pipeline_mode<synchronous>, transform_indices = @transform_4, window_bounds = array<i64: 1, 256>}, {pipeline_mode = #tpu.pipeline_mode<synchronous>, transform_indices = @transform_5, window_bounds = array<i64: 256, 128>}, {pipeline_mode = #tpu.pipeline_mode<synchronous>, transform_indices = @transform_6, window_bounds = array<i64: 1, 128>}, {transform_indices = @transform_7, window_bounds = array<i64: 128, 128>}]} {
    %c0 = arith.constant 0 : index
    %c0_0 = arith.constant 0 : index
    %0 = vector.load %arg1[%c0, %c0_0] : memref<128x256xf32, #tpu.memory_space<vmem>>, vector<128x256xf32>
    %1 = arith.truncf %0 : vector<128x256xf32> to vector<128x256xbf16>
    %c0_1 = arith.constant 0 : index
    %c0_2 = arith.constant 0 : index
    %2 = vector.load %arg2[%c0_1, %c0_2] : memref<256x512xbf16, #tpu.memory_space<vmem>>, vector<256x512xbf16>
    %cst = arith.constant dense<0.000000e+00> : vector<128x512xf32>
    %3 = tpu.matmul %1, %2, %cst {dimension_numbers = #tpu.dot_dimension_numbers<[1], [0], [0], [1], [0, 0, 1, 1], [], []>} : vector<128x256xbf16>, vector<256x512xbf16>, vector<128x512xf32> -> vector<128x512xf32>
    %c0_3 = arith.constant 0 : index
    %c0_4 = arith.constant 0 : index
    %4 = vector.load %arg3[%c0_3, %c0_4] : memref<1x512xf32, #tpu.memory_space<vmem>>, vector<1x512xf32>
    %5 = vector.broadcast %4 : vector<1x512xf32> to vector<128x512xf32>
    %6 = arith.addf %3, %5 : vector<128x512xf32>
    %cst_5 = arith.constant 0.000000e+00 : f32
    %7 = vector.broadcast %cst_5 : f32 to vector<128x512xf32>
    %8 = arith.cmpf ogt, %6, %7 : vector<128x512xf32>
    %cst_6 = arith.constant 2.000000e-01 : f32
    %9 = vector.broadcast %cst_6 : f32 to vector<128x512xf32>
    %10 = arith.mulf %9, %6 : vector<128x512xf32>
    %11 = arith.select %8, %6, %10 : vector<128x512xi1>, vector<128x512xf32>
    %12 = arith.truncf %11 : vector<128x512xf32> to vector<128x512xbf16>
    %c0_7 = arith.constant 0 : index
    %c0_8 = arith.constant 0 : index
    %13 = vector.load %arg4[%c0_7, %c0_8] : memref<512x256xbf16, #tpu.memory_space<vmem>>, vector<512x256xbf16>
    %cst_9 = arith.constant dense<0.000000e+00> : vector<128x256xf32>
    %14 = tpu.matmul %12, %13, %cst_9 {dimension_numbers = #tpu.dot_dimension_numbers<[1], [0], [0], [1], [0, 0, 1, 1], [], []>} : vector<128x512xbf16>, vector<512x256xbf16>, vector<128x256xf32> -> vector<128x256xf32>
    %c0_10 = arith.constant 0 : index
    %c0_11 = arith.constant 0 : index
    %15 = vector.load %arg5[%c0_10, %c0_11] : memref<1x256xf32, #tpu.memory_space<vmem>>, vector<1x256xf32>
    %16 = vector.broadcast %15 : vector<1x256xf32> to vector<128x256xf32>
    %17 = arith.addf %14, %16 : vector<128x256xf32>
    %cst_12 = arith.constant 0.000000e+00 : f32
    %18 = vector.broadcast %cst_12 : f32 to vector<128x256xf32>
    %19 = arith.cmpf ogt, %17, %18 : vector<128x256xf32>
    %cst_13 = arith.constant 2.000000e-01 : f32
    %20 = vector.broadcast %cst_13 : f32 to vector<128x256xf32>
    %21 = arith.mulf %20, %17 : vector<128x256xf32>
    %22 = arith.select %19, %17, %21 : vector<128x256xi1>, vector<128x256xf32>
    %23 = arith.truncf %22 : vector<128x256xf32> to vector<128x256xbf16>
    %c0_14 = arith.constant 0 : index
    %c0_15 = arith.constant 0 : index
    %24 = vector.load %arg6[%c0_14, %c0_15] : memref<256x128xbf16, #tpu.memory_space<vmem>>, vector<256x128xbf16>
    %cst_16 = arith.constant dense<0.000000e+00> : vector<128x128xf32>
    %25 = tpu.matmul %23, %24, %cst_16 {dimension_numbers = #tpu.dot_dimension_numbers<[1], [0], [0], [1], [0, 0, 1, 1], [], []>} : vector<128x256xbf16>, vector<256x128xbf16>, vector<128x128xf32> -> vector<128x128xf32>
    %c0_17 = arith.constant 0 : index
    %c0_18 = arith.constant 0 : index
    %26 = vector.load %arg7[%c0_17, %c0_18] : memref<1x128xf32, #tpu.memory_space<vmem>>, vector<1x128xf32>
    %27 = vector.broadcast %26 : vector<1x128xf32> to vector<128x128xf32>
    %28 = arith.addf %25, %27 : vector<128x128xf32>
    %29 = arith.negf %28 : vector<128x128xf32>
    %30 = math.exp %29 : vector<128x128xf32>
    %cst_19 = arith.constant 1.000000e+00 : f32
    %31 = vector.broadcast %cst_19 : f32 to vector<128x128xf32>
    %32 = arith.addf %31, %30 : vector<128x128xf32>
    %33 = arith.divf %31, %32 : vector<128x128xf32>
    %c0_20 = arith.constant 0 : index
    %c0_21 = arith.constant 0 : index
    %34 = vector.load %arg8[%c0_20, %c0_21] : memref<128x128xf32, #tpu.memory_space<vmem>>, vector<128x128xf32>
    tpu.vector_store %arg8[%c0_20, %c0_21], %33 {strides = array<i32>} : memref<128x128xf32, #tpu.memory_space<vmem>>, vector<128x128xf32>,
    return
  }
  func.func @transform_0(%arg0: i32) -> (i32, i32) {
    %c0_i32 = arith.constant 0 : i32
    %c0_i32_0 = arith.constant 0 : i32
    return %arg0, %c0_i32 : i32, i32
  }
  func.func @transform_1(%arg0: i32) -> (i32, i32) {
    %c0_i32 = arith.constant 0 : i32
    %c0_i32_0 = arith.constant 0 : i32
    %c0_i32_1 = arith.constant 0 : i32
    return %c0_i32, %c0_i32_0 : i32, i32
  }
  func.func @transform_2(%arg0: i32) -> (i32, i32) {
    %c0_i32 = arith.constant 0 : i32
    %c0_i32_0 = arith.constant 0 : i32
    %c0_i32_1 = arith.constant 0 : i32
    return %c0_i32, %c0_i32_0 : i32, i32
  }
  func.func @transform_3(%arg0: i32) -> (i32, i32) {
    %c0_i32 = arith.constant 0 : i32
    %c0_i32_0 = arith.constant 0 : i32
    %c0_i32_1 = arith.constant 0 : i32
    return %c0_i32, %c0_i32_0 : i32, i32
  }
  func.func @transform_4(%arg0: i32) -> (i32, i32) {
    %c0_i32 = arith.constant 0 : i32
    %c0_i32_0 = arith.constant 0 : i32
    %c0_i32_1 = arith.constant 0 : i32
    return %c0_i32, %c0_i32_0 : i32, i32
  }
  func.func @transform_5(%arg0: i32) -> (i32, i32) {
    %c0_i32 = arith.constant 0 : i32
    %c0_i32_0 = arith.constant 0 : i32
    %c0_i32_1 = arith.constant 0 : i32
    return %c0_i32, %c0_i32_0 : i32, i32
  }
  func.func @transform_6(%arg0: i32) -> (i32, i32) {
    %c0_i32 = arith.constant 0 : i32
    %c0_i32_0 = arith.constant 0 : i32
    %c0_i32_1 = arith.constant 0 : i32
    return %c0_i32, %c0_i32_0 : i32, i32
  }
  func.func @transform_7(%arg0: i32) -> (i32, i32) {
    %c0_i32 = arith.constant 0 : i32
    %c0_i32_0 = arith.constant 0 : i32
    return %arg0, %c0_i32 : i32, i32
  }
}

</mosaic_0001>

<llo_original>
// kernel: tpu_custom_call.1
$region0: #{tpu_custom_call.1}
  #allocation0 [shape = 'u32[]', space=smem, size = 0x4, offset = 0x4, fixed_abs, tag = 'smem constant byte address 0x4 - core index']
  #allocation1 [shape = 'u32[144,128]{1,0:T(1,128)}', space=vmem, size = 0x12000, scoped, tag = 'internal scratch']
  %s0 = inlined_call_operand.hbm [shape: f32[256,256], index: 0, kind: input, shape index: {}]
  %s1 = inlined_call_operand.hbm [shape: bf16[256,512], index: 1, kind: input, shape index: {}]
  %s2 = inlined_call_operand.vmem [shape: f32[1,512], index: 2, kind: input, shape index: {}]
  %s3 = inlined_call_operand.hbm [shape: bf16[512,256], index: 3, kind: input, shape index: {}]
  %s4 = inlined_call_operand.vmem [shape: f32[1,256], index: 4, kind: input, shape index: {}]
  %s5 = inlined_call_operand.hbm [shape: bf16[256,128], index: 5, kind: input, shape index: {}]
  %s6 = inlined_call_operand.vmem [shape: f32[1,128], index: 6, kind: input, shape index: {}]
  %s7 = inlined_call_operand.hbm [shape: f32[256,128], index: 7, kind: output, shape index: {}]
  %s8 = sld [smem:[#allocation0]]
  $region77: #{tpu_custom_call.1} parent=0
    _
  %s10 = ssub.s32 1, %s8
  %s11 = scalar_select 0, %s10, %s8
  $region1: #{tpu_custom_call.1} parent=0
    #allocation2 [shape = 'u8[262144]{0}', space=vmem, size = 0x40000, scoped, tag = 'input window, operand 0']
    #allocation3 [shape = 's32[2]{0}', space=sflag, size = 0x8, scoped, tag = 'scoped memory for tpu_custom_call.1']
    #allocation4 [shape = 's32[2]{0}', space=sflag, size = 0x8, scoped, tag = 'scoped memory for tpu_custom_call.1']
    #allocation5 [shape = 'u8[262144]{0}', space=vmem, size = 0x40000, scoped, tag = 'input window, operand 1, single buffered']
    #allocation6 [shape = 's32[1]{0}', space=sflag, size = 0x4, scoped, tag = 'scoped memory for tpu_custom_call.1']
    #allocation7 [shape = 'u8[262144]{0}', space=vmem, size = 0x40000, scoped, tag = 'input window, operand 3, single buffered']
    #allocation8 [shape = 'u8[65536]{0}', space=vmem, size = 0x10000, scoped, tag = 'input window, operand 5, single buffered']
    #allocation9 [shape = 's32[1]{0}', space=sflag, size = 0x4, scoped, tag = 'scoped memory for tpu_custom_call.1']
    #allocation10 [shape = 'u8[131072]{0}', space=vmem, size = 0x20000, scoped, tag = 'output window, operand 0']
    %12 = vsyncpa [#allocation3], 0
    %s13 = scalar_lea.sflag [#allocation3], 1
    %14 = vsyncpa %s13, 0
    %15 = vsyncpa [#allocation6], 0
    %16 = vsyncpa [#allocation9], 0
    %17 = vsyncpa [#allocation4], 0
    %s18 = scalar_lea.sflag [#allocation4], 1
    %19 = vsyncpa %s18, 0
    loop: start=0, step=1, limit=4
    $region2: #{tpu_custom_call.1} parent=1 // loop_pre_header
      _
    $region3: #{tpu_custom_call.1} parent=1 // loop_header
      %s21 = sphi 0, %s25
      %p22 = scmp.ge.s32.totalorder %s21, 4
      %s31 = sphi 0, %s33
      %s34 = sphi 0, %s31
      %s35 = sphi 0, %s34
      %s51 = sphi 0, %s35
      %s55 = sphi 0, %s55
      %s57 = sphi 0, %s55
      %s58 = sphi 0, %s57
      %s72 = sphi 0, %s58
      %s76 = sphi 0, %s76
      %s78 = sphi 0, %s76
      %s79 = sphi 0, %s78
      %s93 = sphi 0, %s79
      %s97 = sphi 0, %s97
      %s99 = sphi 0, %s97
      %s100 = sphi 0, %s99
      %s114 = sphi 0, %s100
      %s118 = sphi 0, %s118
      %s120 = sphi 0, %s118
      %s121 = sphi 0, %s120
      %s135 = sphi 0, %s121
      %s139 = sphi 0, %s139
      %s141 = sphi 0, %s139
      %s142 = sphi 0, %s141
      %s156 = sphi 0, %s142
      %s160 = sphi 0, %s160
      %s162 = sphi 0, %s160
      %s163 = sphi 0, %s162
      %s177 = sphi 0, %s163
      %s183 = sphi 0, %s185
      %s186 = sphi 0, %s183
      %s187 = sphi 0, %s186
      %s203 = sphi 0, %s187
    $region4: #{tpu_custom_call.1} parent=1 // loop_header_branch
      %24 = sbr.rel (%p22) target = $region8
    $region5: #{tpu_custom_call.1} parent=1 // loop_body
      %s26 = ssub.s32 %s21, 1
      %s27 = ssub.s32 %s21, 2
      %s28 = sadd.s32 %s21, 1
      %s29 = ssub.s32 %s21, %s28
      %p30 = scmp.eq.s32.totalorder %s29, 0
      %s32 = sadd.s32 %s31, 1
      %s33 = scalar_select %p30, %s31, %s32
      %p36 = pneg %p30
      %p37 = scmp.eq.s32.totalorder %s21, 1
      %p38 = por %p36, %p37
      %p39 = scmp.ne.s32.totalorder %s31, %s34
      %p40 = scmp.eq.s32.totalorder %s21, 0
      %p41 = por %p39, %p40
      %p42 = scmp.ne.s32.totalorder %s31, %s34
      %p43 = scmp.eq.s32.totalorder %s26, 1
      %p44 = por %p42, %p43
      %p45 = scmp.ne.s32.totalorder %s34, %s35
      %p46 = scmp.eq.s32.totalorder %s26, 0
      %p47 = por %p45, %p46
      %p48 = scmp.ne.s32.totalorder %s34, %s35
      %p49 = scmp.eq.s32.totalorder %s27, 1
      %p50 = por %p48, %p49
      %p52 = scmp.ne.s32.totalorder %s35, %s51
      %p53 = scmp.eq.s32.totalorder %s27, 0
      %p54 = por %p52, %p53
      %s56 = sadd.s32 %s55, 1
      %p59 = scmp.eq.s32.totalorder %s21, 1
      %p60 = scmp.ne.s32.totalorder %s55, %s57
      %p61 = scmp.eq.s32.totalorder %s21, 0
      %p62 = por %p60, %p61
      %p63 = scmp.ne.s32.totalorder %s55, %s57
      %p64 = scmp.eq.s32.totalorder %s26, 1
      %p65 = por %p63, %p64
      %p66 = scmp.ne.s32.totalorder %s57, %s58
      %p67 = scmp.eq.s32.totalorder %s26, 0
      %p68 = por %p66, %p67
      %p69 = scmp.ne.s32.totalorder %s57, %s58
      %p70 = scmp.eq.s32.totalorder %s27, 1
      %p71 = por %p69, %p70
      %p73 = scmp.ne.s32.totalorder %s58, %s72
      %p74 = scmp.eq.s32.totalorder %s27, 0
      %p75 = por %p73, %p74
      %s77 = sadd.s32 %s76, 1
      %p80 = scmp.eq.s32.totalorder %s21, 1
      %p81 = scmp.ne.s32.totalorder %s76, %s78
      %p82 = scmp.eq.s32.totalorder %s21, 0
      %p83 = por %p81, %p82
      %p84 = scmp.ne.s32.totalorder %s76, %s78
      %p85 = scmp.eq.s32.totalorder %s26, 1
      %p86 = por %p84, %p85
      %p87 = scmp.ne.s32.totalorder %s78, %s79
      %p88 = scmp.eq.s32.totalorder %s26, 0
      %p89 = por %p87, %p88
      %p90 = scmp.ne.s32.totalorder %s78, %s79
      %p91 = scmp.eq.s32.totalorder %s27, 1
      %p92 = por %p90, %p91
      %p94 = scmp.ne.s32.totalorder %s79, %s93
      %p95 = scmp.eq.s32.totalorder %s27, 0
      %p96 = por %p94, %p95
      %s98 = sadd.s32 %s97, 1
      %p101 = scmp.eq.s32.totalorder %s21, 1
      %p102 = scmp.ne.s32.totalorder %s97, %s99
      %p103 = scmp.eq.s32.totalorder %s21, 0
      %p104 = por %p102, %p103
      %p105 = scmp.ne.s32.totalorder %s97, %s99
      %p106 = scmp.eq.s32.totalorder %s26, 1
      %p107 = por %p105, %p106
      %p108 = scmp.ne.s32.totalorder %s99, %s100
      %p109 = scmp.eq.s32.totalorder %s26, 0
      %p110 = por %p108, %p109
      %p111 = scmp.ne.s32.totalorder %s99, %s100
      %p112 = scmp.eq.s32.totalorder %s27, 1
      %p113 = por %p111, %p112
      %p115 = scmp.ne.s32.totalorder %s100, %s114
      %p116 = scmp.eq.s32.totalorder %s27, 0
      %p117 = por %p115, %p116
      %s119 = sadd.s32 %s118, 1
      %p122 = scmp.eq.s32.totalorder %s21, 1
      %p123 = scmp.ne.s32.totalorder %s118, %s120
      %p124 = scmp.eq.s32.totalorder %s21, 0
      %p125 = por %p123, %p124
      %p126 = scmp.ne.s32.totalorder %s118, %s120
      %p127 = scmp.eq.s32.totalorder %s26, 1
      %p128 = por %p126, %p127
      %p129 = scmp.ne.s32.totalorder %s120, %s121
      %p130 = scmp.eq.s32.totalorder %s26, 0
      %p131 = por %p129, %p130
      %p132 = scmp.ne.s32.totalorder %s120, %s121
      %p133 = scmp.eq.s32.totalorder %s27, 1
      %p134 = por %p132, %p133
      %p136 = scmp.ne.s32.totalorder %s121, %s135
      %p137 = scmp.eq.s32.totalorder %s27, 0
      %p138 = por %p136, %p137
      %s140 = sadd.s32 %s139, 1
      %p143 = scmp.eq.s32.totalorder %s21, 1
      %p144 = scmp.ne.s32.totalorder %s139, %s141
      %p145 = scmp.eq.s32.totalorder %s21, 0
      %p146 = por %p144, %p145
      %p147 = scmp.ne.s32.totalorder %s139, %s141
      %p148 = scmp.eq.s32.totalorder %s26, 1
      %p149 = por %p147, %p148
      %p150 = scmp.ne.s32.totalorder %s141, %s142
      %p151 = scmp.eq.s32.totalorder %s26, 0
      %p152 = por %p150, %p151
      %p153 = scmp.ne.s32.totalorder %s141, %s142
      %p154 = scmp.eq.s32.totalorder %s27, 1
      %p155 = por %p153, %p154
      %p157 = scmp.ne.s32.totalorder %s142, %s156
      %p158 = scmp.eq.s32.totalorder %s27, 0
      %p159 = por %p157, %p158
      %s161 = sadd.s32 %s160, 1
      %p164 = scmp.eq.s32.totalorder %s21, 1
      %p165 = scmp.ne.s32.totalorder %s160, %s162
      %p166 = scmp.eq.s32.totalorder %s21, 0
      %p167 = por %p165, %p166
      %p168 = scmp.ne.s32.totalorder %s160, %s162
      %p169 = scmp.eq.s32.totalorder %s26, 1
      %p170 = por %p168, %p169
      %p171 = scmp.ne.s32.totalorder %s162, %s163
      %p172 = scmp.eq.s32.totalorder %s26, 0
      %p173 = por %p171, %p172
      %p174 = scmp.ne.s32.totalorder %s162, %s163
      %p175 = scmp.eq.s32.totalorder %s27, 1
      %p176 = por %p174, %p175
      %p178 = scmp.ne.s32.totalorder %s163, %s177
      %p179 = scmp.eq.s32.totalorder %s27, 0
      %p180 = por %p178, %p179
      %s181 = ssub.s32 %s21, %s28
      %p182 = scmp.eq.s32.totalorder %s181, 0
      %s184 = sadd.s32 %s183, 1
      %s185 = scalar_select %p182, %s183, %s184
      %p188 = pneg %p182
      %p189 = scmp.eq.s32.totalorder %s21, 1
      %p190 = por %p188, %p189
      %p191 = scmp.ne.s32.totalorder %s183, %s186
      %p192 = scmp.eq.s32.totalorder %s21, 0
      %p193 = por %p191, %p192
      %p194 = scmp.ne.s32.totalorder %s183, %s186
      %p195 = scmp.eq.s32.totalorder %s26, 1
      %p196 = por %p194, %p195
      %p197 = scmp.ne.s32.totalorder %s186, %s187
      %p198 = scmp.eq.s32.totalorder %s26, 0
      %p199 = por %p197, %p198
      %p200 = scmp.ne.s32.totalorder %s186, %s187
      %p201 = scmp.eq.s32.totalorder %s27, 1
      %p202 = por %p200, %p201
      %p204 = scmp.ne.s32.totalorder %s187, %s203
      %p205 = scmp.eq.s32.totalorder %s27, 0
      %p206 = por %p204, %p205
      %p207 = scmp.le.s32.totalorder 1, %s21
      %p208 = scmp.lt.s32.totalorder %s21, 3
      %p209 = pnand %p207, %p208
      %p210 = pneg %p209
      // Predicated region
      $region9: #{tpu_custom_call.1} parent=5 // pred_check
        _
      $region10: #{tpu_custom_call.1} parent=5 // pred_check_branch
        %212 = sbr.rel (%p209) target = $region12
      $region11: #{tpu_custom_call.1} parent=5 // pred_region
        %s213 = ssub.s32 %s21, 1
        // Predicated region
        $region13: #{tpu_custom_call.1} parent=11 // pred_check
          %p214 = pneg %p68
        $region14: #{tpu_custom_call.1} parent=11 // pred_check_branch
          %216 = sbr.rel (%p214) target = $region16
        $region15: #{tpu_custom_call.1} parent=11 // pred_region
          %s218 = ssub.s32 8192, 8192
          %219 = vsyncadd [#allocation6], %s218
          %s220 = sshll.u32 [#allocation5], 4
          %s221 = int_to_ptr.vmem [resolvable:$true] %s220
          %226 = dma.hbm_to_vmem [thread:$0]  %s1, 8192, %s221, [#allocation6], 256, 256, 16
        $region16: #{tpu_custom_call.1} parent=11 // pred_fallthru
          _
        // Predicated region
        $region17: #{tpu_custom_call.1} parent=11 // pred_check
          %p227 = pneg %p89
        $region18: #{tpu_custom_call.1} parent=11 // pred_check_branch
          %229 = sbr.rel (%p227) target = $region20
        $region19: #{tpu_custom_call.1} parent=11 // pred_region
          _
        $region20: #{tpu_custom_call.1} parent=11 // pred_fallthru
          _
        // Predicated region
        $region21: #{tpu_custom_call.1} parent=11 // pred_check
          %p230 = pneg %p110
        $region22: #{tpu_custom_call.1} parent=11 // pred_check_branch
          %232 = sbr.rel (%p230) target = $region24
        $region23: #{tpu_custom_call.1} parent=11 // pred_region
          %s234 = ssub.s32 8192, 8192
          %235 = vsyncadd [#allocation6], %s234
          %s236 = sshll.u32 [#allocation7], 4
          %s237 = int_to_ptr.vmem [resolvable:$true] %s236
          %242 = dma.hbm_to_vmem [thread:$0]  %s3, 8192, %s237, [#allocation6], 128, 128, 8
        $region24: #{tpu_custom_call.1} parent=11 // pred_fallthru
          _
        // Predicated region
        $region25: #{tpu_custom_call.1} parent=11 // pred_check
          %p243 = pneg %p131
        $region26: #{tpu_custom_call.1} parent=11 // pred_check_branch
          %245 = sbr.rel (%p243) target = $region28
        $region27: #{tpu_custom_call.1} parent=11 // pred_region
          _
        $region28: #{tpu_custom_call.1} parent=11 // pred_fallthru
          _
        // Predicated region
        $region29: #{tpu_custom_call.1} parent=11 // pred_check
          %p246 = pneg %p152
        $region30: #{tpu_custom_call.1} parent=11 // pred_check_branch
          %248 = sbr.rel (%p246) target = $region32
        $region31: #{tpu_custom_call.1} parent=11 // pred_region
          %s250 = ssub.s32 2048, 2048
          %251 = vsyncadd [#allocation9], %s250
          %s252 = sshll.u32 [#allocation8], 4
          %s253 = int_to_ptr.vmem [resolvable:$true] %s252
          %258 = dma.hbm_to_vmem [thread:$0]  %s5, 2048, %s253, [#allocation9], 64, 64, 4
        $region32: #{tpu_custom_call.1} parent=11 // pred_fallthru
          _
        // Predicated region
        $region33: #{tpu_custom_call.1} parent=11 // pred_check
          %p259 = pneg %p173
        $region34: #{tpu_custom_call.1} parent=11 // pred_check_branch
          %261 = sbr.rel (%p259) target = $region36
        $region35: #{tpu_custom_call.1} parent=11 // pred_region
          _
        $region36: #{tpu_custom_call.1} parent=11 // pred_fallthru
          _
      $region12: #{tpu_custom_call.1} parent=5 // pred_fallthru
        _
      %p262 = scmp.lt.s32.totalorder %s21, 2
      // Predicated region
      $region37: #{tpu_custom_call.1} parent=5 // pred_check
        %p263 = pneg %p262
      $region38: #{tpu_custom_call.1} parent=5 // pred_check_branch
        %265 = sbr.rel (%p263) target = $region40
      $region39: #{tpu_custom_call.1} parent=5 // pred_region
        // Predicated region
        $region41: #{tpu_custom_call.1} parent=39 // pred_check
          %p266 = pneg %p41
        $region42: #{tpu_custom_call.1} parent=39 // pred_check_branch
          %268 = sbr.rel (%p266) target = $region44
        $region43: #{tpu_custom_call.1} parent=39 // pred_region
          %s269 = sand.u32 %s31, 1
          %s270 = scalar_lea.sflag [#allocation3], %s269
          %s271 = sand.u32 %s31, 1
          %s272 = smul.addr %s271, 256
          %s273 = scalar_lea.vmem [#allocation2], %s272
          %s274 = smul.u32 16, %s21
          %s276 = ssub.s32 4096, 4096
          %277 = vsyncadd %s270, %s276
          %s278 = smul.addr %s274, 2
          %s279 = smul.addr %s278, 128
          %s280 = scalar_lea.hbm %s0, %s279
          %s281 = sshll.u32 %s273, 4
          %s282 = int_to_ptr.vmem [resolvable:$true] %s281
          %287 = dma.hbm_to_vmem [thread:$0]  %s280, 4096, %s282, %s270, 256, 256, 16
        $region44: #{tpu_custom_call.1} parent=39 // pred_fallthru
          _
      $region40: #{tpu_custom_call.1} parent=5 // pred_fallthru
        _
      %p288 = scmp.le.s32.totalorder 1, %s21
      %p289 = scmp.lt.s32.totalorder %s21, 3
      %p290 = pnand %p288, %p289
      %p291 = pneg %p290
      // Predicated region
      $region45: #{tpu_custom_call.1} parent=5 // pred_check
        _
      $region46: #{tpu_custom_call.1} parent=5 // pred_check_branch
        %293 = sbr.rel (%p290) target = $region48
      $region47: #{tpu_custom_call.1} parent=5 // pred_region
        %s294 = ssub.s32 %s21, 1
        %s295 = sand.u32 %s34, 1
        %s296 = scalar_lea.sflag [#allocation3], %s295
        %s297 = sand.u32 %s34, 1
        %s298 = smul.addr %s297, 256
        %s299 = scalar_lea.vmem [#allocation2], %s298
        // Predicated region
        $region49: #{tpu_custom_call.1} parent=47 // pred_check
          %p300 = pneg %p47
        $region50: #{tpu_custom_call.1} parent=47 // pred_check_branch
          %302 = sbr.rel (%p300) target = $region52
        $region51: #{tpu_custom_call.1} parent=47 // pred_region
          %303 = dma.done %s296, 4096
        $region52: #{tpu_custom_call.1} parent=47 // pred_fallthru
          _
        // Predicated region
        $region53: #{tpu_custom_call.1} parent=47 // pred_check
          %p304 = pneg %p68
        $region54: #{tpu_custom_call.1} parent=47 // pred_check_branch
          %306 = sbr.rel (%p304) target = $region56
        $region55: #{tpu_custom_call.1} parent=47 // pred_region
          %307 = dma.done [#allocation6], 8192
        $region56: #{tpu_custom_call.1} parent=47 // pred_fallthru
          _
        // Predicated region
        $region57: #{tpu_custom_call.1} parent=47 // pred_check
          %p308 = pneg %p110
        $region58: #{tpu_custom_call.1} parent=47 // pred_check_branch
          %310 = sbr.rel (%p308) target = $region60
        $region59: #{tpu_custom_call.1} parent=47 // pred_region
          %311 = dma.done [#allocation6], 8192
        $region60: #{tpu_custom_call.1} parent=47 // pred_fallthru
          _
        // Predicated region
        $region61: #{tpu_custom_call.1} parent=47 // pred_check
          %p312 = pneg %p152
        $region62: #{tpu_custom_call.1} parent=47 // pred_check_branch
          %314 = sbr.rel (%p312) target = $region64
        $region63: #{tpu_custom_call.1} parent=47 // pred_region
          %315 = dma.done [#allocation9], 2048
        $region64: #{tpu_custom_call.1} parent=47 // pred_fallthru
          _
        %s316 = sand.u32 %s34, 1
        %s317 = scalar_lea.sflag [#allocation3], %s316
        %s318 = sand.u32 %s34, 1
        %s319 = smul.addr %s318, 256
        %s320 = scalar_lea.vmem [#allocation2], %s319
        %p321 = pneg %p47
        %p322 = pneg %p44
        %p323 = pneg %p68
        %p324 = pneg %p65
        %p325 = pneg %p89
        %p326 = pneg %p86
        %p327 = pneg %p110
        %p328 = pneg %p107
        %p329 = pneg %p131
        %p330 = pneg %p128
        %p331 = pneg %p152
        %p332 = pneg %p149
        %p333 = pneg %p173
        %p334 = pneg %p170
        %p335 = pneg %p199
        %p336 = pneg %p196
        %s337 = sand.u32 %s186, 1
        %s338 = scalar_lea.sflag [#allocation4], %s337
        %s339 = sand.u32 %s186, 1
        %s340 = smul.addr %s339, 128
        %s341 = scalar_lea.vmem [#allocation10], %s340
        %s342 = smul.u32 16, %s26
        %s343 = smul.u32 16, %s26
        %v345 = vld [vmem:[%s299] sm:$0xff]
        %v346 = vld [vmem:[%s299 + $0x8] sm:$0xff]
        %v347 = vld [vmem:[%s299 + $0x10] sm:$0xff]
        %v348 = vld [vmem:[%s299 + $0x18] sm:$0xff]
        %v349 = vld [vmem:[%s299 + $0x20] sm:$0xff]
        %v350 = vld [vmem:[%s299 + $0x28] sm:$0xff]
        %v351 = vld [vmem:[%s299 + $0x30] sm:$0xff]
        %v352 = vld [vmem:[%s299 + $0x38] sm:$0xff]
        %v353 = vld [vmem:[%s299 + $0x40] sm:$0xff]
        %v354 = vld [vmem:[%s299 + $0x48] sm:$0xff]
        %v355 = vld [vmem:[%s299 + $0x50] sm:$0xff]
        %v356 = vld [vmem:[%s299 + $0x58] sm:$0xff]
        %v357 = vld [vmem:[%s299 + $0x60] sm:$0xff]
        %v358 = vld [vmem:[%s299 + $0x68] sm:$0xff]
        %v359 = vld [vmem:[%s299 + $0x70] sm:$0xff]
        %v360 = vld [vmem:[%s299 + $0x78] sm:$0xff]
        %v361 = vld [vmem:[%s299 + $0x80] sm:$0xff]
        %v362 = vld [vmem:[%s299 + $0x88] sm:$0xff]
        %v363 = vld [vmem:[%s299 + $0x90] sm:$0xff]
        %v364 = vld [vmem:[%s299 + $0x98] sm:$0xff]
        %v365 = vld [vmem:[%s299 + $0xa0] sm:$0xff]
        %v366 = vld [vmem:[%s299 + $0xa8] sm:$0xff]
        %v367 = vld [vmem:[%s299 + $0xb0] sm:$0xff]
        %v368 = vld [vmem:[%s299 + $0xb8] sm:$0xff]
        %v369 = vld [vmem:[%s299 + $0xc0] sm:$0xff]
        %v370 = vld [vmem:[%s299 + $0xc8] sm:$0xff]
        %v371 = vld [vmem:[%s299 + $0xd0] sm:$0xff]
        %v372 = vld [vmem:[%s299 + $0xd8] sm:$0xff]
        %v373 = vld [vmem:[%s299 + $0xe0] sm:$0xff]
        %v374 = vld [vmem:[%s299 + $0xe8] sm:$0xff]
        %v375 = vld [vmem:[%s299 + $0xf0] sm:$0xff]
        %v376 = vld [vmem:[%s299 + $0xf8] sm:$0xff]
        %v377 = vpack.c.bf16 %v347, %v345
        %v378 = vpack.c.bf16 %v348, %v346
        %v379 = vpack.c.bf16 %v351, %v349
        %v380 = vpack.c.bf16 %v352, %v350
        %v381 = vpack.c.bf16 %v355, %v353
        %v382 = vpack.c.bf16 %v356, %v354
        %v383 = vpack.c.bf16 %v359, %v357
        %v384 = vpack.c.bf16 %v360, %v358
        %v385 = vpack.c.bf16 %v363, %v361
        %v386 = vpack.c.bf16 %v364, %v362
        %v387 = vpack.c.bf16 %v367, %v365
        %v388 = vpack.c.bf16 %v368, %v366
        %v389 = vpack.c.bf16 %v371, %v369
        %v390 = vpack.c.bf16 %v372, %v370
        %v391 = vpack.c.bf16 %v375, %v373
        %v392 = vpack.c.bf16 %v376, %v374
        %v393 = vld [vmem:[#allocation5] sm:$0xff]
        %v394 = vld [vmem:[#allocation5 + $0x8] sm:$0xff]
        %v395 = vld [vmem:[#allocation5 + $0x10] sm:$0xff]
        %v396 = vld [vmem:[#allocation5 + $0x18] sm:$0xff]
        %v397 = vld [vmem:[#allocation5 + $0x20] sm:$0xff]
        %v398 = vld [vmem:[#allocation5 + $0x28] sm:$0xff]
        %v399 = vld [vmem:[#allocation5 + $0x30] sm:$0xff]
        %v400 = vld [vmem:[#allocation5 + $0x38] sm:$0xff]
        %v401 = vld [vmem:[#allocation5 + $0x40] sm:$0xff]
        %v402 = vld [vmem:[#allocation5 + $0x48] sm:$0xff]
        %v403 = vld [vmem:[#allocation5 + $0x50] sm:$0xff]
        %v404 = vld [vmem:[#allocation5 + $0x58] sm:$0xff]
        %v405 = vld [vmem:[#allocation5 + $0x60] sm:$0xff]
        %v406 = vld [vmem:[#allocation5 + $0x68] sm:$0xff]
        %v407 = vld [vmem:[#allocation5 + $0x70] sm:$0xff]
        %v408 = vld [vmem:[#allocation5 + $0x78] sm:$0xff]
        %v409 = vld [vmem:[#allocation5 + $0x80] sm:$0xff]
        %v410 = vld [vmem:[#allocation5 + $0x88] sm:$0xff]
        %v411 = vld [vmem:[#allocation5 + $0x90] sm:$0xff]
        %v412 = vld [vmem:[#allocation5 + $0x98] sm:$0xff]
        %v413 = vld [vmem:[#allocation5 + $0xa0] sm:$0xff]
        %v414 = vld [vmem:[#allocation5 + $0xa8] sm:$0xff]
        %v415 = vld [vmem:[#allocation5 + $0xb0] sm:$0xff]
        %v416 = vld [vmem:[#allocation5 + $0xb8] sm:$0xff]
        %v417 = vld [vmem:[#allocation5 + $0xc0] sm:$0xff]
        %v418 = vld [vmem:[#allocation5 + $0xc8] sm:$0xff]
        %v419 = vld [vmem:[#allocation5 + $0xd0] sm:$0xff]
        %v420 = vld [vmem:[#allocation5 + $0xd8] sm:$0xff]
        %v421 = vld [vmem:[#allocation5 + $0xe0] sm:$0xff]
        %v422 = vld [vmem:[#allocation5 + $0xe8] sm:$0xff]
        %v423 = vld [vmem:[#allocation5 + $0xf0] sm:$0xff]
        %v424 = vld [vmem:[#allocation5 + $0xf8] sm:$0xff]
        %v425 = vld [vmem:[#allocation5 + $0x100] sm:$0xff]
        %v426 = vld [vmem:[#allocation5 + $0x108] sm:$0xff]
        %v427 = vld [vmem:[#allocation5 + $0x110] sm:$0xff]
        %v428 = vld [vmem:[#allocation5 + $0x118] sm:$0xff]
        %v429 = vld [vmem:[#allocation5 + $0x120] sm:$0xff]
        %v430 = vld [vmem:[#allocation5 + $0x128] sm:$0xff]
        %v431 = vld [vmem:[#allocation5 + $0x130] sm:$0xff]
        %v432 = vld [vmem:[#allocation5 + $0x138] sm:$0xff]
        %v433 = vld [vmem:[#allocation5 + $0x140] sm:$0xff]
        %v434 = vld [vmem:[#allocation5 + $0x148] sm:$0xff]
        %v435 = vld [vmem:[#allocation5 + $0x150] sm:$0xff]
        %v436 = vld [vmem:[#allocation5 + $0x158] sm:$0xff]
        %v437 = vld [vmem:[#allocation5 + $0x160] sm:$0xff]
        %v438 = vld [vmem:[#allocation5 + $0x168] sm:$0xff]
        %v439 = vld [vmem:[#allocation5 + $0x170] sm:$0xff]
        %v440 = vld [vmem:[#allocation5 + $0x178] sm:$0xff]
        %v441 = vld [vmem:[#allocation5 + $0x180] sm:$0xff]
        %v442 = vld [vmem:[#allocation5 + $0x188] sm:$0xff]
        %v443 = vld [vmem:[#allocation5 + $0x190] sm:$0xff]
        %v444 = vld [vmem:[#allocation5 + $0x198] sm:$0xff]
        %v445 = vld [vmem:[#allocation5 + $0x1a0] sm:$0xff]
        %v446 = vld [vmem:[#allocation5 + $0x1a8] sm:$0xff]
        %v447 = vld [vmem:[#allocation5 + $0x1b0] sm:$0xff]
        %v448 = vld [vmem:[#allocation5 + $0x1b8] sm:$0xff]
        %v449 = vld [vmem:[#allocation5 + $0x1c0] sm:$0xff]
        %v450 = vld [vmem:[#allocation5 + $0x1c8] sm:$0xff]
        %v451 = vld [vmem:[#allocation5 + $0x1d0] sm:$0xff]
        %v452 = vld [vmem:[#allocation5 + $0x1d8] sm:$0xff]
        %v453 = vld [vmem:[#allocation5 + $0x1e0] sm:$0xff]
        %v454 = vld [vmem:[#allocation5 + $0x1e8] sm:$0xff]
        %v455 = vld [vmem:[#allocation5 + $0x1f0] sm:$0xff]
        %v456 = vld [vmem:[#allocation5 + $0x1f8] sm:$0xff]
        %v457 = vld [vmem:[%s2] sm:$0xf]
        %v459 = vlaneseq
        %v460 = vshrl.u32 %v459, 7
        %v461 = vsub.s32 0, %v460
        %v462 = vrot.slane %v457, %v461
        %v463 = vlaneseq
        %v464 = vshrl.u32 %v463, 7
        %v465 = vsub.s32 1, %v464
        %v466 = vrot.slane %v457, %v465
        %v467 = vlaneseq
        %v468 = vshrl.u32 %v467, 7
        %v469 = vsub.s32 2, %v468
        %v470 = vrot.slane %v457, %v469
        %v471 = vlaneseq
        %v472 = vshrl.u32 %v471, 7
        %v473 = vsub.s32 3, %v472
        %v474 = vrot.slane %v457, %v473
        %v543 = vunpack.c.l.b16 %v393
        %v544 = vunpack.c.h.b16 %v393
        %v545 = vunpack.c.l.b16 %v394
        %v546 = vunpack.c.h.b16 %v394
        %v547 = vunpack.c.l.b16 %v395
        %v548 = vunpack.c.h.b16 %v395
        %v549 = vunpack.c.l.b16 %v396
        %v550 = vunpack.c.h.b16 %v396
        %v551 = vunpack.c.l.b16 %v397
        %v552 = vunpack.c.h.b16 %v397
        %v553 = vunpack.c.l.b16 %v398
        %v554 = vunpack.c.h.b16 %v398
        %v555 = vunpack.c.l.b16 %v399
        %v556 = vunpack.c.h.b16 %v399
        %v557 = vunpack.c.l.b16 %v400
        %v558 = vunpack.c.h.b16 %v400
        %v559 = vunpack.c.l.b16 %v401
        %v560 = vunpack.c.h.b16 %v401
        %v561 = vunpack.c.l.b16 %v402
        %v562 = vunpack.c.h.b16 %v402
        %v563 = vunpack.c.l.b16 %v403
        %v564 = vunpack.c.h.b16 %v403
        %v565 = vunpack.c.l.b16 %v404
        %v566 = vunpack.c.h.b16 %v404
        %v567 = vunpack.c.l.b16 %v405
        %v568 = vunpack.c.h.b16 %v405
        %v569 = vunpack.c.l.b16 %v406
        %v570 = vunpack.c.h.b16 %v406
        %v571 = vunpack.c.l.b16 %v407
        %v572 = vunpack.c.h.b16 %v407
        %v573 = vunpack.c.l.b16 %v408
        %v574 = vunpack.c.h.b16 %v408
        %v575 = vunpack.c.l.b16 %v409
        %v576 = vunpack.c.h.b16 %v409
        %v577 = vunpack.c.l.b16 %v410
        %v578 = vunpack.c.h.b16 %v410
        %v579 = vunpack.c.l.b16 %v411
        %v580 = vunpack.c.h.b16 %v411
        %v581 = vunpack.c.l.b16 %v412
        %v582 = vunpack.c.h.b16 %v412
        %v583 = vunpack.c.l.b16 %v413
        %v584 = vunpack.c.h.b16 %v413
        %v585 = vunpack.c.l.b16 %v414
        %v586 = vunpack.c.h.b16 %v414
        %v587 = vunpack.c.l.b16 %v415
        %v588 = vunpack.c.h.b16 %v415
        %v589 = vunpack.c.l.b16 %v416
        %v590 = vunpack.c.h.b16 %v416
        %v591 = vunpack.c.l.b16 %v417
        %v592 = vunpack.c.h.b16 %v417
        %v593 = vunpack.c.l.b16 %v418
        %v594 = vunpack.c.h.b16 %v418
        %v595 = vunpack.c.l.b16 %v419
        %v596 = vunpack.c.h.b16 %v419
        %v597 = vunpack.c.l.b16 %v420
        %v598 = vunpack.c.h.b16 %v420
        %v599 = vunpack.c.l.b16 %v421
        %v600 = vunpack.c.h.b16 %v421
        %v601 = vunpack.c.l.b16 %v422
        %v602 = vunpack.c.h.b16 %v422
        %v603 = vunpack.c.l.b16 %v423
        %v604 = vunpack.c.h.b16 %v423
        %v605 = vunpack.c.l.b16 %v424
        %v606 = vunpack.c.h.b16 %v424
        %v607 = vunpack.c.l.b16 %v425
        %v608 = vunpack.c.h.b16 %v425
        %v609 = vunpack.c.l.b16 %v426
        %v610 = vunpack.c.h.b16 %v426
        %v611 = vunpack.c.l.b16 %v427
        %v612 = vunpack.c.h.b16 %v427
        %v613 = vunpack.c.l.b16 %v428
        %v614 = vunpack.c.h.b16 %v428
        %v615 = vunpack.c.l.b16 %v429
        %v616 = vunpack.c.h.b16 %v429
        %v617 = vunpack.c.l.b16 %v430
        %v618 = vunpack.c.h.b16 %v430
        %v619 = vunpack.c.l.b16 %v431
        %v620 = vunpack.c.h.b16 %v431
        %v621 = vunpack.c.l.b16 %v432
        %v622 = vunpack.c.h.b16 %v432
        %v623 = vunpack.c.l.b16 %v433
        %v624 = vunpack.c.h.b16 %v433
        %v625 = vunpack.c.l.b16 %v434
        %v626 = vunpack.c.h.b16 %v434
        %v627 = vunpack.c.l.b16 %v435
        %v628 = vunpack.c.h.b16 %v435
        %v629 = vunpack.c.l.b16 %v436
        %v630 = vunpack.c.h.b16 %v436
        %v631 = vunpack.c.l.b16 %v437
        %v632 = vunpack.c.h.b16 %v437
        %v633 = vunpack.c.l.b16 %v438
        %v634 = vunpack.c.h.b16 %v438
        %v635 = vunpack.c.l.b16 %v439
        %v636 = vunpack.c.h.b16 %v439
        %v637 = vunpack.c.l.b16 %v440
        %v638 = vunpack.c.h.b16 %v440
        %v639 = vunpack.c.l.b16 %v441
        %v640 = vunpack.c.h.b16 %v441
        %v641 = vunpack.c.l.b16 %v442
        %v642 = vunpack.c.h.b16 %v442
        %v643 = vunpack.c.l.b16 %v443
        %v644 = vunpack.c.h.b16 %v443
        %v645 = vunpack.c.l.b16 %v444
        %v646 = vunpack.c.h.b16 %v444
        %v647 = vunpack.c.l.b16 %v445
        %v648 = vunpack.c.h.b16 %v445
        %v649 = vunpack.c.l.b16 %v446
        %v650 = vunpack.c.h.b16 %v446
        %v651 = vunpack.c.l.b16 %v447
        %v652 = vunpack.c.h.b16 %v447
        %v653 = vunpack.c.l.b16 %v448
        %v654 = vunpack.c.h.b16 %v448
        %v655 = vunpack.c.l.b16 %v449
        %v656 = vunpack.c.h.b16 %v449
        %v657 = vunpack.c.l.b16 %v450
        %v658 = vunpack.c.h.b16 %v450
        %v659 = vunpack.c.l.b16 %v451
        %v660 = vunpack.c.h.b16 %v451
        %v661 = vunpack.c.l.b16 %v452
        %v662 = vunpack.c.h.b16 %v452
        %v663 = vunpack.c.l.b16 %v453
        %v664 = vunpack.c.h.b16 %v453
        %v665 = vunpack.c.l.b16 %v454
        %v666 = vunpack.c.h.b16 %v454
        %v667 = vunpack.c.l.b16 %v455
        %v668 = vunpack.c.h.b16 %v455
        %v669 = vunpack.c.l.b16 %v456
        %v670 = vunpack.c.h.b16 %v456
        %v671 = vpack.c.b16 %v547, %v543
        %v672 = vpack.c.b16 %v548, %v544
        %v673 = vpack.c.b16 %v549, %v545
        %v674 = vpack.c.b16 %v550, %v546
        %v675 = vpack.c.b16 %v555, %v551
        %v676 = vpack.c.b16 %v556, %v552
        %v677 = vpack.c.b16 %v557, %v553
        %v678 = vpack.c.b16 %v558, %v554
        %v679 = vpack.c.b16 %v563, %v559
        %v680 = vpack.c.b16 %v564, %v560
        %v681 = vpack.c.b16 %v565, %v561
        %v682 = vpack.c.b16 %v566, %v562
        %v683 = vpack.c.b16 %v571, %v567
        %v684 = vpack.c.b16 %v572, %v568
        %v685 = vpack.c.b16 %v573, %v569
        %v686 = vpack.c.b16 %v574, %v570
        %v687 = vpack.c.b16 %v579, %v575
        %v688 = vpack.c.b16 %v580, %v576
        %v689 = vpack.c.b16 %v581, %v577
        %v690 = vpack.c.b16 %v582, %v578
        %v691 = vpack.c.b16 %v587, %v583
        %v692 = vpack.c.b16 %v588, %v584
        %v693 = vpack.c.b16 %v589, %v585
        %v694 = vpack.c.b16 %v590, %v586
        %v695 = vpack.c.b16 %v595, %v591
        %v696 = vpack.c.b16 %v596, %v592
        %v697 = vpack.c.b16 %v597, %v593
        %v698 = vpack.c.b16 %v598, %v594
        %v699 = vpack.c.b16 %v603, %v599
        %v700 = vpack.c.b16 %v604, %v600
        %v701 = vpack.c.b16 %v605, %v601
        %v702 = vpack.c.b16 %v606, %v602
        %v703 = vpack.c.b16 %v611, %v607
        %v704 = vpack.c.b16 %v612, %v608
        %v705 = vpack.c.b16 %v613, %v609
        %v706 = vpack.c.b16 %v614, %v610
        %v707 = vpack.c.b16 %v619, %v615
        %v708 = vpack.c.b16 %v620, %v616
        %v709 = vpack.c.b16 %v621, %v617
        %v710 = vpack.c.b16 %v622, %v618
        %v711 = vpack.c.b16 %v627, %v623
        %v712 = vpack.c.b16 %v628, %v624
        %v713 = vpack.c.b16 %v629, %v625
        %v714 = vpack.c.b16 %v630, %v626
        %v715 = vpack.c.b16 %v635, %v631
        %v716 = vpack.c.b16 %v636, %v632
        %v717 = vpack.c.b16 %v637, %v633
        %v718 = vpack.c.b16 %v638, %v634
        %v719 = vpack.c.b16 %v643, %v639
        %v720 = vpack.c.b16 %v644, %v640
        %v721 = vpack.c.b16 %v645, %v641
        %v722 = vpack.c.b16 %v646, %v642
        %v723 = vpack.c.b16 %v651, %v647
        %v724 = vpack.c.b16 %v652, %v648
        %v725 = vpack.c.b16 %v653, %v649
        %v726 = vpack.c.b16 %v654, %v650
        %v727 = vpack.c.b16 %v659, %v655
        %v728 = vpack.c.b16 %v660, %v656
        %v729 = vpack.c.b16 %v661, %v657
        %v730 = vpack.c.b16 %v662, %v658
        %v731 = vpack.c.b16 %v667, %v663
        %v732 = vpack.c.b16 %v668, %v664
        %v733 = vpack.c.b16 %v669, %v665
        %v734 = vpack.c.b16 %v670, %v666
        %799 = vmatprep.subr.bf16.mxu0 %v672
        %800 = vmatpush1.bf16.msra.mxu0 %v671
        %801 = vmatprep.subr.bf16.mxu0 %v676
        %802 = vmatpush1.bf16.msra.mxu0 %v675
        %803 = vmatprep.subr.bf16.mxu0 %v680
        %804 = vmatpush1.bf16.msra.mxu0 %v679
        %805 = vmatprep.subr.bf16.mxu0 %v684
        %806 = vmatpush1.bf16.msra.mxu0 %v683
        %807 = vmatprep.subr.bf16.mxu0 %v688
        %808 = vmatpush1.bf16.msra.mxu0 %v687
        %809 = vmatprep.subr.bf16.mxu0 %v692
        %810 = vmatpush1.bf16.msra.mxu0 %v691
        %811 = vmatprep.subr.bf16.mxu0 %v696
        %812 = vmatpush1.bf16.msra.mxu0 %v695
        %813 = vmatprep.subr.bf16.mxu0 %v700
        %814 = vmatpush1.bf16.msra.mxu0 %v699
        %815 = vmatprep.subr.bf16.mxu0 %v704
        %816 = vmatpush1.bf16.msra.mxu0 %v703
        %817 = vmatprep.subr.bf16.mxu0 %v708
        %818 = vmatpush1.bf16.msra.mxu0 %v707
        %819 = vmatprep.subr.bf16.mxu0 %v712
        %820 = vmatpush1.bf16.msra.mxu0 %v711
        %821 = vmatprep.subr.bf16.mxu0 %v716
        %822 = vmatpush1.bf16.msra.mxu0 %v715
        %823 = vmatprep.subr.bf16.mxu0 %v720
        %824 = vmatpush1.bf16.msra.mxu0 %v719
        %825 = vmatprep.subr.bf16.mxu0 %v724
        %826 = vmatpush1.bf16.msra.mxu0 %v723
        %827 = vmatprep.subr.bf16.mxu0 %v728
        %828 = vmatpush1.bf16.msra.mxu0 %v727
        %829 = vmatprep.subr.bf16.mxu0 %v732
        %830 = vmatpush1.bf16.msra.mxu0 %v731
        %831 = vmatprep.mubr.bf16.mxu0 %v378
        %832 = vmatmul.mubr.bf16.gmra.mrb[0].mxu0 %v377
        %v833 = vpop.f32.mrb[0].mxu0
        %v834 = vadd.f32 %v462, %v833
        %v835 = vpop.f32.mrb[0].mxu0
        %v836 = vadd.f32 %v466, %v835
        %v837 = vpop.f32.mrb[0].mxu0
        %v838 = vadd.f32 %v462, %v837
        %v839 = vpop.f32.mrb[0].mxu0
        %v840 = vadd.f32 %v466, %v839
        %841 = vmatprep.mubr.bf16.mxu0 %v380
        %842 = vmatmul.mubr.bf16.gmra.mrb[0].mxu0 %v379
        %v843 = vpop.f32.mrb[0].mxu0
        %v844 = vadd.f32 %v462, %v843
        %v845 = vpop.f32.mrb[0].mxu0
        %v846 = vadd.f32 %v466, %v845
        %v847 = vpop.f32.mrb[0].mxu0
        %v848 = vadd.f32 %v462, %v847
        %v849 = vpop.f32.mrb[0].mxu0
        %v850 = vadd.f32 %v466, %v849
        %851 = vmatprep.mubr.bf16.mxu0 %v382
        %852 = vmatmul.mubr.bf16.gmra.mrb[0].mxu0 %v381
        %v853 = vpop.f32.mrb[0].mxu0
        %v854 = vadd.f32 %v462, %v853
        %v855 = vpop.f32.mrb[0].mxu0
        %v856 = vadd.f32 %v466, %v855
        %v857 = vpop.f32.mrb[0].mxu0
        %v858 = vadd.f32 %v462, %v857
        %v859 = vpop.f32.mrb[0].mxu0
        %v860 = vadd.f32 %v466, %v859
        %861 = vmatprep.mubr.bf16.mxu0 %v384
        %862 = vmatmul.mubr.bf16.gmra.mrb[0].mxu0 %v383
        %v863 = vpop.f32.mrb[0].mxu0
        %v864 = vadd.f32 %v462, %v863
        %v865 = vpop.f32.mrb[0].mxu0
        %v866 = vadd.f32 %v466, %v865
        %v867 = vpop.f32.mrb[0].mxu0
        %v868 = vadd.f32 %v462, %v867
        %v869 = vpop.f32.mrb[0].mxu0
        %v870 = vadd.f32 %v466, %v869
        %871 = vmatprep.mubr.bf16.mxu0 %v386
        %872 = vmatmul.mubr.bf16.gmra.mrb[0].mxu0 %v385
        %v873 = vpop.f32.mrb[0].mxu0
        %v874 = vadd.f32 %v462, %v873
        %v875 = vpop.f32.mrb[0].mxu0
        %v876 = vadd.f32 %v466, %v875
        %v877 = vpop.f32.mrb[0].mxu0
        %v878 = vadd.f32 %v462, %v877
        %v879 = vpop.f32.mrb[0].mxu0
        %v880 = vadd.f32 %v466, %v879
        %881 = vmatprep.mubr.bf16.mxu0 %v388
        %882 = vmatmul.mubr.bf16.gmra.mrb[0].mxu0 %v387
        %v883 = vpop.f32.mrb[0].mxu0
        %v884 = vadd.f32 %v462, %v883
        %v885 = vpop.f32.mrb[0].mxu0
        %v886 = vadd.f32 %v466, %v885
        %v887 = vpop.f32.mrb[0].mxu0
        %v888 = vadd.f32 %v462, %v887
        %v889 = vpop.f32.mrb[0].mxu0
        %v890 = vadd.f32 %v466, %v889
        %891 = vmatprep.mubr.bf16.mxu0 %v390
        %892 = vmatmul.mubr.bf16.gmra.mrb[0].mxu0 %v389
        %v893 = vpop.f32.mrb[0].mxu0
        %v894 = vadd.f32 %v462, %v893
        %v895 = vpop.f32.mrb[0].mxu0
        %v896 = vadd.f32 %v466, %v895
        %v897 = vpop.f32.mrb[0].mxu0
        %v898 = vadd.f32 %v462, %v897
        %v899 = vpop.f32.mrb[0].mxu0
        %v900 = vadd.f32 %v466, %v899
        %901 = vmatprep.mubr.bf16.mxu0 %v392
        %902 = vmatmul.mubr.bf16.gmra.mrb[0].mxu0 %v391
        %v903 = vpop.f32.mrb[0].mxu0
        %v904 = vadd.f32 %v462, %v903
        %v905 = vpop.f32.mrb[0].mxu0
        %v906 = vadd.f32 %v466, %v905
        %v907 = vpop.f32.mrb[0].mxu0
        %v908 = vadd.f32 %v462, %v907
        %v909 = vpop.f32.mrb[0].mxu0
        %v910 = vadd.f32 %v466, %v909
        %911 = vdwg.mxu0
        %912 = vmatprep.subr.bf16.mxu0 %v674
        %913 = vmatpush1.bf16.msra.mxu0 %v673
        %914 = vmatprep.subr.bf16.mxu0 %v678
        %915 = vmatpush1.bf16.msra.mxu0 %v677
        %916 = vmatprep.subr.bf16.mxu0 %v682
        %917 = vmatpush1.bf16.msra.mxu0 %v681
        %918 = vmatprep.subr.bf16.mxu0 %v686
        %919 = vmatpush1.bf16.msra.mxu0 %v685
        %920 = vmatprep.subr.bf16.mxu0 %v690
        %921 = vmatpush1.bf16.msra.mxu0 %v689
        %922 = vmatprep.subr.bf16.mxu0 %v694
        %923 = vmatpush1.bf16.msra.mxu0 %v693
        %924 = vmatprep.subr.bf16.mxu0 %v698
        %925 = vmatpush1.bf16.msra.mxu0 %v697
        %926 = vmatprep.subr.bf16.mxu0 %v702
        %927 = vmatpush1.bf16.msra.mxu0 %v701
        %928 = vmatprep.subr.bf16.mxu0 %v706
        %929 = vmatpush1.bf16.msra.mxu0 %v705
        %930 = vmatprep.subr.bf16.mxu0 %v710
        %931 = vmatpush1.bf16.msra.mxu0 %v709
        %932 = vmatprep.subr.bf16.mxu0 %v714
        %933 = vmatpush1.bf16.msra.mxu0 %v713
        %934 = vmatprep.subr.bf16.mxu0 %v718
        %935 = vmatpush1.bf16.msra.mxu0 %v717
        %936 = vmatprep.subr.bf16.mxu0 %v722
        %937 = vmatpush1.bf16.msra.mxu0 %v721
        %938 = vmatprep.subr.bf16.mxu0 %v726
        %939 = vmatpush1.bf16.msra.mxu0 %v725
        %940 = vmatprep.subr.bf16.mxu0 %v730
        %941 = vmatpush1.bf16.msra.mxu0 %v729
        %942 = vmatprep.subr.bf16.mxu0 %v734
        %943 = vmatpush1.bf16.msra.mxu0 %v733
        %944 = vmatprep.mubr.bf16.mxu0 %v378
        %945 = vmatmul.mubr.bf16.gmra.mrb[0].mxu0 %v377
        %v946 = vpop.f32.mrb[0].mxu0
        %v947 = vadd.f32 %v470, %v946
        %v948 = vpop.f32.mrb[0].mxu0
        %v949 = vadd.f32 %v474, %v948
        %v950 = vpop.f32.mrb[0].mxu0
        %v951 = vadd.f32 %v470, %v950
        %v952 = vpop.f32.mrb[0].mxu0
        %v953 = vadd.f32 %v474, %v952
        %954 = vmatprep.mubr.bf16.mxu0 %v380
        %955 = vmatmul.mubr.bf16.gmra.mrb[0].mxu0 %v379
        %v956 = vpop.f32.mrb[0].mxu0
        %v957 = vadd.f32 %v470, %v956
        %v958 = vpop.f32.mrb[0].mxu0
        %v959 = vadd.f32 %v474, %v958
        %v960 = vpop.f32.mrb[0].mxu0
        %v961 = vadd.f32 %v470, %v960
        %v962 = vpop.f32.mrb[0].mxu0
        %v963 = vadd.f32 %v474, %v962
        %964 = vmatprep.mubr.bf16.mxu0 %v382
        %965 = vmatmul.mubr.bf16.gmra.mrb[0].mxu0 %v381
        %v966 = vpop.f32.mrb[0].mxu0
        %v967 = vadd.f32 %v470, %v966
        %v968 = vpop.f32.mrb[0].mxu0
        %v969 = vadd.f32 %v474, %v968
        %v970 = vpop.f32.mrb[0].mxu0
        %v971 = vadd.f32 %v470, %v970
        %v972 = vpop.f32.mrb[0].mxu0
        %v973 = vadd.f32 %v474, %v972
        %974 = vmatprep.mubr.bf16.mxu0 %v384
        %975 = vmatmul.mubr.bf16.gmra.mrb[0].mxu0 %v383
        %v976 = vpop.f32.mrb[0].mxu0
        %v977 = vadd.f32 %v470, %v976
        %v978 = vpop.f32.mrb[0].mxu0
        %v979 = vadd.f32 %v474, %v978
        %v980 = vpop.f32.mrb[0].mxu0
        %v981 = vadd.f32 %v470, %v980
        %v982 = vpop.f32.mrb[0].mxu0
        %v983 = vadd.f32 %v474, %v982
        %984 = vmatprep.mubr.bf16.mxu0 %v386
        %985 = vmatmul.mubr.bf16.gmra.mrb[0].mxu0 %v385
        %v986 = vpop.f32.mrb[0].mxu0
        %v987 = vadd.f32 %v470, %v986
        %v988 = vpop.f32.mrb[0].mxu0
        %v989 = vadd.f32 %v474, %v988
        %v990 = vpop.f32.mrb[0].mxu0
        %v991 = vadd.f32 %v470, %v990
        %v992 = vpop.f32.mrb[0].mxu0
        %v993 = vadd.f32 %v474, %v992
        %994 = vmatprep.mubr.bf16.mxu0 %v388
        %995 = vmatmul.mubr.bf16.gmra.mrb[0].mxu0 %v387
        %v996 = vpop.f32.mrb[0].mxu0
        %v997 = vadd.f32 %v470, %v996
        %v998 = vpop.f32.mrb[0].mxu0
        %v999 = vadd.f32 %v474, %v998
        %v1000 = vpop.f32.mrb[0].mxu0
        %v1001 = vadd.f32 %v470, %v1000
        %v1002 = vpop.f32.mrb[0].mxu0
        %v1003 = vadd.f32 %v474, %v1002
        %1004 = vmatprep.mubr.bf16.mxu0 %v390
        %1005 = vmatmul.mubr.bf16.gmra.mrb[0].mxu0 %v389
        %v1006 = vpop.f32.mrb[0].mxu0
        %v1007 = vadd.f32 %v470, %v1006
        %v1008 = vpop.f32.mrb[0].mxu0
        %v1009 = vadd.f32 %v474, %v1008
        %v1010 = vpop.f32.mrb[0].mxu0
        %v1011 = vadd.f32 %v470, %v1010
        %v1012 = vpop.f32.mrb[0].mxu0
        %v1013 = vadd.f32 %v474, %v1012
        %1014 = vmatprep.mubr.bf16.mxu0 %v392
        %1015 = vmatmul.mubr.bf16.gmra.mrb[0].mxu0 %v391
        %v1016 = vpop.f32.mrb[0].mxu0
        %v1017 = vadd.f32 %v470, %v1016
        %v1018 = vpop.f32.mrb[0].mxu0
        %v1019 = vadd.f32 %v474, %v1018
        %v1020 = vpop.f32.mrb[0].mxu0
        %v1021 = vadd.f32 %v470, %v1020
        %v1022 = vpop.f32.mrb[0].mxu0
        %v1023 = vadd.f32 %v474, %v1022
        %1024 = vdwg.mxu0
        %vm1025 = vcmp.gt.f32.partialorder %v834, 0.0
        %vm1026 = vcmp.gt.f32.partialorder %v836, 0.0
        %vm1027 = vcmp.gt.f32.partialorder %v947, 0.0
        %vm1028 = vcmp.gt.f32.partialorder %v949, 0.0
        %vm1029 = vcmp.gt.f32.partialorder %v838, 0.0
        %vm1030 = vcmp.gt.f32.partialorder %v840, 0.0
        %vm1031 = vcmp.gt.f32.partialorder %v951, 0.0
        %vm1032 = vcmp.gt.f32.partialorder %v953, 0.0
        %vm1033 = vcmp.gt.f32.partialorder %v844, 0.0
        %vm1034 = vcmp.gt.f32.partialorder %v846, 0.0
        %vm1035 = vcmp.gt.f32.partialorder %v957, 0.0
        %vm1036 = vcmp.gt.f32.partialorder %v959, 0.0
        %vm1037 = vcmp.gt.f32.partialorder %v848, 0.0
        %vm1038 = vcmp.gt.f32.partialorder %v850, 0.0
        %vm1039 = vcmp.gt.f32.partialorder %v961, 0.0
        %vm1040 = vcmp.gt.f32.partialorder %v963, 0.0
        %vm1041 = vcmp.gt.f32.partialorder %v854, 0.0
        %vm1042 = vcmp.gt.f32.partialorder %v856, 0.0
        %vm1043 = vcmp.gt.f32.partialorder %v967, 0.0
        %vm1044 = vcmp.gt.f32.partialorder %v969, 0.0
        %vm1045 = vcmp.gt.f32.partialorder %v858, 0.0
        %vm1046 = vcmp.gt.f32.partialorder %v860, 0.0
        %vm1047 = vcmp.gt.f32.partialorder %v971, 0.0
        %vm1048 = vcmp.gt.f32.partialorder %v973, 0.0
        %vm1049 = vcmp.gt.f32.partialorder %v864, 0.0
        %vm1050 = vcmp.gt.f32.partialorder %v866, 0.0
        %vm1051 = vcmp.gt.f32.partialorder %v977, 0.0
        %vm1052 = vcmp.gt.f32.partialorder %v979, 0.0
        %vm1053 = vcmp.gt.f32.partialorder %v868, 0.0
        %vm1054 = vcmp.gt.f32.partialorder %v870, 0.0
        %vm1055 = vcmp.gt.f32.partialorder %v981, 0.0
        %vm1056 = vcmp.gt.f32.partialorder %v983, 0.0
        %vm1057 = vcmp.gt.f32.partialorder %v874, 0.0
        %vm1058 = vcmp.gt.f32.partialorder %v876, 0.0
        %vm1059 = vcmp.gt.f32.partialorder %v987, 0.0
        %vm1060 = vcmp.gt.f32.partialorder %v989, 0.0
        %vm1061 = vcmp.gt.f32.partialorder %v878, 0.0
        %vm1062 = vcmp.gt.f32.partialorder %v880, 0.0
        %vm1063 = vcmp.gt.f32.partialorder %v991, 0.0
        %vm1064 = vcmp.gt.f32.partialorder %v993, 0.0
        %vm1065 = vcmp.gt.f32.partialorder %v884, 0.0
        %vm1066 = vcmp.gt.f32.partialorder %v886, 0.0
        %vm1067 = vcmp.gt.f32.partialorder %v997, 0.0
        %vm1068 = vcmp.gt.f32.partialorder %v999, 0.0
        %vm1069 = vcmp.gt.f32.partialorder %v888, 0.0
        %vm1070 = vcmp.gt.f32.partialorder %v890, 0.0
        %vm1071 = vcmp.gt.f32.partialorder %v1001, 0.0
        %vm1072 = vcmp.gt.f32.partialorder %v1003, 0.0
        %vm1073 = vcmp.gt.f32.partialorder %v894, 0.0
        %vm1074 = vcmp.gt.f32.partialorder %v896, 0.0
        %vm1075 = vcmp.gt.f32.partialorder %v1007, 0.0
        %vm1076 = vcmp.gt.f32.partialorder %v1009, 0.0
        %vm1077 = vcmp.gt.f32.partialorder %v898, 0.0
        %vm1078 = vcmp.gt.f32.partialorder %v900, 0.0
        %vm1079 = vcmp.gt.f32.partialorder %v1011, 0.0
        %vm1080 = vcmp.gt.f32.partialorder %v1013, 0.0
        %vm1081 = vcmp.gt.f32.partialorder %v904, 0.0
        %vm1082 = vcmp.gt.f32.partialorder %v906, 0.0
        %vm1083 = vcmp.gt.f32.partialorder %v1017, 0.0
        %vm1084 = vcmp.gt.f32.partialorder %v1019, 0.0
        %vm1085 = vcmp.gt.f32.partialorder %v908, 0.0
        %vm1086 = vcmp.gt.f32.partialorder %v910, 0.0
        %vm1087 = vcmp.gt.f32.partialorder %v1021, 0.0
        %vm1088 = vcmp.gt.f32.partialorder %v1023, 0.0
        %v1089 = vmul.f32 %v834, 0.2
        %v1090 = vmul.f32 %v836, 0.2
        %v1091 = vmul.f32 %v947, 0.2
        %v1092 = vmul.f32 %v949, 0.2
        %v1093 = vmul.f32 %v838, 0.2
        %v1094 = vmul.f32 %v840, 0.2
        %v1095 = vmul.f32 %v951, 0.2
        %v1096 = vmul.f32 %v953, 0.2
        %v1097 = vmul.f32 %v844, 0.2
        %v1098 = vmul.f32 %v846, 0.2
        %v1099 = vmul.f32 %v957, 0.2
        %v1100 = vmul.f32 %v959, 0.2
        %v1101 = vmul.f32 %v848, 0.2
        %v1102 = vmul.f32 %v850, 0.2
        %v1103 = vmul.f32 %v961, 0.2
        %v1104 = vmul.f32 %v963, 0.2
        %v1105 = vmul.f32 %v854, 0.2
        %v1106 = vmul.f32 %v856, 0.2
        %v1107 = vmul.f32 %v967, 0.2
        %v1108 = vmul.f32 %v969, 0.2
        %v1109 = vmul.f32 %v858, 0.2
        %v1110 = vmul.f32 %v860, 0.2
        %v1111 = vmul.f32 %v971, 0.2
        %v1112 = vmul.f32 %v973, 0.2
        %v1113 = vmul.f32 %v864, 0.2
        %v1114 = vmul.f32 %v866, 0.2
        %v1115 = vmul.f32 %v977, 0.2
        %v1116 = vmul.f32 %v979, 0.2
        %v1117 = vmul.f32 %v868, 0.2
        %v1118 = vmul.f32 %v870, 0.2
        %v1119 = vmul.f32 %v981, 0.2
        %v1120 = vmul.f32 %v983, 0.2
        %v1121 = vmul.f32 %v874, 0.2
        %v1122 = vmul.f32 %v876, 0.2
        %v1123 = vmul.f32 %v987, 0.2
        %v1124 = vmul.f32 %v989, 0.2
        %v1125 = vmul.f32 %v878, 0.2
        %v1126 = vmul.f32 %v880, 0.2
        %v1127 = vmul.f32 %v991, 0.2
        %v1128 = vmul.f32 %v993, 0.2
        %v1129 = vmul.f32 %v884, 0.2
        %v1130 = vmul.f32 %v886, 0.2
        %v1131 = vmul.f32 %v997, 0.2
        %v1132 = vmul.f32 %v999, 0.2
        %v1133 = vmul.f32 %v888, 0.2
        %v1134 = vmul.f32 %v890, 0.2
        %v1135 = vmul.f32 %v1001, 0.2
        %v1136 = vmul.f32 %v1003, 0.2
        %v1137 = vmul.f32 %v894, 0.2
        %v1138 = vmul.f32 %v896, 0.2
        %v1139 = vmul.f32 %v1007, 0.2
        %v1140 = vmul.f32 %v1009, 0.2
        %v1141 = vmul.f32 %v898, 0.2
        %v1142 = vmul.f32 %v900, 0.2
        %v1143 = vmul.f32 %v1011, 0.2
        %v1144 = vmul.f32 %v1013, 0.2
        %v1145 = vmul.f32 %v904, 0.2
        %v1146 = vmul.f32 %v906, 0.2
        %v1147 = vmul.f32 %v1017, 0.2
        %v1148 = vmul.f32 %v1019, 0.2
        %v1149 = vmul.f32 %v908, 0.2
        %v1150 = vmul.f32 %v910, 0.2
        %v1151 = vmul.f32 %v1021, 0.2
        %v1152 = vmul.f32 %v1023, 0.2
        %v1153 = vsel %vm1025, %v834, %v1089
        %v1154 = vsel %vm1026, %v836, %v1090
        %v1155 = vsel %vm1027, %v947, %v1091
        %v1156 = vsel %vm1028, %v949, %v1092
        %v1157 = vsel %vm1029, %v838, %v1093
        %v1158 = vsel %vm1030, %v840, %v1094
        %v1159 = vsel %vm1031, %v951, %v1095
        %v1160 = vsel %vm1032, %v953, %v1096
        %v1161 = vsel %vm1033, %v844, %v1097
        %v1162 = vsel %vm1034, %v846, %v1098
        %v1163 = vsel %vm1035, %v957, %v1099
        %v1164 = vsel %vm1036, %v959, %v1100
        %v1165 = vsel %vm1037, %v848, %v1101
        %v1166 = vsel %vm1038, %v850, %v1102
        %v1167 = vsel %vm1039, %v961, %v1103
        %v1168 = vsel %vm1040, %v963, %v1104
        %v1169 = vsel %vm1041, %v854, %v1105
        %v1170 = vsel %vm1042, %v856, %v1106
        %v1171 = vsel %vm1043, %v967, %v1107
        %v1172 = vsel %vm1044, %v969, %v1108
        %v1173 = vsel %vm1045, %v858, %v1109
        %v1174 = vsel %vm1046, %v860, %v1110
        %v1175 = vsel %vm1047, %v971, %v1111
        %v1176 = vsel %vm1048, %v973, %v1112
        %v1177 = vsel %vm1049, %v864, %v1113
        %v1178 = vsel %vm1050, %v866, %v1114
        %v1179 = vsel %vm1051, %v977, %v1115
        %v1180 = vsel %vm1052, %v979, %v1116
        %v1181 = vsel %vm1053, %v868, %v1117
        %v1182 = vsel %vm1054, %v870, %v1118
        %v1183 = vsel %vm1055, %v981, %v1119
        %v1184 = vsel %vm1056, %v983, %v1120
        %v1185 = vsel %vm1057, %v874, %v1121
        %v1186 = vsel %vm1058, %v876, %v1122
        %v1187 = vsel %vm1059, %v987, %v1123
        %v1188 = vsel %vm1060, %v989, %v1124
        %v1189 = vsel %vm1061, %v878, %v1125
        %v1190 = vsel %vm1062, %v880, %v1126
        %v1191 = vsel %vm1063, %v991, %v1127
        %v1192 = vsel %vm1064, %v993, %v1128
        %v1193 = vsel %vm1065, %v884, %v1129
        %v1194 = vsel %vm1066, %v886, %v1130
        %v1195 = vsel %vm1067, %v997, %v1131
        %v1196 = vsel %vm1068, %v999, %v1132
        %v1197 = vsel %vm1069, %v888, %v1133
        %v1198 = vsel %vm1070, %v890, %v1134
        %v1199 = vsel %vm1071, %v1001, %v1135
        %v1200 = vsel %vm1072, %v1003, %v1136
        %v1201 = vsel %vm1073, %v894, %v1137
        %v1202 = vsel %vm1074, %v896, %v1138
        %v1203 = vsel %vm1075, %v1007, %v1139
        %v1204 = vsel %vm1076, %v1009, %v1140
        %v1205 = vsel %vm1077, %v898, %v1141
        %v1206 = vsel %vm1078, %v900, %v1142
        %v1207 = vsel %vm1079, %v1011, %v1143
        %v1208 = vsel %vm1080, %v1013, %v1144
        %v1209 = vsel %vm1081, %v904, %v1145
        %v1210 = vsel %vm1082, %v906, %v1146
        %v1211 = vsel %vm1083, %v1017, %v1147
        %v1212 = vsel %vm1084, %v1019, %v1148
        %v1213 = vsel %vm1085, %v908, %v1149
        %v1214 = vsel %vm1086, %v910, %v1150
        %v1215 = vsel %vm1087, %v1021, %v1151
        %v1216 = vsel %vm1088, %v1023, %v1152
        %v1217 = vpack.c.bf16 %v1157, %v1153
        %v1218 = vpack.c.bf16 %v1158, %v1154
        %v1219 = vpack.c.bf16 %v1159, %v1155
        %v1220 = vpack.c.bf16 %v1160, %v1156
        %v1221 = vpack.c.bf16 %v1165, %v1161
        %v1222 = vpack.c.bf16 %v1166, %v1162
        %v1223 = vpack.c.bf16 %v1167, %v1163
        %v1224 = vpack.c.bf16 %v1168, %v1164
        %v1225 = vpack.c.bf16 %v1173, %v1169
        %v1226 = vpack.c.bf16 %v1174, %v1170
        %v1227 = vpack.c.bf16 %v1175, %v1171
        %v1228 = vpack.c.bf16 %v1176, %v1172
        %v1229 = vpack.c.bf16 %v1181, %v1177
        %v1230 = vpack.c.bf16 %v1182, %v1178
        %v1231 = vpack.c.bf16 %v1183, %v1179
        %v1232 = vpack.c.bf16 %v1184, %v1180
        %v1233 = vpack.c.bf16 %v1189, %v1185
        %v1234 = vpack.c.bf16 %v1190, %v1186
        %v1235 = vpack.c.bf16 %v1191, %v1187
        %v1236 = vpack.c.bf16 %v1192, %v1188
        %v1237 = vpack.c.bf16 %v1197, %v1193
        %v1238 = vpack.c.bf16 %v1198, %v1194
        %v1239 = vpack.c.bf16 %v1199, %v1195
        %v1240 = vpack.c.bf16 %v1200, %v1196
        %v1241 = vpack.c.bf16 %v1205, %v1201
        %v1242 = vpack.c.bf16 %v1206, %v1202
        %v1243 = vpack.c.bf16 %v1207, %v1203
        %v1244 = vpack.c.bf16 %v1208, %v1204
        %v1245 = vpack.c.bf16 %v1213, %v1209
        %v1246 = vpack.c.bf16 %v1214, %v1210
        %v1247 = vpack.c.bf16 %v1215, %v1211
        %v1248 = vpack.c.bf16 %v1216, %v1212
        %v1249 = vld [vmem:[#allocation7] sm:$0xff]
        %v1250 = vld [vmem:[#allocation7 + $0x8] sm:$0xff]
        %v1251 = vld [vmem:[#allocation7 + $0x10] sm:$0xff]
        %v1252 = vld [vmem:[#allocation7 + $0x18] sm:$0xff]
        %v1253 = vld [vmem:[#allocation7 + $0x20] sm:$0xff]
        %v1254 = vld [vmem:[#allocation7 + $0x28] sm:$0xff]
        %v1255 = vld [vmem:[#allocation7 + $0x30] sm:$0xff]
        %v1256 = vld [vmem:[#allocation7 + $0x38] sm:$0xff]
        %v1257 = vld [vmem:[#allocation7 + $0x40] sm:$0xff]
        %v1258 = vld [vmem:[#allocation7 + $0x48] sm:$0xff]
        %v1259 = vld [vmem:[#allocation7 + $0x50] sm:$0xff]
        %v1260 = vld [vmem:[#allocation7 + $0x58] sm:$0xff]
        %v1261 = vld [vmem:[#allocation7 + $0x60] sm:$0xff]
        %v1262 = vld [vmem:[#allocation7 + $0x68] sm:$0xff]
        %v1263 = vld [vmem:[#allocation7 + $0x70] sm:$0xff]
        %v1264 = vld [vmem:[#allocation7 + $0x78] sm:$0xff]
        %v1265 = vld [vmem:[#allocation7 + $0x80] sm:$0xff]
        %v1266 = vld [vmem:[#allocation7 + $0x88] sm:$0xff]
        %v1267 = vld [vmem:[#allocation7 + $0x90] sm:$0xff]
        %v1268 = vld [vmem:[#allocation7 + $0x98] sm:$0xff]
        %v1269 = vld [vmem:[#allocation7 + $0xa0] sm:$0xff]
        %v1270 = vld [vmem:[#allocation7 + $0xa8] sm:$0xff]
        %v1271 = vld [vmem:[#allocation7 + $0xb0] sm:$0xff]
        %v1272 = vld [vmem:[#allocation7 + $0xb8] sm:$0xff]
        %v1273 = vld [vmem:[#allocation7 + $0xc0] sm:$0xff]
        %v1274 = vld [vmem:[#allocation7 + $0xc8] sm:$0xff]
        %v1275 = vld [vmem:[#allocation7 + $0xd0] sm:$0xff]
        %v1276 = vld [vmem:[#allocation7 + $0xd8] sm:$0xff]
        %v1277 = vld [vmem:[#allocation7 + $0xe0] sm:$0xff]
        %v1278 = vld [vmem:[#allocation7 + $0xe8] sm:$0xff]
        %v1279 = vld [vmem:[#allocation7 + $0xf0] sm:$0xff]
        %v1280 = vld [vmem:[#allocation7 + $0xf8] sm:$0xff]
        %v1281 = vld [vmem:[#allocation7 + $0x100] sm:$0xff]
        %v1282 = vld [vmem:[#allocation7 + $0x108] sm:$0xff]
        %v1283 = vld [vmem:[#allocation7 + $0x110] sm:$0xff]
        %v1284 = vld [vmem:[#allocation7 + $0x118] sm:$0xff]
        %v1285 = vld [vmem:[#allocation7 + $0x120] sm:$0xff]
        %v1286 = vld [vmem:[#allocation7 + $0x128] sm:$0xff]
        %v1287 = vld [vmem:[#allocation7 + $0x130] sm:$0xff]
        %v1288 = vld [vmem:[#allocation7 + $0x138] sm:$0xff]
        %v1289 = vld [vmem:[#allocation7 + $0x140] sm:$0xff]
        %v1290 = vld [vmem:[#allocation7 + $0x148] sm:$0xff]
        %v1291 = vld [vmem:[#allocation7 + $0x150] sm:$0xff]
        %v1292 = vld [vmem:[#allocation7 + $0x158] sm:$0xff]
        %v1293 = vld [vmem:[#allocation7 + $0x160] sm:$0xff]
        %v1294 = vld [vmem:[#allocation7 + $0x168] sm:$0xff]
        %v1295 = vld [vmem:[#allocation7 + $0x170] sm:$0xff]
        %v1296 = vld [vmem:[#allocation7 + $0x178] sm:$0xff]
        %v1297 = vld [vmem:[#allocation7 + $0x180] sm:$0xff]
        %v1298 = vld [vmem:[#allocation7 + $0x188] sm:$0xff]
        %v1299 = vld [vmem:[#allocation7 + $0x190] sm:$0xff]
        %v1300 = vld [vmem:[#allocation7 + $0x198] sm:$0xff]
        %v1301 = vld [vmem:[#allocation7 + $0x1a0] sm:$0xff]
        %v1302 = vld [vmem:[#allocation7 + $0x1a8] sm:$0xff]
        %v1303 = vld [vmem:[#allocation7 + $0x1b0] sm:$0xff]
        %v1304 = vld [vmem:[#allocation7 + $0x1b8] sm:$0xff]
        %v1305 = vld [vmem:[#allocation7 + $0x1c0] sm:$0xff]
        %v1306 = vld [vmem:[#allocation7 + $0x1c8] sm:$0xff]
        %v1307 = vld [vmem:[#allocation7 + $0x1d0] sm:$0xff]
        %v1308 = vld [vmem:[#allocation7 + $0x1d8] sm:$0xff]
        %v1309 = vld [vmem:[#allocation7 + $0x1e0] sm:$0xff]
        %v1310 = vld [vmem:[#allocation7 + $0x1e8] sm:$0xff]
        %v1311 = vld [vmem:[#allocation7 + $0x1f0] sm:$0xff]
        %v1312 = vld [vmem:[#allocation7 + $0x1f8] sm:$0xff]
        %v1313 = vld [vmem:[%s4] sm:$0x3]
        %v1315 = vlaneseq
        %v1316 = vshrl.u32 %v1315, 7
        %v1317 = vsub.s32 0, %v1316
        %v1318 = vrot.slane %v1313, %v1317
        %v1319 = vlaneseq
        %v1320 = vshrl.u32 %v1319, 7
        %v1321 = vsub.s32 1, %v1320
        %v1322 = vrot.slane %v1313, %v1321
        %v1389 = vunpack.c.l.b16 %v1249
        %v1390 = vunpack.c.h.b16 %v1249
        %v1391 = vunpack.c.l.b16 %v1250
        %v1392 = vunpack.c.h.b16 %v1250
        %v1393 = vunpack.c.l.b16 %v1251
        %v1394 = vunpack.c.h.b16 %v1251
        %v1395 = vunpack.c.l.b16 %v1252
        %v1396 = vunpack.c.h.b16 %v1252
        %v1397 = vunpack.c.l.b16 %v1253
        %v1398 = vunpack.c.h.b16 %v1253
        %v1399 = vunpack.c.l.b16 %v1254
        %v1400 = vunpack.c.h.b16 %v1254
        %v1401 = vunpack.c.l.b16 %v1255
        %v1402 = vunpack.c.h.b16 %v1255
        %v1403 = vunpack.c.l.b16 %v1256
        %v1404 = vunpack.c.h.b16 %v1256
        %v1405 = vunpack.c.l.b16 %v1257
        %v1406 = vunpack.c.h.b16 %v1257
        %v1407 = vunpack.c.l.b16 %v1258
        %v1408 = vunpack.c.h.b16 %v1258
        %v1409 = vunpack.c.l.b16 %v1259
        %v1410 = vunpack.c.h.b16 %v1259
        %v1411 = vunpack.c.l.b16 %v1260
        %v1412 = vunpack.c.h.b16 %v1260
        %v1413 = vunpack.c.l.b16 %v1261
        %v1414 = vunpack.c.h.b16 %v1261
        %v1415 = vunpack.c.l.b16 %v1262
        %v1416 = vunpack.c.h.b16 %v1262
        %v1417 = vunpack.c.l.b16 %v1263
        %v1418 = vunpack.c.h.b16 %v1263
        %v1419 = vunpack.c.l.b16 %v1264
        %v1420 = vunpack.c.h.b16 %v1264
        %v1421 = vunpack.c.l.b16 %v1265
        %v1422 = vunpack.c.h.b16 %v1265
        %v1423 = vunpack.c.l.b16 %v1266
        %v1424 = vunpack.c.h.b16 %v1266
        %v1425 = vunpack.c.l.b16 %v1267
        %v1426 = vunpack.c.h.b16 %v1267
        %v1427 = vunpack.c.l.b16 %v1268
        %v1428 = vunpack.c.h.b16 %v1268
        %v1429 = vunpack.c.l.b16 %v1269
        %v1430 = vunpack.c.h.b16 %v1269
        %v1431 = vunpack.c.l.b16 %v1270
        %v1432 = vunpack.c.h.b16 %v1270
        %v1433 = vunpack.c.l.b16 %v1271
        %v1434 = vunpack.c.h.b16 %v1271
        %v1435 = vunpack.c.l.b16 %v1272
        %v1436 = vunpack.c.h.b16 %v1272
        %v1437 = vunpack.c.l.b16 %v1273
        %v1438 = vunpack.c.h.b16 %v1273
        %v1439 = vunpack.c.l.b16 %v1274
        %v1440 = vunpack.c.h.b16 %v1274
        %v1441 = vunpack.c.l.b16 %v1275
        %v1442 = vunpack.c.h.b16 %v1275
        %v1443 = vunpack.c.l.b16 %v1276
        %v1444 = vunpack.c.h.b16 %v1276
        %v1445 = vunpack.c.l.b16 %v1277
        %v1446 = vunpack.c.h.b16 %v1277
        %v1447 = vunpack.c.l.b16 %v1278
        %v1448 = vunpack.c.h.b16 %v1278
        %v1449 = vunpack.c.l.b16 %v1279
        %v1450 = vunpack.c.h.b16 %v1279
        %v1451 = vunpack.c.l.b16 %v1280
        %v1452 = vunpack.c.h.b16 %v1280
        %v1453 = vunpack.c.l.b16 %v1281
        %v1454 = vunpack.c.h.b16 %v1281
        %v1455 = vunpack.c.l.b16 %v1282
        %v1456 = vunpack.c.h.b16 %v1282
        %v1457 = vunpack.c.l.b16 %v1283
        %v1458 = vunpack.c.h.b16 %v1283
        %v1459 = vunpack.c.l.b16 %v1284
        %v1460 = vunpack.c.h.b16 %v1284
        %v1461 = vunpack.c.l.b16 %v1285
        %v1462 = vunpack.c.h.b16 %v1285
        %v1463 = vunpack.c.l.b16 %v1286
        %v1464 = vunpack.c.h.b16 %v1286
        %v1465 = vunpack.c.l.b16 %v1287
        %v1466 = vunpack.c.h.b16 %v1287
        %v1467 = vunpack.c.l.b16 %v1288
        %v1468 = vunpack.c.h.b16 %v1288
        %v1469 = vunpack.c.l.b16 %v1289
        %v1470 = vunpack.c.h.b16 %v1289
        %v1471 = vunpack.c.l.b16 %v1290
        %v1472 = vunpack.c.h.b16 %v1290
        %v1473 = vunpack.c.l.b16 %v1291
        %v1474 = vunpack.c.h.b16 %v1291
        %v1475 = vunpack.c.l.b16 %v1292
        %v1476 = vunpack.c.h.b16 %v1292
        %v1477 = vunpack.c.l.b16 %v1293
        %v1478 = vunpack.c.h.b16 %v1293
        %v1479 = vunpack.c.l.b16 %v1294
        %v1480 = vunpack.c.h.b16 %v1294
        %v1481 = vunpack.c.l.b16 %v1295
        %v1482 = vunpack.c.h.b16 %v1295
        %v1483 = vunpack.c.l.b16 %v1296
        %v1484 = vunpack.c.h.b16 %v1296
        %v1485 = vunpack.c.l.b16 %v1297
        %v1486 = vunpack.c.h.b16 %v1297
        %v1487 = vunpack.c.l.b16 %v1298
        %v1488 = vunpack.c.h.b16 %v1298
        %v1489 = vunpack.c.l.b16 %v1299
        %v1490 = vunpack.c.h.b16 %v1299
        %v1491 = vunpack.c.l.b16 %v1300
        %v1492 = vunpack.c.h.b16 %v1300
        %v1493 = vunpack.c.l.b16 %v1301
        %v1494 = vunpack.c.h.b16 %v1301
        %v1495 = vunpack.c.l.b16 %v1302
        %v1496 = vunpack.c.h.b16 %v1302
        %v1497 = vunpack.c.l.b16 %v1303
        %v1498 = vunpack.c.h.b16 %v1303
        %v1499 = vunpack.c.l.b16 %v1304
        %v1500 = vunpack.c.h.b16 %v1304
        %v1501 = vunpack.c.l.b16 %v1305
        %v1502 = vunpack.c.h.b16 %v1305
        %v1503 = vunpack.c.l.b16 %v1306
        %v1504 = vunpack.c.h.b16 %v1306
        %v1505 = vunpack.c.l.b16 %v1307
        %v1506 = vunpack.c.h.b16 %v1307
        %v1507 = vunpack.c.l.b16 %v1308
        %v1508 = vunpack.c.h.b16 %v1308
        %v1509 = vunpack.c.l.b16 %v1309
        %v1510 = vunpack.c.h.b16 %v1309
        %v1511 = vunpack.c.l.b16 %v1310
        %v1512 = vunpack.c.h.b16 %v1310
        %v1513 = vunpack.c.l.b16 %v1311
        %v1514 = vunpack.c.h.b16 %v1311
        %v1515 = vunpack.c.l.b16 %v1312
        %v1516 = vunpack.c.h.b16 %v1312
        %v1517 = vpack.c.b16 %v1391, %v1389
        %v1518 = vpack.c.b16 %v1392, %v1390
        %v1519 = vpack.c.b16 %v1395, %v1393
        %v1520 = vpack.c.b16 %v1396, %v1394
        %v1521 = vpack.c.b16 %v1399, %v1397
        %v1522 = vpack.c.b16 %v1400, %v1398
        %v1523 = vpack.c.b16 %v1403, %v1401
        %v1524 = vpack.c.b16 %v1404, %v1402
        %v1525 = vpack.c.b16 %v1407, %v1405
        %v1526 = vpack.c.b16 %v1408, %v1406
        %v1527 = vpack.c.b16 %v1411, %v1409
        %v1528 = vpack.c.b16 %v1412, %v1410
        %v1529 = vpack.c.b16 %v1415, %v1413
        %v1530 = vpack.c.b16 %v1416, %v1414
        %v1531 = vpack.c.b16 %v1419, %v1417
        %v1532 = vpack.c.b16 %v1420, %v1418
        %v1533 = vpack.c.b16 %v1423, %v1421
        %v1534 = vpack.c.b16 %v1424, %v1422
        %v1535 = vpack.c.b16 %v1427, %v1425
        %v1536 = vpack.c.b16 %v1428, %v1426
        %v1537 = vpack.c.b16 %v1431, %v1429
        %v1538 = vpack.c.b16 %v1432, %v1430
        %v1539 = vpack.c.b16 %v1435, %v1433
        %v1540 = vpack.c.b16 %v1436, %v1434
        %v1541 = vpack.c.b16 %v1439, %v1437
        %v1542 = vpack.c.b16 %v1440, %v1438
        %v1543 = vpack.c.b16 %v1443, %v1441
        %v1544 = vpack.c.b16 %v1444, %v1442
        %v1545 = vpack.c.b16 %v1447, %v1445
        %v1546 = vpack.c.b16 %v1448, %v1446
        %v1547 = vpack.c.b16 %v1451, %v1449
        %v1548 = vpack.c.b16 %v1452, %v1450
        %v1549 = vpack.c.b16 %v1455, %v1453
        %v1550 = vpack.c.b16 %v1456, %v1454
        %v1551 = vpack.c.b16 %v1459, %v1457
        %v1552 = vpack.c.b16 %v1460, %v1458
        %v1553 = vpack.c.b16 %v1463, %v1461
        %v1554 = vpack.c.b16 %v1464, %v1462
        %v1555 = vpack.c.b16 %v1467, %v1465
        %v1556 = vpack.c.b16 %v1468, %v1466
        %v1557 = vpack.c.b16 %v1471, %v1469
        %v1558 = vpack.c.b16 %v1472, %v1470
        %v1559 = vpack.c.b16 %v1475, %v1473
        %v1560 = vpack.c.b16 %v1476, %v1474
        %v1561 = vpack.c.b16 %v1479, %v1477
        %v1562 = vpack.c.b16 %v1480, %v1478
        %v1563 = vpack.c.b16 %v1483, %v1481
        %v1564 = vpack.c.b16 %v1484, %v1482
        %v1565 = vpack.c.b16 %v1487, %v1485
        %v1566 = vpack.c.b16 %v1488, %v1486
        %v1567 = vpack.c.b16 %v1491, %v1489
        %v1568 = vpack.c.b16 %v1492, %v1490
        %v1569 = vpack.c.b16 %v1495, %v1493
        %v1570 = vpack.c.b16 %v1496, %v1494
        %v1571 = vpack.c.b16 %v1499, %v1497
        %v1572 = vpack.c.b16 %v1500, %v1498
        %v1573 = vpack.c.b16 %v1503, %v1501
        %v1574 = vpack.c.b16 %v1504, %v1502
        %v1575 = vpack.c.b16 %v1507, %v1505
        %v1576 = vpack.c.b16 %v1508, %v1506
        %v1577 = vpack.c.b16 %v1511, %v1509
        %v1578 = vpack.c.b16 %v1512, %v1510
        %v1579 = vpack.c.b16 %v1515, %v1513
        %v1580 = vpack.c.b16 %v1516, %v1514
        %1645 = vmatprep.subr.bf16.mxu0 %v1518
        %1646 = vmatpush1.bf16.msra.mxu0 %v1517
        %1647 = vmatprep.subr.bf16.mxu0 %v1520
        %1648 = vmatpush1.bf16.msra.mxu0 %v1519
        %1649 = vmatprep.subr.bf16.mxu0 %v1522
        %1650 = vmatpush1.bf16.msra.mxu0 %v1521
        %1651 = vmatprep.subr.bf16.mxu0 %v1524
        %1652 = vmatpush1.bf16.msra.mxu0 %v1523
        %1653 = vmatprep.subr.bf16.mxu0 %v1526
        %1654 = vmatpush1.bf16.msra.mxu0 %v1525
        %1655 = vmatprep.subr.bf16.mxu0 %v1528
        %1656 = vmatpush1.bf16.msra.mxu0 %v1527
        %1657 = vmatprep.subr.bf16.mxu0 %v1530
        %1658 = vmatpush1.bf16.msra.mxu0 %v1529
        %1659 = vmatprep.subr.bf16.mxu0 %v1532
        %1660 = vmatpush1.bf16.msra.mxu0 %v1531
        %1661 = vmatprep.subr.bf16.mxu0 %v1534
        %1662 = vmatpush1.bf16.msra.mxu0 %v1533
        %1663 = vmatprep.subr.bf16.mxu0 %v1536
        %1664 = vmatpush1.bf16.msra.mxu0 %v1535
        %1665 = vmatprep.subr.bf16.mxu0 %v1538
        %1666 = vmatpush1.bf16.msra.mxu0 %v1537
        %1667 = vmatprep.subr.bf16.mxu0 %v1540
        %1668 = vmatpush1.bf16.msra.mxu0 %v1539
        %1669 = vmatprep.subr.bf16.mxu0 %v1542
        %1670 = vmatpush1.bf16.msra.mxu0 %v1541
        %1671 = vmatprep.subr.bf16.mxu0 %v1544
        %1672 = vmatpush1.bf16.msra.mxu0 %v1543
        %1673 = vmatprep.subr.bf16.mxu0 %v1546
        %1674 = vmatpush1.bf16.msra.mxu0 %v1545
        %1675 = vmatprep.subr.bf16.mxu0 %v1548
        %1676 = vmatpush1.bf16.msra.mxu0 %v1547
        %1677 = vmatprep.mubr.bf16.mxu0 %v1218
        %1678 = vmatmul.mubr.bf16.gmra.mrb[0].mxu0 %v1217
        %v1679 = vpop.f32.mrb[0].mxu0
        %v1680 = vadd.f32 %v1318, %v1679
        %v1681 = vpop.f32.mrb[0].mxu0
        %v1682 = vadd.f32 %v1322, %v1681
        %v1683 = vpop.f32.mrb[0].mxu0
        %v1684 = vadd.f32 %v1318, %v1683
        %v1685 = vpop.f32.mrb[0].mxu0
        %v1686 = vadd.f32 %v1322, %v1685
        %1687 = vmatprep.mubr.bf16.mxu0 %v1222
        %1688 = vmatmul.mubr.bf16.gmra.mrb[0].mxu0 %v1221
        %v1689 = vpop.f32.mrb[0].mxu0
        %v1690 = vadd.f32 %v1318, %v1689
        %v1691 = vpop.f32.mrb[0].mxu0
        %v1692 = vadd.f32 %v1322, %v1691
        %v1693 = vpop.f32.mrb[0].mxu0
        %v1694 = vadd.f32 %v1318, %v1693
        %v1695 = vpop.f32.mrb[0].mxu0
        %v1696 = vadd.f32 %v1322, %v1695
        %1697 = vmatprep.mubr.bf16.mxu0 %v1226
        %1698 = vmatmul.mubr.bf16.gmra.mrb[0].mxu0 %v1225
        %v1699 = vpop.f32.mrb[0].mxu0
        %v1700 = vadd.f32 %v1318, %v1699
        %v1701 = vpop.f32.mrb[0].mxu0
        %v1702 = vadd.f32 %v1322, %v1701
        %v1703 = vpop.f32.mrb[0].mxu0
        %v1704 = vadd.f32 %v1318, %v1703
        %v1705 = vpop.f32.mrb[0].mxu0
        %v1706 = vadd.f32 %v1322, %v1705
        %1707 = vmatprep.mubr.bf16.mxu0 %v1230
        %1708 = vmatmul.mubr.bf16.gmra.mrb[0].mxu0 %v1229
        %v1709 = vpop.f32.mrb[0].mxu0
        %v1710 = vadd.f32 %v1318, %v1709
        %v1711 = vpop.f32.mrb[0].mxu0
        %v1712 = vadd.f32 %v1322, %v1711
        %v1713 = vpop.f32.mrb[0].mxu0
        %v1714 = vadd.f32 %v1318, %v1713
        %v1715 = vpop.f32.mrb[0].mxu0
        %v1716 = vadd.f32 %v1322, %v1715
        %1717 = vmatprep.mubr.bf16.mxu0 %v1234
        %1718 = vmatmul.mubr.bf16.gmra.mrb[0].mxu0 %v1233
        %v1719 = vpop.f32.mrb[0].mxu0
        %v1720 = vadd.f32 %v1318, %v1719
        %v1721 = vpop.f32.mrb[0].mxu0
        %v1722 = vadd.f32 %v1322, %v1721
        %v1723 = vpop.f32.mrb[0].mxu0
        %v1724 = vadd.f32 %v1318, %v1723
        %v1725 = vpop.f32.mrb[0].mxu0
        %v1726 = vadd.f32 %v1322, %v1725
        %1727 = vmatprep.mubr.bf16.mxu0 %v1238
        %1728 = vmatmul.mubr.bf16.gmra.mrb[0].mxu0 %v1237
        %v1729 = vpop.f32.mrb[0].mxu0
        %v1730 = vadd.f32 %v1318, %v1729
        %v1731 = vpop.f32.mrb[0].mxu0
        %v1732 = vadd.f32 %v1322, %v1731
        %v1733 = vpop.f32.mrb[0].mxu0
        %v1734 = vadd.f32 %v1318, %v1733
        %v1735 = vpop.f32.mrb[0].mxu0
        %v1736 = vadd.f32 %v1322, %v1735
        %1737 = vmatprep.mubr.bf16.mxu0 %v1242
        %1738 = vmatmul.mubr.bf16.gmra.mrb[0].mxu0 %v1241
        %v1739 = vpop.f32.mrb[0].mxu0
        %v1740 = vadd.f32 %v1318, %v1739
        %v1741 = vpop.f32.mrb[0].mxu0
        %v1742 = vadd.f32 %v1322, %v1741
        %v1743 = vpop.f32.mrb[0].mxu0
        %v1744 = vadd.f32 %v1318, %v1743
        %v1745 = vpop.f32.mrb[0].mxu0
        %v1746 = vadd.f32 %v1322, %v1745
        %1747 = vmatprep.mubr.bf16.mxu0 %v1246
        %1748 = vmatmul.mubr.bf16.gmra.mrb[0].mxu0 %v1245
        %v1749 = vpop.f32.mrb[0].mxu0
        %v1750 = vadd.f32 %v1318, %v1749
        %v1751 = vpop.f32.mrb[0].mxu0
        %v1752 = vadd.f32 %v1322, %v1751
        %v1753 = vpop.f32.mrb[0].mxu0
        %v1754 = vadd.f32 %v1318, %v1753
        %v1755 = vpop.f32.mrb[0].mxu0
        %v1756 = vadd.f32 %v1322, %v1755
        %1757 = vdwg.mxu0
        %1758 = vmatprep.subr.bf16.mxu0 %v1550
        %1759 = vmatpush1.bf16.msra.mxu0 %v1549
        %1760 = vmatprep.subr.bf16.mxu0 %v1552
        %1761 = vmatpush1.bf16.msra.mxu0 %v1551
        %1762 = vmatprep.subr.bf16.mxu0 %v1554
        %1763 = vmatpush1.bf16.msra.mxu0 %v1553
        %1764 = vmatprep.subr.bf16.mxu0 %v1556
        %1765 = vmatpush1.bf16.msra.mxu0 %v1555
        %1766 = vmatprep.subr.bf16.mxu0 %v1558
        %1767 = vmatpush1.bf16.msra.mxu0 %v1557
        %1768 = vmatprep.subr.bf16.mxu0 %v1560
        %1769 = vmatpush1.bf16.msra.mxu0 %v1559
        %1770 = vmatprep.subr.bf16.mxu0 %v1562
        %1771 = vmatpush1.bf16.msra.mxu0 %v1561
        %1772 = vmatprep.subr.bf16.mxu0 %v1564
        %1773 = vmatpush1.bf16.msra.mxu0 %v1563
        %1774 = vmatprep.subr.bf16.mxu0 %v1566
        %1775 = vmatpush1.bf16.msra.mxu0 %v1565
        %1776 = vmatprep.subr.bf16.mxu0 %v1568
        %1777 = vmatpush1.bf16.msra.mxu0 %v1567
        %1778 = vmatprep.subr.bf16.mxu0 %v1570
        %1779 = vmatpush1.bf16.msra.mxu0 %v1569
        %1780 = vmatprep.subr.bf16.mxu0 %v1572
        %1781 = vmatpush1.bf16.msra.mxu0 %v1571
        %1782 = vmatprep.subr.bf16.mxu0 %v1574
        %1783 = vmatpush1.bf16.msra.mxu0 %v1573
        %1784 = vmatprep.subr.bf16.mxu0 %v1576
        %1785 = vmatpush1.bf16.msra.mxu0 %v1575
        %1786 = vmatprep.subr.bf16.mxu0 %v1578
        %1787 = vmatpush1.bf16.msra.mxu0 %v1577
        %1788 = vmatprep.subr.bf16.mxu0 %v1580
        %1789 = vmatpush1.bf16.msra.mxu0 %v1579
        %1790 = vmatprep.mubr.bf16.mxu0 %v1220
        %1791 = vmatmul.mubr.bf16.gmra.mrb[0].mxu0 %v1219
        %v1792 = vpop.f32.mrb[0].mxu0
        %v1793 = vadd.f32 %v1680, %v1792
        %v1794 = vpop.f32.mrb[0].mxu0
        %v1795 = vadd.f32 %v1682, %v1794
        %v1796 = vpop.f32.mrb[0].mxu0
        %v1797 = vadd.f32 %v1684, %v1796
        %v1798 = vpop.f32.mrb[0].mxu0
        %v1799 = vadd.f32 %v1686, %v1798
        %1800 = vmatprep.mubr.bf16.mxu0 %v1224
        %1801 = vmatmul.mubr.bf16.gmra.mrb[0].mxu0 %v1223
        %v1802 = vpop.f32.mrb[0].mxu0
        %v1803 = vadd.f32 %v1690, %v1802
        %v1804 = vpop.f32.mrb[0].mxu0
        %v1805 = vadd.f32 %v1692, %v1804
        %v1806 = vpop.f32.mrb[0].mxu0
        %v1807 = vadd.f32 %v1694, %v1806
        %v1808 = vpop.f32.mrb[0].mxu0
        %v1809 = vadd.f32 %v1696, %v1808
        %1810 = vmatprep.mubr.bf16.mxu0 %v1228
        %1811 = vmatmul.mubr.bf16.gmra.mrb[0].mxu0 %v1227
        %v1812 = vpop.f32.mrb[0].mxu0
        %v1813 = vadd.f32 %v1700, %v1812
        %v1814 = vpop.f32.mrb[0].mxu0
        %v1815 = vadd.f32 %v1702, %v1814
        %v1816 = vpop.f32.mrb[0].mxu0
        %v1817 = vadd.f32 %v1704, %v1816
        %v1818 = vpop.f32.mrb[0].mxu0
        %v1819 = vadd.f32 %v1706, %v1818
        %1820 = vmatprep.mubr.bf16.mxu0 %v1232
        %1821 = vmatmul.mubr.bf16.gmra.mrb[0].mxu0 %v1231
        %v1822 = vpop.f32.mrb[0].mxu0
        %v1823 = vadd.f32 %v1710, %v1822
        %v1824 = vpop.f32.mrb[0].mxu0
        %v1825 = vadd.f32 %v1712, %v1824
        %v1826 = vpop.f32.mrb[0].mxu0
        %v1827 = vadd.f32 %v1714, %v1826
        %v1828 = vpop.f32.mrb[0].mxu0
        %v1829 = vadd.f32 %v1716, %v1828
        %1830 = vmatprep.mubr.bf16.mxu0 %v1236
        %1831 = vmatmul.mubr.bf16.gmra.mrb[0].mxu0 %v1235
        %v1832 = vpop.f32.mrb[0].mxu0
        %v1833 = vadd.f32 %v1720, %v1832
        %v1834 = vpop.f32.mrb[0].mxu0
        %v1835 = vadd.f32 %v1722, %v1834
        %v1836 = vpop.f32.mrb[0].mxu0
        %v1837 = vadd.f32 %v1724, %v1836
        %v1838 = vpop.f32.mrb[0].mxu0
        %v1839 = vadd.f32 %v1726, %v1838
        %1840 = vmatprep.mubr.bf16.mxu0 %v1240
        %1841 = vmatmul.mubr.bf16.gmra.mrb[0].mxu0 %v1239
        %v1842 = vpop.f32.mrb[0].mxu0
        %v1843 = vadd.f32 %v1730, %v1842
        %v1844 = vpop.f32.mrb[0].mxu0
        %v1845 = vadd.f32 %v1732, %v1844
        %v1846 = vpop.f32.mrb[0].mxu0
        %v1847 = vadd.f32 %v1734, %v1846
        %v1848 = vpop.f32.mrb[0].mxu0
        %v1849 = vadd.f32 %v1736, %v1848
        %1850 = vmatprep.mubr.bf16.mxu0 %v1244
        %1851 = vmatmul.mubr.bf16.gmra.mrb[0].mxu0 %v1243
        %v1852 = vpop.f32.mrb[0].mxu0
        %v1853 = vadd.f32 %v1740, %v1852
        %v1854 = vpop.f32.mrb[0].mxu0
        %v1855 = vadd.f32 %v1742, %v1854
        %v1856 = vpop.f32.mrb[0].mxu0
        %v1857 = vadd.f32 %v1744, %v1856
        %v1858 = vpop.f32.mrb[0].mxu0
        %v1859 = vadd.f32 %v1746, %v1858
        %1860 = vmatprep.mubr.bf16.mxu0 %v1248
        %1861 = vmatmul.mubr.bf16.gmra.mrb[0].mxu0 %v1247
        %v1862 = vpop.f32.mrb[0].mxu0
        %v1863 = vadd.f32 %v1750, %v1862
        %v1864 = vpop.f32.mrb[0].mxu0
        %v1865 = vadd.f32 %v1752, %v1864
        %v1866 = vpop.f32.mrb[0].mxu0
        %v1867 = vadd.f32 %v1754, %v1866
        %v1868 = vpop.f32.mrb[0].mxu0
        %v1869 = vadd.f32 %v1756, %v1868
        %1870 = vdwg.mxu0
        %vm1871 = vcmp.gt.f32.partialorder %v1793, 0.0
        %vm1872 = vcmp.gt.f32.partialorder %v1795, 0.0
        %vm1873 = vcmp.gt.f32.partialorder %v1797, 0.0
        %vm1874 = vcmp.gt.f32.partialorder %v1799, 0.0
        %vm1875 = vcmp.gt.f32.partialorder %v1803, 0.0
        %vm1876 = vcmp.gt.f32.partialorder %v1805, 0.0
        %vm1877 = vcmp.gt.f32.partialorder %v1807, 0.0
        %vm1878 = vcmp.gt.f32.partialorder %v1809, 0.0
        %vm1879 = vcmp.gt.f32.partialorder %v1813, 0.0
        %vm1880 = vcmp.gt.f32.partialorder %v1815, 0.0
        %vm1881 = vcmp.gt.f32.partialorder %v1817, 0.0
        %vm1882 = vcmp.gt.f32.partialorder %v1819, 0.0
        %vm1883 = vcmp.gt.f32.partialorder %v1823, 0.0
        %vm1884 = vcmp.gt.f32.partialorder %v1825, 0.0
        %vm1885 = vcmp.gt.f32.partialorder %v1827, 0.0
        %vm1886 = vcmp.gt.f32.partialorder %v1829, 0.0
        %vm1887 = vcmp.gt.f32.partialorder %v1833, 0.0
        %vm1888 = vcmp.gt.f32.partialorder %v1835, 0.0
        %vm1889 = vcmp.gt.f32.partialorder %v1837, 0.0
        %vm1890 = vcmp.gt.f32.partialorder %v1839, 0.0
        %vm1891 = vcmp.gt.f32.partialorder %v1843, 0.0
        %vm1892 = vcmp.gt.f32.partialorder %v1845, 0.0
        %vm1893 = vcmp.gt.f32.partialorder %v1847, 0.0
        %vm1894 = vcmp.gt.f32.partialorder %v1849, 0.0
        %vm1895 = vcmp.gt.f32.partialorder %v1853, 0.0
        %vm1896 = vcmp.gt.f32.partialorder %v1855, 0.0
        %vm1897 = vcmp.gt.f32.partialorder %v1857, 0.0
        %vm1898 = vcmp.gt.f32.partialorder %v1859, 0.0
        %vm1899 = vcmp.gt.f32.partialorder %v1863, 0.0
        %vm1900 = vcmp.gt.f32.partialorder %v1865, 0.0
        %vm1901 = vcmp.gt.f32.partialorder %v1867, 0.0
        %vm1902 = vcmp.gt.f32.partialorder %v1869, 0.0
        %v1903 = vmul.f32 %v1793, 0.2
        %v1904 = vmul.f32 %v1795, 0.2
        %v1905 = vmul.f32 %v1797, 0.2
        %v1906 = vmul.f32 %v1799, 0.2
        %v1907 = vmul.f32 %v1803, 0.2
        %v1908 = vmul.f32 %v1805, 0.2
        %v1909 = vmul.f32 %v1807, 0.2
        %v1910 = vmul.f32 %v1809, 0.2
        %v1911 = vmul.f32 %v1813, 0.2
        %v1912 = vmul.f32 %v1815, 0.2
        %v1913 = vmul.f32 %v1817, 0.2
        %v1914 = vmul.f32 %v1819, 0.2
        %v1915 = vmul.f32 %v1823, 0.2
        %v1916 = vmul.f32 %v1825, 0.2
        %v1917 = vmul.f32 %v1827, 0.2
        %v1918 = vmul.f32 %v1829, 0.2
        %v1919 = vmul.f32 %v1833, 0.2
        %v1920 = vmul.f32 %v1835, 0.2
        %v1921 = vmul.f32 %v1837, 0.2
        %v1922 = vmul.f32 %v1839, 0.2
        %v1923 = vmul.f32 %v1843, 0.2
        %v1924 = vmul.f32 %v1845, 0.2
        %v1925 = vmul.f32 %v1847, 0.2
        %v1926 = vmul.f32 %v1849, 0.2
        %v1927 = vmul.f32 %v1853, 0.2
        %v1928 = vmul.f32 %v1855, 0.2
        %v1929 = vmul.f32 %v1857, 0.2
        %v1930 = vmul.f32 %v1859, 0.2
        %v1931 = vmul.f32 %v1863, 0.2
        %v1932 = vmul.f32 %v1865, 0.2
        %v1933 = vmul.f32 %v1867, 0.2
        %v1934 = vmul.f32 %v1869, 0.2
        %v1935 = vsel %vm1871, %v1793, %v1903
        %v1936 = vsel %vm1872, %v1795, %v1904
        %v1937 = vsel %vm1873, %v1797, %v1905
        %v1938 = vsel %vm1874, %v1799, %v1906
        %v1939 = vsel %vm1875, %v1803, %v1907
        %v1940 = vsel %vm1876, %v1805, %v1908
        %v1941 = vsel %vm1877, %v1807, %v1909
        %v1942 = vsel %vm1878, %v1809, %v1910
        %v1943 = vsel %vm1879, %v1813, %v1911
        %v1944 = vsel %vm1880, %v1815, %v1912
        %v1945 = vsel %vm1881, %v1817, %v1913
        %v1946 = vsel %vm1882, %v1819, %v1914
        %v1947 = vsel %vm1883, %v1823, %v1915
        %v1948 = vsel %vm1884, %v1825, %v1916
        %v1949 = vsel %vm1885, %v1827, %v1917
        %v1950 = vsel %vm1886, %v1829, %v1918
        %v1951 = vsel %vm1887, %v1833, %v1919
        %v1952 = vsel %vm1888, %v1835, %v1920
        %v1953 = vsel %vm1889, %v1837, %v1921
        %v1954 = vsel %vm1890, %v1839, %v1922
        %v1955 = vsel %vm1891, %v1843, %v1923
        %v1956 = vsel %vm1892, %v1845, %v1924
        %v1957 = vsel %vm1893, %v1847, %v1925
        %v1958 = vsel %vm1894, %v1849, %v1926
        %v1959 = vsel %vm1895, %v1853, %v1927
        %v1960 = vsel %vm1896, %v1855, %v1928
        %v1961 = vsel %vm1897, %v1857, %v1929
        %v1962 = vsel %vm1898, %v1859, %v1930
        %v1963 = vsel %vm1899, %v1863, %v1931
        %v1964 = vsel %vm1900, %v1865, %v1932
        %v1965 = vsel %vm1901, %v1867, %v1933
        %v1966 = vsel %vm1902, %v1869, %v1934
        %v1967 = vpack.c.bf16 %v1937, %v1935
        %v1968 = vpack.c.bf16 %v1938, %v1936
        %v1969 = vpack.c.bf16 %v1941, %v1939
        %v1970 = vpack.c.bf16 %v1942, %v1940
        %v1971 = vpack.c.bf16 %v1945, %v1943
        %v1972 = vpack.c.bf16 %v1946, %v1944
        %v1973 = vpack.c.bf16 %v1949, %v1947
        %v1974 = vpack.c.bf16 %v1950, %v1948
        %v1975 = vpack.c.bf16 %v1953, %v1951
        %v1976 = vpack.c.bf16 %v1954, %v1952
        %v1977 = vpack.c.bf16 %v1957, %v1955
        %v1978 = vpack.c.bf16 %v1958, %v1956
        %v1979 = vpack.c.bf16 %v1961, %v1959
        %v1980 = vpack.c.bf16 %v1962, %v1960
        %v1981 = vpack.c.bf16 %v1965, %v1963
        %v1982 = vpack.c.bf16 %v1966, %v1964
        %v1983 = vld [vmem:[#allocation8] sm:$0xf]
        %v1984 = vld [vmem:[#allocation8 + $0x4] sm:$0xf]
        %v1985 = vld [vmem:[#allocation8 + $0x8] sm:$0xf]
        %v1986 = vld [vmem:[#allocation8 + $0xc] sm:$0xf]
        %v1987 = vld [vmem:[#allocation8 + $0x10] sm:$0xf]
        %v1988 = vld [vmem:[#allocation8 + $0x14] sm:$0xf]
        %v1989 = vld [vmem:[#allocation8 + $0x18] sm:$0xf]
        %v1990 = vld [vmem:[#allocation8 + $0x1c] sm:$0xf]
        %v1991 = vld [vmem:[#allocation8 + $0x20] sm:$0xf]
        %v1992 = vld [vmem:[#allocation8 + $0x24] sm:$0xf]
        %v1993 = vld [vmem:[#allocation8 + $0x28] sm:$0xf]
        %v1994 = vld [vmem:[#allocation8 + $0x2c] sm:$0xf]
        %v1995 = vld [vmem:[#allocation8 + $0x30] sm:$0xf]
        %v1996 = vld [vmem:[#allocation8 + $0x34] sm:$0xf]
        %v1997 = vld [vmem:[#allocation8 + $0x38] sm:$0xf]
        %v1998 = vld [vmem:[#allocation8 + $0x3c] sm:$0xf]
        %v1999 = vld [vmem:[#allocation8 + $0x40] sm:$0xf]
        %v2000 = vld [vmem:[#allocation8 + $0x44] sm:$0xf]
        %v2001 = vld [vmem:[#allocation8 + $0x48] sm:$0xf]
        %v2002 = vld [vmem:[#allocation8 + $0x4c] sm:$0xf]
        %v2003 = vld [vmem:[#allocation8 + $0x50] sm:$0xf]
        %v2004 = vld [vmem:[#allocation8 + $0x54] sm:$0xf]
        %v2005 = vld [vmem:[#allocation8 + $0x58] sm:$0xf]
        %v2006 = vld [vmem:[#allocation8 + $0x5c] sm:$0xf]
        %v2007 = vld [vmem:[#allocation8 + $0x60] sm:$0xf]
        %v2008 = vld [vmem:[#allocation8 + $0x64] sm:$0xf]
        %v2009 = vld [vmem:[#allocation8 + $0x68] sm:$0xf]
        %v2010 = vld [vmem:[#allocation8 + $0x6c] sm:$0xf]
        %v2011 = vld [vmem:[#allocation8 + $0x70] sm:$0xf]
        %v2012 = vld [vmem:[#allocation8 + $0x74] sm:$0xf]
        %v2013 = vld [vmem:[#allocation8 + $0x78] sm:$0xf]
        %v2014 = vld [vmem:[#allocation8 + $0x7c] sm:$0xf]
        %v2015 = vld [vmem:[%s6] sm:$0x1]
        %v2017 = vlaneseq
        %v2018 = vshrl.u32 %v2017, 7
        %v2019 = vsub.s32 0, %v2018
        %v2020 = vrot.slane %v2015, %v2019
        %v2054 = vunpack.c.l.b16 %v1983
        %v2055 = vunpack.c.l.b16 %v1984
        %v2056 = vunpack.c.l.b16 %v1985
        %v2057 = vunpack.c.l.b16 %v1986
        %v2058 = vunpack.c.l.b16 %v1987
        %v2059 = vunpack.c.l.b16 %v1988
        %v2060 = vunpack.c.l.b16 %v1989
        %v2061 = vunpack.c.l.b16 %v1990
        %v2062 = vunpack.c.l.b16 %v1991
        %v2063 = vunpack.c.l.b16 %v1992
        %v2064 = vunpack.c.l.b16 %v1993
        %v2065 = vunpack.c.l.b16 %v1994
        %v2066 = vunpack.c.l.b16 %v1995
        %v2067 = vunpack.c.l.b16 %v1996
        %v2068 = vunpack.c.l.b16 %v1997
        %v2069 = vunpack.c.l.b16 %v1998
        %v2070 = vunpack.c.l.b16 %v1999
        %v2071 = vunpack.c.l.b16 %v2000
        %v2072 = vunpack.c.l.b16 %v2001
        %v2073 = vunpack.c.l.b16 %v2002
        %v2074 = vunpack.c.l.b16 %v2003
        %v2075 = vunpack.c.l.b16 %v2004
        %v2076 = vunpack.c.l.b16 %v2005
        %v2077 = vunpack.c.l.b16 %v2006
        %v2078 = vunpack.c.l.b16 %v2007
        %v2079 = vunpack.c.l.b16 %v2008
        %v2080 = vunpack.c.l.b16 %v2009
        %v2081 = vunpack.c.l.b16 %v2010
        %v2082 = vunpack.c.l.b16 %v2011
        %v2083 = vunpack.c.l.b16 %v2012
        %v2084 = vunpack.c.l.b16 %v2013
        %v2085 = vunpack.c.l.b16 %v2014
        %v2086 = vpack.c.b16 %v2055, %v2054
        %v2087 = vpack.c.b16 %v2057, %v2056
        %v2088 = vpack.c.b16 %v2059, %v2058
        %v2089 = vpack.c.b16 %v2061, %v2060
        %v2090 = vpack.c.b16 %v2063, %v2062
        %v2091 = vpack.c.b16 %v2065, %v2064
        %v2092 = vpack.c.b16 %v2067, %v2066
        %v2093 = vpack.c.b16 %v2069, %v2068
        %v2094 = vpack.c.b16 %v2071, %v2070
        %v2095 = vpack.c.b16 %v2073, %v2072
        %v2096 = vpack.c.b16 %v2075, %v2074
        %v2097 = vpack.c.b16 %v2077, %v2076
        %v2098 = vpack.c.b16 %v2079, %v2078
        %v2099 = vpack.c.b16 %v2081, %v2080
        %v2100 = vpack.c.b16 %v2083, %v2082
        %v2101 = vpack.c.b16 %v2085, %v2084
        %2118 = vmatprep.subr.bf16.mxu0 0
        %2119 = vmatpush1.bf16.msra.mxu0 %v2086
        %2120 = vmatprep.subr.bf16.mxu0 0
        %2121 = vmatpush1.bf16.msra.mxu0 %v2087
        %2122 = vmatprep.subr.bf16.mxu0 0
        %2123 = vmatpush1.bf16.msra.mxu0 %v2088
        %2124 = vmatprep.subr.bf16.mxu0 0
        %2125 = vmatpush1.bf16.msra.mxu0 %v2089
        %2126 = vmatprep.subr.bf16.mxu0 0
        %2127 = vmatpush1.bf16.msra.mxu0 %v2090
        %2128 = vmatprep.subr.bf16.mxu0 0
        %2129 = vmatpush1.bf16.msra.mxu0 %v2091
        %2130 = vmatprep.subr.bf16.mxu0 0
        %2131 = vmatpush1.bf16.msra.mxu0 %v2092
        %2132 = vmatprep.subr.bf16.mxu0 0
        %2133 = vmatpush1.bf16.msra.mxu0 %v2093
        %2134 = vmatprep.subr.bf16.mxu0 0
        %2135 = vmatpush1.bf16.msra.mxu0 %v2094
        %2136 = vmatprep.subr.bf16.mxu0 0
        %2137 = vmatpush1.bf16.msra.mxu0 %v2095
        %2138 = vmatprep.subr.bf16.mxu0 0
        %2139 = vmatpush1.bf16.msra.mxu0 %v2096
        %2140 = vmatprep.subr.bf16.mxu0 0
        %2141 = vmatpush1.bf16.msra.mxu0 %v2097
        %2142 = vmatprep.subr.bf16.mxu0 0
        %2143 = vmatpush1.bf16.msra.mxu0 %v2098
        %2144 = vmatprep.subr.bf16.mxu0 0
        %2145 = vmatpush1.bf16.msra.mxu0 %v2099
        %2146 = vmatprep.subr.bf16.mxu0 0
        %2147 = vmatpush1.bf16.msra.mxu0 %v2100
        %2148 = vmatprep.subr.bf16.mxu0 0
        %2149 = vmatpush1.bf16.msra.mxu0 %v2101
        %2150 = vmatprep.mubr.bf16.mxu0 %v1968
        %2151 = vmatmul.mubr.bf16.gmra.mrb[0].mxu0 %v1967
        %v2152 = vpop.f32.mrb[0].mxu0
        %v2153 = vadd.f32 %v2020, %v2152
        %v2154 = vpop.f32.mrb[0].mxu0
        %v2155 = vpop.f32.mrb[0].mxu0
        %v2156 = vadd.f32 %v2020, %v2155
        %v2157 = vpop.f32.mrb[0].mxu0
        %2158 = vmatprep.mubr.bf16.mxu0 %v1970
        %2159 = vmatmul.mubr.bf16.gmra.mrb[0].mxu0 %v1969
        %v2160 = vpop.f32.mrb[0].mxu0
        %v2161 = vadd.f32 %v2020, %v2160
        %v2162 = vpop.f32.mrb[0].mxu0
        %v2163 = vpop.f32.mrb[0].mxu0
        %v2164 = vadd.f32 %v2020, %v2163
        %v2165 = vpop.f32.mrb[0].mxu0
        %2166 = vmatprep.mubr.bf16.mxu0 %v1972
        %2167 = vmatmul.mubr.bf16.gmra.mrb[0].mxu0 %v1971
        %v2168 = vpop.f32.mrb[0].mxu0
        %v2169 = vadd.f32 %v2020, %v2168
        %v2170 = vpop.f32.mrb[0].mxu0
        %v2171 = vpop.f32.mrb[0].mxu0
        %v2172 = vadd.f32 %v2020, %v2171
        %v2173 = vpop.f32.mrb[0].mxu0
        %2174 = vmatprep.mubr.bf16.mxu0 %v1974
        %2175 = vmatmul.mubr.bf16.gmra.mrb[0].mxu0 %v1973
        %v2176 = vpop.f32.mrb[0].mxu0
        %v2177 = vadd.f32 %v2020, %v2176
        %v2178 = vpop.f32.mrb[0].mxu0
        %v2179 = vpop.f32.mrb[0].mxu0
        %v2180 = vadd.f32 %v2020, %v2179
        %v2181 = vpop.f32.mrb[0].mxu0
        %2182 = vmatprep.mubr.bf16.mxu0 %v1976
        %2183 = vmatmul.mubr.bf16.gmra.mrb[0].mxu0 %v1975
        %v2184 = vpop.f32.mrb[0].mxu0
        %v2185 = vadd.f32 %v2020, %v2184
        %v2186 = vpop.f32.mrb[0].mxu0
        %v2187 = vpop.f32.mrb[0].mxu0
        %v2188 = vadd.f32 %v2020, %v2187
        %v2189 = vpop.f32.mrb[0].mxu0
        %2190 = vmatprep.mubr.bf16.mxu0 %v1978
        %2191 = vmatmul.mubr.bf16.gmra.mrb[0].mxu0 %v1977
        %v2192 = vpop.f32.mrb[0].mxu0
        %v2193 = vadd.f32 %v2020, %v2192
        %v2194 = vpop.f32.mrb[0].mxu0
        %v2195 = vpop.f32.mrb[0].mxu0
        %v2196 = vadd.f32 %v2020, %v2195
        %v2197 = vpop.f32.mrb[0].mxu0
        %2198 = vmatprep.mubr.bf16.mxu0 %v1980
        %2199 = vmatmul.mubr.bf16.gmra.mrb[0].mxu0 %v1979
        %v2200 = vpop.f32.mrb[0].mxu0
        %v2201 = vadd.f32 %v2020, %v2200
        %v2202 = vpop.f32.mrb[0].mxu0
        %v2203 = vpop.f32.mrb[0].mxu0
        %v2204 = vadd.f32 %v2020, %v2203
        %v2205 = vpop.f32.mrb[0].mxu0
        %2206 = vmatprep.mubr.bf16.mxu0 %v1982
        %2207 = vmatmul.mubr.bf16.gmra.mrb[0].mxu0 %v1981
        %v2208 = vpop.f32.mrb[0].mxu0
        %v2209 = vadd.f32 %v2020, %v2208
        %v2210 = vpop.f32.mrb[0].mxu0
        %v2211 = vpop.f32.mrb[0].mxu0
        %v2212 = vadd.f32 %v2020, %v2211
        %v2213 = vpop.f32.mrb[0].mxu0
        %2214 = vdwg.mxu0
        %v2215 = vxor.u32 %v2153, 2147483648
        %v2216 = vxor.u32 %v2156, 2147483648
        %v2217 = vxor.u32 %v2161, 2147483648
        %v2218 = vxor.u32 %v2164, 2147483648
        %v2219 = vxor.u32 %v2169, 2147483648
        %v2220 = vxor.u32 %v2172, 2147483648
        %v2221 = vxor.u32 %v2177, 2147483648
        %v2222 = vxor.u32 %v2180, 2147483648
        %v2223 = vxor.u32 %v2185, 2147483648
        %v2224 = vxor.u32 %v2188, 2147483648
        %v2225 = vxor.u32 %v2193, 2147483648
        %v2226 = vxor.u32 %v2196, 2147483648
        %v2227 = vxor.u32 %v2201, 2147483648
        %v2228 = vxor.u32 %v2204, 2147483648
        %v2229 = vxor.u32 %v2209, 2147483648
        %v2230 = vxor.u32 %v2212, 2147483648
        %v2231 = vmul.f32 %v2215, 1.442695
        %v2232 = vpow.pop %v2231
        %v2233 = vmul.f32 %v2216, 1.442695
        %v2234 = vpow.pop %v2233
        %v2235 = vmul.f32 %v2217, 1.442695
        %v2236 = vpow.pop %v2235
        %v2237 = vmul.f32 %v2218, 1.442695
        %v2238 = vpow.pop %v2237
        %v2239 = vmul.f32 %v2219, 1.442695
        %v2240 = vpow.pop %v2239
        %v2241 = vmul.f32 %v2220, 1.442695
        %v2242 = vpow.pop %v2241
        %v2243 = vmul.f32 %v2221, 1.442695
        %v2244 = vpow.pop %v2243
        %v2245 = vmul.f32 %v2222, 1.442695
        %v2246 = vpow.pop %v2245
        %v2247 = vmul.f32 %v2223, 1.442695
        %v2248 = vpow.pop %v2247
        %v2249 = vmul.f32 %v2224, 1.442695
        %v2250 = vpow.pop %v2249
        %v2251 = vmul.f32 %v2225, 1.442695
        %v2252 = vpow.pop %v2251
        %v2253 = vmul.f32 %v2226, 1.442695
        %v2254 = vpow.pop %v2253
        %v2255 = vmul.f32 %v2227, 1.442695
        %v2256 = vpow.pop %v2255
        %v2257 = vmul.f32 %v2228, 1.442695
        %v2258 = vpow.pop %v2257
        %v2259 = vmul.f32 %v2229, 1.442695
        %v2260 = vpow.pop %v2259
        %v2261 = vmul.f32 %v2230, 1.442695
        %v2262 = vpow.pop %v2261
        %v2263 = vadd.f32 %v2232, 1.0
        %v2264 = vadd.f32 %v2234, 1.0
        %v2265 = vadd.f32 %v2236, 1.0
        %v2266 = vadd.f32 %v2238, 1.0
        %v2267 = vadd.f32 %v2240, 1.0
        %v2268 = vadd.f32 %v2242, 1.0
        %v2269 = vadd.f32 %v2244, 1.0
        %v2270 = vadd.f32 %v2246, 1.0
        %v2271 = vadd.f32 %v2248, 1.0
        %v2272 = vadd.f32 %v2250, 1.0
        %v2273 = vadd.f32 %v2252, 1.0
        %v2274 = vadd.f32 %v2254, 1.0
        %v2275 = vadd.f32 %v2256, 1.0
        %v2276 = vadd.f32 %v2258, 1.0
        %v2277 = vadd.f32 %v2260, 1.0
        %v2278 = vadd.f32 %v2262, 1.0
        %v2279 = vrcp.pop %v2263
        %v2280 = vmul.f32 1.0, %v2279
        %v2281 = vrcp.pop %v2264
        %v2282 = vmul.f32 1.0, %v2281
        %v2283 = vrcp.pop %v2265
        %v2284 = vmul.f32 1.0, %v2283
        %v2285 = vrcp.pop %v2266
        %v2286 = vmul.f32 1.0, %v2285
        %v2287 = vrcp.pop %v2267
        %v2288 = vmul.f32 1.0, %v2287
        %v2289 = vrcp.pop %v2268
        %v2290 = vmul.f32 1.0, %v2289
        %v2291 = vrcp.pop %v2269
        %v2292 = vmul.f32 1.0, %v2291
        %v2293 = vrcp.pop %v2270
        %v2294 = vmul.f32 1.0, %v2293
        %v2295 = vrcp.pop %v2271
        %v2296 = vmul.f32 1.0, %v2295
        %v2297 = vrcp.pop %v2272
        %v2298 = vmul.f32 1.0, %v2297
        %v2299 = vrcp.pop %v2273
        %v2300 = vmul.f32 1.0, %v2299
        %v2301 = vrcp.pop %v2274
        %v2302 = vmul.f32 1.0, %v2301
        %v2303 = vrcp.pop %v2275
        %v2304 = vmul.f32 1.0, %v2303
        %v2305 = vrcp.pop %v2276
        %v2306 = vmul.f32 1.0, %v2305
        %v2307 = vrcp.pop %v2277
        %v2308 = vmul.f32 1.0, %v2307
        %v2309 = vrcp.pop %v2278
        %v2310 = vmul.f32 1.0, %v2309
        %2311 = vst [vmem:[%s341] sm:$0xff] %v2280
        %2312 = vst [vmem:[%s341 + $0x8] sm:$0xff] %v2282
        %2313 = vst [vmem:[%s341 + $0x10] sm:$0xff] %v2284
        %2314 = vst [vmem:[%s341 + $0x18] sm:$0xff] %v2286
        %2315 = vst [vmem:[%s341 + $0x20] sm:$0xff] %v2288
        %2316 = vst [vmem:[%s341 + $0x28] sm:$0xff] %v2290
        %2317 = vst [vmem:[%s341 + $0x30] sm:$0xff] %v2292
        %2318 = vst [vmem:[%s341 + $0x38] sm:$0xff] %v2294
        %2319 = vst [vmem:[%s341 + $0x40] sm:$0xff] %v2296
        %2320 = vst [vmem:[%s341 + $0x48] sm:$0xff] %v2298
        %2321 = vst [vmem:[%s341 + $0x50] sm:$0xff] %v2300
        %2322 = vst [vmem:[%s341 + $0x58] sm:$0xff] %v2302
        %2323 = vst [vmem:[%s341 + $0x60] sm:$0xff] %v2304
        %2324 = vst [vmem:[%s341 + $0x68] sm:$0xff] %v2306
        %2325 = vst [vmem:[%s341 + $0x70] sm:$0xff] %v2308
        %2326 = vst [vmem:[%s341 + $0x78] sm:$0xff] %v2310
        %s2327 = sand.u32 %s186, 1
        %s2328 = scalar_lea.sflag [#allocation4], %s2327
        %s2329 = sand.u32 %s186, 1
        %s2330 = smul.addr %s2329, 128
        %s2331 = scalar_lea.vmem [#allocation10], %s2330
        // Predicated region
        $region65: #{tpu_custom_call.1} parent=47 // pred_check
          %p2332 = pneg %p196
        $region66: #{tpu_custom_call.1} parent=47 // pred_check_branch
          %2334 = sbr.rel (%p2332) target = $region68
        $region67: #{tpu_custom_call.1} parent=47 // pred_region
          %s2335 = smul.u32 16, %s26
          %s2337 = ssub.s32 2048, 2048
          %2338 = vsyncadd %s2328, %s2337
          %s2339 = smul.addr %s2335, 128
          %s2340 = scalar_lea.hbm %s7, %s2339
          %s2341 = sshll.u32 %s2331, 4
          %s2342 = int_to_ptr.vmem [resolvable:$true] %s2341
          %2347 = dma.vmem_to_hbm [thread:$0]  %s2342, 2048, %s2340, %s2328, 128, 128, 8
        $region68: #{tpu_custom_call.1} parent=47 // pred_fallthru
          _
      $region48: #{tpu_custom_call.1} parent=5 // pred_fallthru
        _
      %p2348 = scmp.le.s32.totalorder 2, %s21
      // Predicated region
      $region69: #{tpu_custom_call.1} parent=5 // pred_check
        %p2349 = pneg %p2348
      $region70: #{tpu_custom_call.1} parent=5 // pred_check_branch
        %2351 = sbr.rel (%p2349) target = $region72
      $region71: #{tpu_custom_call.1} parent=5 // pred_region
        %s2352 = ssub.s32 %s21, 2
        // Predicated region
        $region73: #{tpu_custom_call.1} parent=71 // pred_check
          %p2353 = pneg %p202
        $region74: #{tpu_custom_call.1} parent=71 // pred_check_branch
          %2355 = sbr.rel (%p2353) target = $region76
        $region75: #{tpu_custom_call.1} parent=71 // pred_region
          %s2356 = sand.u32 %s187, 1
          %s2357 = scalar_lea.sflag [#allocation4], %s2356
          %s2358 = sand.u32 %s187, 1
          %s2359 = smul.addr %s2358, 128
          %s2360 = scalar_lea.vmem [#allocation10], %s2359
          %2361 = dma.done %s2357, 2048
        $region76: #{tpu_custom_call.1} parent=71 // pred_fallthru
          _
      $region72: #{tpu_custom_call.1} parent=5 // pred_fallthru
        _
    $region6: #{tpu_custom_call.1} parent=1 // loop_footer
      %s25 = sadd.s32 1, %s21
    $region7: #{tpu_custom_call.1} parent=1 // loop_footer_branch
      %20 = sbr.rel target = $region3
    $region8: #{tpu_custom_call.1} parent=1 // loop_exit
      _
    %2362 = vsyncpa [#allocation3], 1
    %s2363 = scalar_lea.sflag [#allocation3], 1
    %2364 = vsyncpa %s2363, 1
    %2365 = vsyncpa [#allocation6], 1
    %2366 = vsyncpa [#allocation9], 1
    %2367 = vsyncpa [#allocation4], 1
    %s2368 = scalar_lea.sflag [#allocation4], 1
    %2369 = vsyncpa %s2368, 1

// kernel: tpu_custom_call.1
$region0: #{tpu_custom_call.1}
  #allocation0 [shape = 'u32[]', space=smem, size = 0x4, offset = 0x4, fixed_abs, tag = 'smem constant byte address 0x4 - core index']
  #allocation1 [shape = 'u32[144,128]{1,0:T(1,128)}', space=vmem, size = 0x12000, scoped, tag = 'internal scratch']
  %s0 = inlined_call_operand.hbm [shape: f32[256,256], index: 0, kind: input, shape index: {}]
  %s1 = inlined_call_operand.hbm [shape: bf16[256,512], index: 1, kind: input, shape index: {}]
  %s2 = inlined_call_operand.vmem [shape: f32[1,512], index: 2, kind: input, shape index: {}]
  %s3 = inlined_call_operand.hbm [shape: bf16[512,256], index: 3, kind: input, shape index: {}]
  %s4 = inlined_call_operand.vmem [shape: f32[1,256], index: 4, kind: input, shape index: {}]
  %s5 = inlined_call_operand.hbm [shape: bf16[256,128], index: 5, kind: input, shape index: {}]
  %s6 = inlined_call_operand.vmem [shape: f32[1,128], index: 6, kind: input, shape index: {}]
  %s7 = inlined_call_operand.hbm [shape: f32[256,128], index: 7, kind: output, shape index: {}]
  %s8 = sld [smem:[#allocation0]]
  $region77: #{tpu_custom_call.1} parent=0
    _
  %s10 = ssub.s32 1, %s8
  %s11 = scalar_select 0, %s10, %s8
  $region1: #{tpu_custom_call.1} parent=0
    #allocation2 [shape = 'u8[262144]{0}', space=vmem, size = 0x40000, scoped, tag = 'input window, operand 0']
    #allocation3 [shape = 's32[2]{0}', space=sflag, size = 0x8, scoped, tag = 'scoped memory for tpu_custom_call.1']
    #allocation4 [shape = 's32[2]{0}', space=sflag, size = 0x8, scoped, tag = 'scoped memory for tpu_custom_call.1']
    #allocation5 [shape = 'u8[262144]{0}', space=vmem, size = 0x40000, scoped, tag = 'input window, operand 1, single buffered']
    #allocation6 [shape = 's32[1]{0}', space=sflag, size = 0x4, scoped, tag = 'scoped memory for tpu_custom_call.1']
    #allocation7 [shape = 'u8[262144]{0}', space=vmem, size = 0x40000, scoped, tag = 'input window, operand 3, single buffered']
    #allocation8 [shape = 'u8[65536]{0}', space=vmem, size = 0x10000, scoped, tag = 'input window, operand 5, single buffered']
    #allocation9 [shape = 's32[1]{0}', space=sflag, size = 0x4, scoped, tag = 'scoped memory for tpu_custom_call.1']
    #allocation10 [shape = 'u8[131072]{0}', space=vmem, size = 0x20000, scoped, tag = 'output window, operand 0']
    %12 = vsyncpa [#allocation3], 0
    %s13 = scalar_lea.sflag [#allocation3], 1
    %14 = vsyncpa %s13, 0
    %15 = vsyncpa [#allocation6], 0
    %16 = vsyncpa [#allocation9], 0
    %17 = vsyncpa [#allocation4], 0
    %s18 = scalar_lea.sflag [#allocation4], 1
    %19 = vsyncpa %s18, 0
    loop: start=0, step=1, limit=4
    $region2: #{tpu_custom_call.1} parent=1 // loop_pre_header
      _
    $region3: #{tpu_custom_call.1} parent=1 // loop_header
      %s21 = sphi 0, %s25
      %p22 = scmp.ge.s32.totalorder %s21, 4
      %s31 = sphi 0, %s33
      %s34 = sphi 0, %s31
      %s35 = sphi 0, %s34
      %s51 = sphi 0, %s35
      %s55 = sphi 0, %s55
      %s57 = sphi 0, %s55
      %s58 = sphi 0, %s57
      %s72 = sphi 0, %s58
      %s76 = sphi 0, %s76
      %s78 = sphi 0, %s76
      %s79 = sphi 0, %s78
      %s93 = sphi 0, %s79
      %s97 = sphi 0, %s97
      %s99 = sphi 0, %s97
      %s100 = sphi 0, %s99
      %s114 = sphi 0, %s100
      %s118 = sphi 0, %s118
      %s120 = sphi 0, %s118
      %s121 = sphi 0, %s120
      %s135 = sphi 0, %s121
      %s139 = sphi 0, %s139
      %s141 = sphi 0, %s139
      %s142 = sphi 0, %s141
      %s156 = sphi 0, %s142
      %s160 = sphi 0, %s160
      %s162 = sphi 0, %s160
      %s163 = sphi 0, %s162
      %s177 = sphi 0, %s163
      %s183 = sphi 0, %s185
      %s186 = sphi 0, %s183
      %s187 = sphi 0, %s186
      %s203 = sphi 0, %s187
    $region4: #{tpu_custom_call.1} parent=1 // loop_header_branch
      %24 = sbr.rel (%p22) target = $region8
    $region5: #{tpu_custom_call.1} parent=1 // loop_body
      %s26 = ssub.s32 %s21, 1
      %s27 = ssub.s32 %s21, 2
      %s28 = sadd.s32 %s21, 1
      %s29 = ssub.s32 %s21, %s28
      %p30 = scmp.eq.s32.totalorder %s29, 0
      %s32 = sadd.s32 %s31, 1
      %s33 = scalar_select %p30, %s31, %s32
      %p36 = pneg %p30
      %p37 = scmp.eq.s32.totalorder %s21, 1
      %p38 = por %p36, %p37
      %p39 = scmp.ne.s32.totalorder %s31, %s34
      %p40 = scmp.eq.s32.totalorder %s21, 0
      %p41 = por %p39, %p40
      %p42 = scmp.ne.s32.totalorder %s31, %s34
      %p43 = scmp.eq.s32.totalorder %s26, 1
      %p44 = por %p42, %p43
      %p45 = scmp.ne.s32.totalorder %s34, %s35
      %p46 = scmp.eq.s32.totalorder %s26, 0
      %p47 = por %p45, %p46
      %p48 = scmp.ne.s32.totalorder %s34, %s35
      %p49 = scmp.eq.s32.totalorder %s27, 1
      %p50 = por %p48, %p49
      %p52 = scmp.ne.s32.totalorder %s35, %s51
      %p53 = scmp.eq.s32.totalorder %s27, 0
      %p54 = por %p52, %p53
      %s56 = sadd.s32 %s55, 1
      %p59 = scmp.eq.s32.totalorder %s21, 1
      %p60 = scmp.ne.s32.totalorder %s55, %s57
      %p61 = scmp.eq.s32.totalorder %s21, 0
      %p62 = por %p60, %p61
      %p63 = scmp.ne.s32.totalorder %s55, %s57
      %p64 = scmp.eq.s32.totalorder %s26, 1
      %p65 = por %p63, %p64
      %p66 = scmp.ne.s32.totalorder %s57, %s58
      %p67 = scmp.eq.s32.totalorder %s26, 0
      %p68 = por %p66, %p67
      %p69 = scmp.ne.s32.totalorder %s57, %s58
      %p70 = scmp.eq.s32.totalorder %s27, 1
      %p71 = por %p69, %p70
      %p73 = scmp.ne.s32.totalorder %s58, %s72
      %p74 = scmp.eq.s32.totalorder %s27, 0
      %p75 = por %p73, %p74
      %s77 = sadd.s32 %s76, 1
      %p80 = scmp.eq.s32.totalorder %s21, 1
      %p81 = scmp.ne.s32.totalorder %s76, %s78
      %p82 = scmp.eq.s32.totalorder %s21, 0
      %p83 = por %p81, %p82
      %p84 = scmp.ne.s32.totalorder %s76, %s78
      %p85 = scmp.eq.s32.totalorder %s26, 1
      %p86 = por %p84, %p85
      %p87 = scmp.ne.s32.totalorder %s78, %s79
      %p88 = scmp.eq.s32.totalorder %s26, 0
      %p89 = por %p87, %p88
      %p90 = scmp.ne.s32.totalorder %s78, %s79
      %p91 = scmp.eq.s32.totalorder %s27, 1
      %p92 = por %p90, %p91
      %p94 = scmp.ne.s32.totalorder %s79, %s93
      %p95 = scmp.eq.s32.totalorder %s27, 0
      %p96 = por %p94, %p95
      %s98 = sadd.s32 %s97, 1
      %p101 = scmp.eq.s32.totalorder %s21, 1
      %p102 = scmp.ne.s32.totalorder %s97, %s99
      %p103 = scmp.eq.s32.totalorder %s21, 0
      %p104 = por %p102, %p103
      %p105 = scmp.ne.s32.totalorder %s97, %s99
      %p106 = scmp.eq.s32.totalorder %s26, 1
      %p107 = por %p105, %p106
      %p108 = scmp.ne.s32.totalorder %s99, %s100
      %p109 = scmp.eq.s32.totalorder %s26, 0
      %p110 = por %p108, %p109
      %p111 = scmp.ne.s32.totalorder %s99, %s100
      %p112 = scmp.eq.s32.totalorder %s27, 1
      %p113 = por %p111, %p112
      %p115 = scmp.ne.s32.totalorder %s100, %s114
      %p116 = scmp.eq.s32.totalorder %s27, 0
      %p117 = por %p115, %p116
      %s119 = sadd.s32 %s118, 1
      %p122 = scmp.eq.s32.totalorder %s21, 1
      %p123 = scmp.ne.s32.totalorder %s118, %s120
      %p124 = scmp.eq.s32.totalorder %s21, 0
      %p125 = por %p123, %p124
      %p126 = scmp.ne.s32.totalorder %s118, %s120
      %p127 = scmp.eq.s32.totalorder %s26, 1
      %p128 = por %p126, %p127
      %p129 = scmp.ne.s32.totalorder %s120, %s121
      %p130 = scmp.eq.s32.totalorder %s26, 0
      %p131 = por %p129, %p130
      %p132 = scmp.ne.s32.totalorder %s120, %s121
      %p133 = scmp.eq.s32.totalorder %s27, 1
      %p134 = por %p132, %p133
      %p136 = scmp.ne.s32.totalorder %s121, %s135
      %p137 = scmp.eq.s32.totalorder %s27, 0
      %p138 = por %p136, %p137
      %s140 = sadd.s32 %s139, 1
      %p143 = scmp.eq.s32.totalorder %s21, 1
      %p144 = scmp.ne.s32.totalorder %s139, %s141
      %p145 = scmp.eq.s32.totalorder %s21, 0
      %p146 = por %p144, %p145
      %p147 = scmp.ne.s32.totalorder %s139, %s141
      %p148 = scmp.eq.s32.totalorder %s26, 1
      %p149 = por %p147, %p148
      %p150 = scmp.ne.s32.totalorder %s141, %s142
      %p151 = scmp.eq.s32.totalorder %s26, 0
      %p152 = por %p150, %p151
      %p153 = scmp.ne.s32.totalorder %s141, %s142
      %p154 = scmp.eq.s32.totalorder %s27, 1
      %p155 = por %p153, %p154
      %p157 = scmp.ne.s32.totalorder %s142, %s156
      %p158 = scmp.eq.s32.totalorder %s27, 0
      %p159 = por %p157, %p158
      %s161 = sadd.s32 %s160, 1
      %p164 = scmp.eq.s32.totalorder %s21, 1
      %p165 = scmp.ne.s32.totalorder %s160, %s162
      %p166 = scmp.eq.s32.totalorder %s21, 0
      %p167 = por %p165, %p166
      %p168 = scmp.ne.s32.totalorder %s160, %s162
      %p169 = scmp.eq.s32.totalorder %s26, 1
      %p170 = por %p168, %p169
      %p171 = scmp.ne.s32.totalorder %s162, %s163
      %p172 = scmp.eq.s32.totalorder %s26, 0
      %p173 = por %p171, %p172
      %p174 = scmp.ne.s32.totalorder %s162, %s163
      %p175 = scmp.eq.s32.totalorder %s27, 1
      %p176 = por %p174, %p175
      %p178 = scmp.ne.s32.totalorder %s163, %s177
      %p179 = scmp.eq.s32.totalorder %s27, 0
      %p180 = por %p178, %p179
      %s181 = ssub.s32 %s21, %s28
      %p182 = scmp.eq.s32.totalorder %s181, 0
      %s184 = sadd.s32 %s183, 1
      %s185 = scalar_select %p182, %s183, %s184
      %p188 = pneg %p182
      %p189 = scmp.eq.s32.totalorder %s21, 1
      %p190 = por %p188, %p189
      %p191 = scmp.ne.s32.totalorder %s183, %s186
      %p192 = scmp.eq.s32.totalorder %s21, 0
      %p193 = por %p191, %p192
      %p194 = scmp.ne.s32.totalorder %s183, %s186
      %p195 = scmp.eq.s32.totalorder %s26, 1
      %p196 = por %p194, %p195
      %p197 = scmp.ne.s32.totalorder %s186, %s187
      %p198 = scmp.eq.s32.totalorder %s26, 0
      %p199 = por %p197, %p198
      %p200 = scmp.ne.s32.totalorder %s186, %s187
      %p201 = scmp.eq.s32.totalorder %s27, 1
      %p202 = por %p200, %p201
      %p204 = scmp.ne.s32.totalorder %s187, %s203
      %p205 = scmp.eq.s32.totalorder %s27, 0
      %p206 = por %p204, %p205
      %p207 = scmp.le.s32.totalorder 1, %s21
      %p208 = scmp.lt.s32.totalorder %s21, 3
      %p209 = pnand %p207, %p208
      %p210 = pneg %p209
      // Predicated region
      $region9: #{tpu_custom_call.1} parent=5 // pred_check
        _
      $region10: #{tpu_custom_call.1} parent=5 // pred_check_branch
        %212 = sbr.rel (%p209) target = $region12
      $region11: #{tpu_custom_call.1} parent=5 // pred_region
        %s213 = ssub.s32 %s21, 1
        // Predicated region
        $region13: #{tpu_custom_call.1} parent=11 // pred_check
          %p214 = pneg %p68
        $region14: #{tpu_custom_call.1} parent=11 // pred_check_branch
          %216 = sbr.rel (%p214) target = $region16
        $region15: #{tpu_custom_call.1} parent=11 // pred_region
          %s218 = ssub.s32 8192, 8192
          %219 = vsyncadd [#allocation6], %s218
          %s220 = sshll.u32 [#allocation5], 4
          %s221 = int_to_ptr.vmem [resolvable:$true] %s220
          %226 = dma.hbm_to_vmem [thread:$0]  %s1, 8192, %s221, [#allocation6], 256, 256, 16
        $region16: #{tpu_custom_call.1} parent=11 // pred_fallthru
          _
        // Predicated region
        $region17: #{tpu_custom_call.1} parent=11 // pred_check
          %p227 = pneg %p89
        $region18: #{tpu_custom_call.1} parent=11 // pred_check_branch
          %229 = sbr.rel (%p227) target = $region20
        $region19: #{tpu_custom_call.1} parent=11 // pred_region
          _
        $region20: #{tpu_custom_call.1} parent=11 // pred_fallthru
          _
        // Predicated region
        $region21: #{tpu_custom_call.1} parent=11 // pred_check
          %p230 = pneg %p110
        $region22: #{tpu_custom_call.1} parent=11 // pred_check_branch
          %232 = sbr.rel (%p230) target = $region24
        $region23: #{tpu_custom_call.1} parent=11 // pred_region
          %s234 = ssub.s32 8192, 8192
          %235 = vsyncadd [#allocation6], %s234
          %s236 = sshll.u32 [#allocation7], 4
          %s237 = int_to_ptr.vmem [resolvable:$true] %s236
          %242 = dma.hbm_to_vmem [thread:$0]  %s3, 8192, %s237, [#allocation6], 128, 128, 8
        $region24: #{tpu_custom_call.1} parent=11 // pred_fallthru
          _
        // Predicated region
        $region25: #{tpu_custom_call.1} parent=11 // pred_check
          %p243 = pneg %p131
        $region26: #{tpu_custom_call.1} parent=11 // pred_check_branch
          %245 = sbr.rel (%p243) target = $region28
        $region27: #{tpu_custom_call.1} parent=11 // pred_region
          _
        $region28: #{tpu_custom_call.1} parent=11 // pred_fallthru
          _
        // Predicated region
        $region29: #{tpu_custom_call.1} parent=11 // pred_check
          %p246 = pneg %p152
        $region30: #{tpu_custom_call.1} parent=11 // pred_check_branch
          %248 = sbr.rel (%p246) target = $region32
        $region31: #{tpu_custom_call.1} parent=11 // pred_region
          %s250 = ssub.s32 2048, 2048
          %251 = vsyncadd [#allocation9], %s250
          %s252 = sshll.u32 [#allocation8], 4
          %s253 = int_to_ptr.vmem [resolvable:$true] %s252
          %258 = dma.hbm_to_vmem [thread:$0]  %s5, 2048, %s253, [#allocation9], 64, 64, 4
        $region32: #{tpu_custom_call.1} parent=11 // pred_fallthru
          _
        // Predicated region
        $region33: #{tpu_custom_call.1} parent=11 // pred_check
          %p259 = pneg %p173
        $region34: #{tpu_custom_call.1} parent=11 // pred_check_branch
          %261 = sbr.rel (%p259) target = $region36
        $region35: #{tpu_custom_call.1} parent=11 // pred_region
          _
        $region36: #{tpu_custom_call.1} parent=11 // pred_fallthru
          _
      $region12: #{tpu_custom_call.1} parent=5 // pred_fallthru
        _
      %p262 = scmp.lt.s32.totalorder %s21, 2
      // Predicated region
      $region37: #{tpu_custom_call.1} parent=5 // pred_check
        %p263 = pneg %p262
      $region38: #{tpu_custom_call.1} parent=5 // pred_check_branch
        %265 = sbr.rel (%p263) target = $region40
      $region39: #{tpu_custom_call.1} parent=5 // pred_region
        // Predicated region
        $region41: #{tpu_custom_call.1} parent=39 // pred_check
          %p266 = pneg %p41
        $region42: #{tpu_custom_call.1} parent=39 // pred_check_branch
          %268 = sbr.rel (%p266) target = $region44
        $region43: #{tpu_custom_call.1} parent=39 // pred_region
          %s269 = sand.u32 %s31, 1
          %s270 = scalar_lea.sflag [#allocation3], %s269
          %s271 = sand.u32 %s31, 1
          %s272 = smul.addr %s271, 256
          %s273 = scalar_lea.vmem [#allocation2], %s272
          %s274 = smul.u32 16, %s21
          %s276 = ssub.s32 4096, 4096
          %277 = vsyncadd %s270, %s276
          %s278 = smul.addr %s274, 2
          %s279 = smul.addr %s278, 128
          %s280 = scalar_lea.hbm %s0, %s279
          %s281 = sshll.u32 %s273, 4
          %s282 = int_to_ptr.vmem [resolvable:$true] %s281
          %287 = dma.hbm_to_vmem [thread:$0]  %s280, 4096, %s282, %s270, 256, 256, 16
        $region44: #{tpu_custom_call.1} parent=39 // pred_fallthru
          _
      $region40: #{tpu_custom_call.1} parent=5 // pred_fallthru
        _
      %p288 = scmp.le.s32.totalorder 1, %s21
      %p289 = scmp.lt.s32.totalorder %s21, 3
      %p290 = pnand %p288, %p289
      %p291 = pneg %p290
      // Predicated region
      $region45: #{tpu_custom_call.1} parent=5 // pred_check
        _
      $region46: #{tpu_custom_call.1} parent=5 // pred_check_branch
        %293 = sbr.rel (%p290) target = $region48
      $region47: #{tpu_custom_call.1} parent=5 // pred_region
        %s294 = ssub.s32 %s21, 1
        %s295 = sand.u32 %s34, 1
        %s296 = scalar_lea.sflag [#allocation3], %s295
        %s297 = sand.u32 %s34, 1
        %s298 = smul.addr %s297, 256
        %s299 = scalar_lea.vmem [#allocation2], %s298
        // Predicated region
        $region49: #{tpu_custom_call.1} parent=47 // pred_check
          %p300 = pneg %p47
        $region50: #{tpu_custom_call.1} parent=47 // pred_check_branch
          %302 = sbr.rel (%p300) target = $region52
        $region51: #{tpu_custom_call.1} parent=47 // pred_region
          %303 = dma.done %s296, 4096
        $region52: #{tpu_custom_call.1} parent=47 // pred_fallthru
          _
        // Predicated region
        $region53: #{tpu_custom_call.1} parent=47 // pred_check
          %p304 = pneg %p68
        $region54: #{tpu_custom_call.1} parent=47 // pred_check_branch
          %306 = sbr.rel (%p304) target = $region56
        $region55: #{tpu_custom_call.1} parent=47 // pred_region
          %307 = dma.done [#allocation6], 8192
        $region56: #{tpu_custom_call.1} parent=47 // pred_fallthru
          _
        // Predicated region
        $region57: #{tpu_custom_call.1} parent=47 // pred_check
          %p308 = pneg %p110
        $region58: #{tpu_custom_call.1} parent=47 // pred_check_branch
          %310 = sbr.rel (%p308) target = $region60
        $region59: #{tpu_custom_call.1} parent=47 // pred_region
          %311 = dma.done [#allocation6], 8192
        $region60: #{tpu_custom_call.1} parent=47 // pred_fallthru
          _
        // Predicated region
        $region61: #{tpu_custom_call.1} parent=47 // pred_check
          %p312 = pneg %p152
        $region62: #{tpu_custom_call.1} parent=47 // pred_check_branch
          %314 = sbr.rel (%p312) target = $region64
        $region63: #{tpu_custom_call.1} parent=47 // pred_region
          %315 = dma.done [#allocation9], 2048
        $region64: #{tpu_custom_call.1} parent=47 // pred_fallthru
          _
        %s316 = sand.u32 %s34, 1
        %s317 = scalar_lea.sflag [#allocation3], %s316
        %s318 = sand.u32 %s34, 1
        %s319 = smul.addr %s318, 256
        %s320 = scalar_lea.vmem [#allocation2], %s319
        %p321 = pneg %p47
        %p322 = pneg %p44
        %p323 = pneg %p68
        %p324 = pneg %p65
        %p325 = pneg %p89
        %p326 = pneg %p86
        %p327 = pneg %p110
        %p328 = pneg %p107
        %p329 = pneg %p131
        %p330 = pneg %p128
        %p331 = pneg %p152
        %p332 = pneg %p149
        %p333 = pneg %p173
        %p334 = pneg %p170
        %p335 = pneg %p199
        %p336 = pneg %p196
        %s337 = sand.u32 %s186, 1
        %s338 = scalar_lea.sflag [#allocation4], %s337
        %s339 = sand.u32 %s186, 1
        %s340 = smul.addr %s339, 128
        %s341 = scalar_lea.vmem [#allocation10], %s340
        %s342 = smul.u32 16, %s26
        %s343 = smul.u32 16, %s26
        %v345 = vld [vmem:[%s299] sm:$0xff]
        %v346 = vld [vmem:[%s299 + $0x8] sm:$0xff]
        %v347 = vld [vmem:[%s299 + $0x10] sm:$0xff]
        %v348 = vld [vmem:[%s299 + $0x18] sm:$0xff]
        %v349 = vld [vmem:[%s299 + $0x20] sm:$0xff]
        %v350 = vld [vmem:[%s299 + $0x28] sm:$0xff]
        %v351 = vld [vmem:[%s299 + $0x30] sm:$0xff]
        %v352 = vld [vmem:[%s299 + $0x38] sm:$0xff]
        %v353 = vld [vmem:[%s299 + $0x40] sm:$0xff]
        %v354 = vld [vmem:[%s299 + $0x48] sm:$0xff]
        %v355 = vld [vmem:[%s299 + $0x50] sm:$0xff]
        %v356 = vld [vmem:[%s299 + $0x58] sm:$0xff]
        %v357 = vld [vmem:[%s299 + $0x60] sm:$0xff]
        %v358 = vld [vmem:[%s299 + $0x68] sm:$0xff]
        %v359 = vld [vmem:[%s299 + $0x70] sm:$0xff]
        %v360 = vld [vmem:[%s299 + $0x78] sm:$0xff]
        %v361 = vld [vmem:[%s299 + $0x80] sm:$0xff]
        %v362 = vld [vmem:[%s299 + $0x88] sm:$0xff]
        %v363 = vld [vmem:[%s299 + $0x90] sm:$0xff]
        %v364 = vld [vmem:[%s299 + $0x98] sm:$0xff]
        %v365 = vld [vmem:[%s299 + $0xa0] sm:$0xff]
        %v366 = vld [vmem:[%s299 + $0xa8] sm:$0xff]
        %v367 = vld [vmem:[%s299 + $0xb0] sm:$0xff]
        %v368 = vld [vmem:[%s299 + $0xb8] sm:$0xff]
        %v369 = vld [vmem:[%s299 + $0xc0] sm:$0xff]
        %v370 = vld [vmem:[%s299 + $0xc8] sm:$0xff]
        %v371 = vld [vmem:[%s299 + $0xd0] sm:$0xff]
        %v372 = vld [vmem:[%s299 + $0xd8] sm:$0xff]
        %v373 = vld [vmem:[%s299 + $0xe0] sm:$0xff]
        %v374 = vld [vmem:[%s299 + $0xe8] sm:$0xff]
        %v375 = vld [vmem:[%s299 + $0xf0] sm:$0xff]
        %v376 = vld [vmem:[%s299 + $0xf8] sm:$0xff]
        %v377 = vpack.c.bf16 %v347, %v345
        %v378 = vpack.c.bf16 %v348, %v346
        %v379 = vpack.c.bf16 %v351, %v349
        %v380 = vpack.c.bf16 %v352, %v350
        %v381 = vpack.c.bf16 %v355, %v353
        %v382 = vpack.c.bf16 %v356, %v354
        %v383 = vpack.c.bf16 %v359, %v357
        %v384 = vpack.c.bf16 %v360, %v358
        %v385 = vpack.c.bf16 %v363, %v361
        %v386 = vpack.c.bf16 %v364, %v362
        %v387 = vpack.c.bf16 %v367, %v365
        %v388 = vpack.c.bf16 %v368, %v366
        %v389 = vpack.c.bf16 %v371, %v369
        %v390 = vpack.c.bf16 %v372, %v370
        %v391 = vpack.c.bf16 %v375, %v373
        %v392 = vpack.c.bf16 %v376, %v374
        %v393 = vld [vmem:[#allocation5] sm:$0xff]
        %v394 = vld [vmem:[#allocation5 + $0x8] sm:$0xff]
        %v395 = vld [vmem:[#allocation5 + $0x10] sm:$0xff]
        %v396 = vld [vmem:[#allocation5 + $0x18] sm:$0xff]
        %v397 = vld [vmem:[#allocation5 + $0x20] sm:$0xff]
        %v398 = vld [vmem:[#allocation5 + $0x28] sm:$0xff]
        %v399 = vld [vmem:[#allocation5 + $0x30] sm:$0xff]
        %v400 = vld [vmem:[#allocation5 + $0x38] sm:$0xff]
        %v401 = vld [vmem:[#allocation5 + $0x40] sm:$0xff]
        %v402 = vld [vmem:[#allocation5 + $0x48] sm:$0xff]
        %v403 = vld [vmem:[#allocation5 + $0x50] sm:$0xff]
        %v404 = vld [vmem:[#allocation5 + $0x58] sm:$0xff]
        %v405 = vld [vmem:[#allocation5 + $0x60] sm:$0xff]
        %v406 = vld [vmem:[#allocation5 + $0x68] sm:$0xff]
        %v407 = vld [vmem:[#allocation5 + $0x70] sm:$0xff]
        %v408 = vld [vmem:[#allocation5 + $0x78] sm:$0xff]
        %v409 = vld [vmem:[#allocation5 + $0x80] sm:$0xff]
        %v410 = vld [vmem:[#allocation5 + $0x88] sm:$0xff]
        %v411 = vld [vmem:[#allocation5 + $0x90] sm:$0xff]
        %v412 = vld [vmem:[#allocation5 + $0x98] sm:$0xff]
        %v413 = vld [vmem:[#allocation5 + $0xa0] sm:$0xff]
        %v414 = vld [vmem:[#allocation5 + $0xa8] sm:$0xff]
        %v415 = vld [vmem:[#allocation5 + $0xb0] sm:$0xff]
        %v416 = vld [vmem:[#allocation5 + $0xb8] sm:$0xff]
        %v417 = vld [vmem:[#allocation5 + $0xc0] sm:$0xff]
        %v418 = vld [vmem:[#allocation5 + $0xc8] sm:$0xff]
        %v419 = vld [vmem:[#allocation5 + $0xd0] sm:$0xff]
        %v420 = vld [vmem:[#allocation5 + $0xd8] sm:$0xff]
        %v421 = vld [vmem:[#allocation5 + $0xe0] sm:$0xff]
        %v422 = vld [vmem:[#allocation5 + $0xe8] sm:$0xff]
        %v423 = vld [vmem:[#allocation5 + $0xf0] sm:$0xff]
        %v424 = vld [vmem:[#allocation5 + $0xf8] sm:$0xff]
        %v425 = vld [vmem:[#allocation5 + $0x100] sm:$0xff]
        %v426 = vld [vmem:[#allocation5 + $0x108] sm:$0xff]
        %v427 = vld [vmem:[#allocation5 + $0x110] sm:$0xff]
        %v428 = vld [vmem:[#allocation5 + $0x118] sm:$0xff]
        %v429 = vld [vmem:[#allocation5 + $0x120] sm:$0xff]
        %v430 = vld [vmem:[#allocation5 + $0x128] sm:$0xff]
        %v431 = vld [vmem:[#allocation5 + $0x130] sm:$0xff]
        %v432 = vld [vmem:[#allocation5 + $0x138] sm:$0xff]
        %v433 = vld [vmem:[#allocation5 + $0x140] sm:$0xff]
        %v434 = vld [vmem:[#allocation5 + $0x148] sm:$0xff]
        %v435 = vld [vmem:[#allocation5 + $0x150] sm:$0xff]
        %v436 = vld [vmem:[#allocation5 + $0x158] sm:$0xff]
        %v437 = vld [vmem:[#allocation5 + $0x160] sm:$0xff]
        %v438 = vld [vmem:[#allocation5 + $0x168] sm:$0xff]
        %v439 = vld [vmem:[#allocation5 + $0x170] sm:$0xff]
        %v440 = vld [vmem:[#allocation5 + $0x178] sm:$0xff]
        %v441 = vld [vmem:[#allocation5 + $0x180] sm:$0xff]
        %v442 = vld [vmem:[#allocation5 + $0x188] sm:$0xff]
        %v443 = vld [vmem:[#allocation5 + $0x190] sm:$0xff]
        %v444 = vld [vmem:[#allocation5 + $0x198] sm:$0xff]
        %v445 = vld [vmem:[#allocation5 + $0x1a0] sm:$0xff]
        %v446 = vld [vmem:[#allocation5 + $0x1a8] sm:$0xff]
        %v447 = vld [vmem:[#allocation5 + $0x1b0] sm:$0xff]
        %v448 = vld [vmem:[#allocation5 + $0x1b8] sm:$0xff]
        %v449 = vld [vmem:[#allocation5 + $0x1c0] sm:$0xff]
        %v450 = vld [vmem:[#allocation5 + $0x1c8] sm:$0xff]
        %v451 = vld [vmem:[#allocation5 + $0x1d0] sm:$0xff]
        %v452 = vld [vmem:[#allocation5 + $0x1d8] sm:$0xff]
        %v453 = vld [vmem:[#allocation5 + $0x1e0] sm:$0xff]
        %v454 = vld [vmem:[#allocation5 + $0x1e8] sm:$0xff]
        %v455 = vld [vmem:[#allocation5 + $0x1f0] sm:$0xff]
        %v456 = vld [vmem:[#allocation5 + $0x1f8] sm:$0xff]
        %v457 = vld [vmem:[%s2] sm:$0xf]
        %v459 = vlaneseq
        %v460 = vshrl.u32 %v459, 7
        %v461 = vsub.s32 0, %v460
        %v462 = vrot.slane %v457, %v461
        %v463 = vlaneseq
        %v464 = vshrl.u32 %v463, 7
        %v465 = vsub.s32 1, %v464
        %v466 = vrot.slane %v457, %v465
        %v467 = vlaneseq
        %v468 = vshrl.u32 %v467, 7
        %v469 = vsub.s32 2, %v468
        %v470 = vrot.slane %v457, %v469
        %v471 = vlaneseq
        %v472 = vshrl.u32 %v471, 7
        %v473 = vsub.s32 3, %v472
        %v474 = vrot.slane %v457, %v473
        %v543 = vunpack.c.l.b16 %v393
        %v544 = vunpack.c.h.b16 %v393
        %v545 = vunpack.c.l.b16 %v394
        %v546 = vunpack.c.h.b16 %v394
        %v547 = vunpack.c.l.b16 %v395
        %v548 = vunpack.c.h.b16 %v395
        %v549 = vunpack.c.l.b16 %v396
        %v550 = vunpack.c.h.b16 %v396
        %v551 = vunpack.c.l.b16 %v397
        %v552 = vunpack.c.h.b16 %v397
        %v553 = vunpack.c.l.b16 %v398
        %v554 = vunpack.c.h.b16 %v398
        %v555 = vunpack.c.l.b16 %v399
        %v556 = vunpack.c.h.b16 %v399
        %v557 = vunpack.c.l.b16 %v400
        %v558 = vunpack.c.h.b16 %v400
        %v559 = vunpack.c.l.b16 %v401
        %v560 = vunpack.c.h.b16 %v401
        %v561 = vunpack.c.l.b16 %v402
        %v562 = vunpack.c.h.b16 %v402
        %v563 = vunpack.c.l.b16 %v403
        %v564 = vunpack.c.h.b16 %v403
        %v565 = vunpack.c.l.b16 %v404
        %v566 = vunpack.c.h.b16 %v404
        %v567 = vunpack.c.l.b16 %v405
        %v568 = vunpack.c.h.b16 %v405
        %v569 = vunpack.c.l.b16 %v406
        %v570 = vunpack.c.h.b16 %v406
        %v571 = vunpack.c.l.b16 %v407
        %v572 = vunpack.c.h.b16 %v407
        %v573 = vunpack.c.l.b16 %v408
        %v574 = vunpack.c.h.b16 %v408
        %v575 = vunpack.c.l.b16 %v409
        %v576 = vunpack.c.h.b16 %v409
        %v577 = vunpack.c.l.b16 %v410
        %v578 = vunpack.c.h.b16 %v410
        %v579 = vunpack.c.l.b16 %v411
        %v580 = vunpack.c.h.b16 %v411
        %v581 = vunpack.c.l.b16 %v412
        %v582 = vunpack.c.h.b16 %v412
        %v583 = vunpack.c.l.b16 %v413
        %v584 = vunpack.c.h.b16 %v413
        %v585 = vunpack.c.l.b16 %v414
        %v586 = vunpack.c.h.b16 %v414
        %v587 = vunpack.c.l.b16 %v415
        %v588 = vunpack.c.h.b16 %v415
        %v589 = vunpack.c.l.b16 %v416
        %v590 = vunpack.c.h.b16 %v416
        %v591 = vunpack.c.l.b16 %v417
        %v592 = vunpack.c.h.b16 %v417
        %v593 = vunpack.c.l.b16 %v418
        %v594 = vunpack.c.h.b16 %v418
        %v595 = vunpack.c.l.b16 %v419
        %v596 = vunpack.c.h.b16 %v419
        %v597 = vunpack.c.l.b16 %v420
        %v598 = vunpack.c.h.b16 %v420
        %v599 = vunpack.c.l.b16 %v421
        %v600 = vunpack.c.h.b16 %v421
        %v601 = vunpack.c.l.b16 %v422
        %v602 = vunpack.c.h.b16 %v422
        %v603 = vunpack.c.l.b16 %v423
        %v604 = vunpack.c.h.b16 %v423
        %v605 = vunpack.c.l.b16 %v424
        %v606 = vunpack.c.h.b16 %v424
        %v607 = vunpack.c.l.b16 %v425
        %v608 = vunpack.c.h.b16 %v425
        %v609 = vunpack.c.l.b16 %v426
        %v610 = vunpack.c.h.b16 %v426
        %v611 = vunpack.c.l.b16 %v427
        %v612 = vunpack.c.h.b16 %v427
        %v613 = vunpack.c.l.b16 %v428
        %v614 = vunpack.c.h.b16 %v428
        %v615 = vunpack.c.l.b16 %v429
        %v616 = vunpack.c.h.b16 %v429
        %v617 = vunpack.c.l.b16 %v430
        %v618 = vunpack.c.h.b16 %v430
        %v619 = vunpack.c.l.b16 %v431
        %v620 = vunpack.c.h.b16 %v431
        %v621 = vunpack.c.l.b16 %v432
        %v622 = vunpack.c.h.b16 %v432
        %v623 = vunpack.c.l.b16 %v433
        %v624 = vunpack.c.h.b16 %v433
        %v625 = vunpack.c.l.b16 %v434
        %v626 = vunpack.c.h.b16 %v434
        %v627 = vunpack.c.l.b16 %v435
        %v628 = vunpack.c.h.b16 %v435
        %v629 = vunpack.c.l.b16 %v436
        %v630 = vunpack.c.h.b16 %v436
        %v631 = vunpack.c.l.b16 %v437
        %v632 = vunpack.c.h.b16 %v437
        %v633 = vunpack.c.l.b16 %v438
        %v634 = vunpack.c.h.b16 %v438
        %v635 = vunpack.c.l.b16 %v439
        %v636 = vunpack.c.h.b16 %v439
        %v637 = vunpack.c.l.b16 %v440
        %v638 = vunpack.c.h.b16 %v440
        %v639 = vunpack.c.l.b16 %v441
        %v640 = vunpack.c.h.b16 %v441
        %v641 = vunpack.c.l.b16 %v442
        %v642 = vunpack.c.h.b16 %v442
        %v643 = vunpack.c.l.b16 %v443
        %v644 = vunpack.c.h.b16 %v443
        %v645 = vunpack.c.l.b16 %v444
        %v646 = vunpack.c.h.b16 %v444
        %v647 = vunpack.c.l.b16 %v445
        %v648 = vunpack.c.h.b16 %v445
        %v649 = vunpack.c.l.b16 %v446
        %v650 = vunpack.c.h.b16 %v446
        %v651 = vunpack.c.l.b16 %v447
        %v652 = vunpack.c.h.b16 %v447
        %v653 = vunpack.c.l.b16 %v448
        %v654 = vunpack.c.h.b16 %v448
        %v655 = vunpack.c.l.b16 %v449
        %v656 = vunpack.c.h.b16 %v449
        %v657 = vunpack.c.l.b16 %v450
        %v658 = vunpack.c.h.b16 %v450
        %v659 = vunpack.c.l.b16 %v451
        %v660 = vunpack.c.h.b16 %v451
        %v661 = vunpack.c.l.b16 %v452
        %v662 = vunpack.c.h.b16 %v452
        %v663 = vunpack.c.l.b16 %v453
        %v664 = vunpack.c.h.b16 %v453
        %v665 = vunpack.c.l.b16 %v454
        %v666 = vunpack.c.h.b16 %v454
        %v667 = vunpack.c.l.b16 %v455
        %v668 = vunpack.c.h.b16 %v455
        %v669 = vunpack.c.l.b16 %v456
        %v670 = vunpack.c.h.b16 %v456
        %v671 = vpack.c.b16 %v547, %v543
        %v672 = vpack.c.b16 %v548, %v544
        %v673 = vpack.c.b16 %v549, %v545
        %v674 = vpack.c.b16 %v550, %v546
        %v675 = vpack.c.b16 %v555, %v551
        %v676 = vpack.c.b16 %v556, %v552
        %v677 = vpack.c.b16 %v557, %v553
        %v678 = vpack.c.b16 %v558, %v554
        %v679 = vpack.c.b16 %v563, %v559
        %v680 = vpack.c.b16 %v564, %v560
        %v681 = vpack.c.b16 %v565, %v561
        %v682 = vpack.c.b16 %v566, %v562
        %v683 = vpack.c.b16 %v571, %v567
        %v684 = vpack.c.b16 %v572, %v568
        %v685 = vpack.c.b16 %v573, %v569
        %v686 = vpack.c.b16 %v574, %v570
        %v687 = vpack.c.b16 %v579, %v575
        %v688 = vpack.c.b16 %v580, %v576
        %v689 = vpack.c.b16 %v581, %v577
        %v690 = vpack.c.b16 %v582, %v578
        %v691 = vpack.c.b16 %v587, %v583
        %v692 = vpack.c.b16 %v588, %v584
        %v693 = vpack.c.b16 %v589, %v585
        %v694 = vpack.c.b16 %v590, %v586
        %v695 = vpack.c.b16 %v595, %v591
        %v696 = vpack.c.b16 %v596, %v592
        %v697 = vpack.c.b16 %v597, %v593
        %v698 = vpack.c.b16 %v598, %v594
        %v699 = vpack.c.b16 %v603, %v599
        %v700 = vpack.c.b16 %v604, %v600
        %v701 = vpack.c.b16 %v605, %v601
        %v702 = vpack.c.b16 %v606, %v602
        %v703 = vpack.c.b16 %v611, %v607
        %v704 = vpack.c.b16 %v612, %v608
        %v705 = vpack.c.b16 %v613, %v609
        %v706 = vpack.c.b16 %v614, %v610
        %v707 = vpack.c.b16 %v619, %v615
        %v708 = vpack.c.b16 %v620, %v616
        %v709 = vpack.c.b16 %v621, %v617
        %v710 = vpack.c.b16 %v622, %v618
        %v711 = vpack.c.b16 %v627, %v623
        %v712 = vpack.c.b16 %v628, %v624
        %v713 = vpack.c.b16 %v629, %v625
        %v714 = vpack.c.b16 %v630, %v626
        %v715 = vpack.c.b16 %v635, %v631
        %v716 = vpack.c.b16 %v636, %v632
        %v717 = vpack.c.b16 %v637, %v633
        %v718 = vpack.c.b16 %v638, %v634
        %v719 = vpack.c.b16 %v643, %v639
        %v720 = vpack.c.b16 %v644, %v640
        %v721 = vpack.c.b16 %v645, %v641
        %v722 = vpack.c.b16 %v646, %v642
        %v723 = vpack.c.b16 %v651, %v647
        %v724 = vpack.c.b16 %v652, %v648
        %v725 = vpack.c.b16 %v653, %v649
        %v726 = vpack.c.b16 %v654, %v650
        %v727 = vpack.c.b16 %v659, %v655
        %v728 = vpack.c.b16 %v660, %v656
        %v729 = vpack.c.b16 %v661, %v657
        %v730 = vpack.c.b16 %v662, %v658
        %v731 = vpack.c.b16 %v667, %v663
        %v732 = vpack.c.b16 %v668, %v664
        %v733 = vpack.c.b16 %v669, %v665
        %v734 = vpack.c.b16 %v670, %v666
        %799 = vmatprep.subr.bf16.mxu0 %v672
        %800 = vmatpush1.bf16.msra.mxu0 %v671
        %801 = vmatprep.subr.bf16.mxu0 %v676
        %802 = vmatpush1.bf16.msra.mxu0 %v675
        %803 = vmatprep.subr.bf16.mxu0 %v680
        %804 = vmatpush1.bf16.msra.mxu0 %v679
        %805 = vmatprep.subr.bf16.mxu0 %v684
        %806 = vmatpush1.bf16.msra.mxu0 %v683
        %807 = vmatprep.subr.bf16.mxu0 %v688
        %808 = vmatpush1.bf16.msra.mxu0 %v687
        %809 = vmatprep.subr.bf16.mxu0 %v692
        %810 = vmatpush1.bf16.msra.mxu0 %v691
        %811 = vmatprep.subr.bf16.mxu0 %v696
        %812 = vmatpush1.bf16.msra.mxu0 %v695
        %813 = vmatprep.subr.bf16.mxu0 %v700
        %814 = vmatpush1.bf16.msra.mxu0 %v699
        %815 = vmatprep.subr.bf16.mxu0 %v704
        %816 = vmatpush1.bf16.msra.mxu0 %v703
        %817 = vmatprep.subr.bf16.mxu0 %v708
        %818 = vmatpush1.bf16.msra.mxu0 %v707
        %819 = vmatprep.subr.bf16.mxu0 %v712
        %820 = vmatpush1.bf16.msra.mxu0 %v711
        %821 = vmatprep.subr.bf16.mxu0 %v716
        %822 = vmatpush1.bf16.msra.mxu0 %v715
        %823 = vmatprep.subr.bf16.mxu0 %v720
        %824 = vmatpush1.bf16.msra.mxu0 %v719
        %825 = vmatprep.subr.bf16.mxu0 %v724
        %826 = vmatpush1.bf16.msra.mxu0 %v723
        %827 = vmatprep.subr.bf16.mxu0 %v728
        %828 = vmatpush1.bf16.msra.mxu0 %v727
        %829 = vmatprep.subr.bf16.mxu0 %v732
        %830 = vmatpush1.bf16.msra.mxu0 %v731
        %831 = vmatprep.mubr.bf16.mxu0 %v378
        %832 = vmatmul.mubr.bf16.gmra.mrb[0].mxu0 %v377
        %v833 = vpop.f32.mrb[0].mxu0
        %v834 = vadd.f32 %v462, %v833
        %v835 = vpop.f32.mrb[0].mxu0
        %v836 = vadd.f32 %v466, %v835
        %v837 = vpop.f32.mrb[0].mxu0
        %v838 = vadd.f32 %v462, %v837
        %v839 = vpop.f32.mrb[0].mxu0
        %v840 = vadd.f32 %v466, %v839
        %841 = vmatprep.mubr.bf16.mxu0 %v380
        %842 = vmatmul.mubr.bf16.gmra.mrb[0].mxu0 %v379
        %v843 = vpop.f32.mrb[0].mxu0
        %v844 = vadd.f32 %v462, %v843
        %v845 = vpop.f32.mrb[0].mxu0
        %v846 = vadd.f32 %v466, %v845
        %v847 = vpop.f32.mrb[0].mxu0
        %v848 = vadd.f32 %v462, %v847
        %v849 = vpop.f32.mrb[0].mxu0
        %v850 = vadd.f32 %v466, %v849
        %851 = vmatprep.mubr.bf16.mxu0 %v382
        %852 = vmatmul.mubr.bf16.gmra.mrb[0].mxu0 %v381
        %v853 = vpop.f32.mrb[0].mxu0
        %v854 = vadd.f32 %v462, %v853
        %v855 = vpop.f32.mrb[0].mxu0
        %v856 = vadd.f32 %v466, %v855
        %v857 = vpop.f32.mrb[0].mxu0
        %v858 = vadd.f32 %v462, %v857
        %v859 = vpop.f32.mrb[0].mxu0
        %v860 = vadd.f32 %v466, %v859
        %861 = vmatprep.mubr.bf16.mxu0 %v384
        %862 = vmatmul.mubr.bf16.gmra.mrb[0].mxu0 %v383
        %v863 = vpop.f32.mrb[0].mxu0
        %v864 = vadd.f32 %v462, %v863
        %v865 = vpop.f32.mrb[0].mxu0
        %v866 = vadd.f32 %v466, %v865
        %v867 = vpop.f32.mrb[0].mxu0
        %v868 = vadd.f32 %v462, %v867
        %v869 = vpop.f32.mrb[0].mxu0
        %v870 = vadd.f32 %v466, %v869
        %871 = vmatprep.mubr.bf16.mxu0 %v386
        %872 = vmatmul.mubr.bf16.gmra.mrb[0].mxu0 %v385
        %v873 = vpop.f32.mrb[0].mxu0
        %v874 = vadd.f32 %v462, %v873
        %v875 = vpop.f32.mrb[0].mxu0
        %v876 = vadd.f32 %v466, %v875
        %v877 = vpop.f32.mrb[0].mxu0
        %v878 = vadd.f32 %v462, %v877
        %v879 = vpop.f32.mrb[0].mxu0
        %v880 = vadd.f32 %v466, %v879
        %881 = vmatprep.mubr.bf16.mxu0 %v388
        %882 = vmatmul.mubr.bf16.gmra.mrb[0].mxu0 %v387
        %v883 = vpop.f32.mrb[0].mxu0
        %v884 = vadd.f32 %v462, %v883
        %v885 = vpop.f32.mrb[0].mxu0
        %v886 = vadd.f32 %v466, %v885
        %v887 = vpop.f32.mrb[0].mxu0
        %v888 = vadd.f32 %v462, %v887
        %v889 = vpop.f32.mrb[0].mxu0
        %v890 = vadd.f32 %v466, %v889
        %891 = vmatprep.mubr.bf16.mxu0 %v390
        %892 = vmatmul.mubr.bf16.gmra.mrb[0].mxu0 %v389
        %v893 = vpop.f32.mrb[0].mxu0
        %v894 = vadd.f32 %v462, %v893
        %v895 = vpop.f32.mrb[0].mxu0
        %v896 = vadd.f32 %v466, %v895
        %v897 = vpop.f32.mrb[0].mxu0
        %v898 = vadd.f32 %v462, %v897
        %v899 = vpop.f32.mrb[0].mxu0
        %v900 = vadd.f32 %v466, %v899
        %901 = vmatprep.mubr.bf16.mxu0 %v392
        %902 = vmatmul.mubr.bf16.gmra.mrb[0].mxu0 %v391
        %v903 = vpop.f32.mrb[0].mxu0
        %v904 = vadd.f32 %v462, %v903
        %v905 = vpop.f32.mrb[0].mxu0
        %v906 = vadd.f32 %v466, %v905
        %v907 = vpop.f32.mrb[0].mxu0
        %v908 = vadd.f32 %v462, %v907
        %v909 = vpop.f32.mrb[0].mxu0
        %v910 = vadd.f32 %v466, %v909
        %911 = vdwg.mxu0
        %912 = vmatprep.subr.bf16.mxu0 %v674
        %913 = vmatpush1.bf16.msra.mxu0 %v673
        %914 = vmatprep.subr.bf16.mxu0 %v678
        %915 = vmatpush1.bf16.msra.mxu0 %v677
        %916 = vmatprep.subr.bf16.mxu0 %v682
        %917 = vmatpush1.bf16.msra.mxu0 %v681
        %918 = vmatprep.subr.bf16.mxu0 %v686
        %919 = vmatpush1.bf16.msra.mxu0 %v685
        %920 = vmatprep.subr.bf16.mxu0 %v690
        %921 = vmatpush1.bf16.msra.mxu0 %v689
        %922 = vmatprep.subr.bf16.mxu0 %v694
        %923 = vmatpush1.bf16.msra.mxu0 %v693
        %924 = vmatprep.subr.bf16.mxu0 %v698
        %925 = vmatpush1.bf16.msra.mxu0 %v697
        %926 = vmatprep.subr.bf16.mxu0 %v702
        %927 = vmatpush1.bf16.msra.mxu0 %v701
        %928 = vmatprep.subr.bf16.mxu0 %v706
        %929 = vmatpush1.bf16.msra.mxu0 %v705
        %930 = vmatprep.subr.bf16.mxu0 %v710
        %931 = vmatpush1.bf16.msra.mxu0 %v709
        %932 = vmatprep.subr.bf16.mxu0 %v714
        %933 = vmatpush1.bf16.msra.mxu0 %v713
        %934 = vmatprep.subr.bf16.mxu0 %v718
        %935 = vmatpush1.bf16.msra.mxu0 %v717
        %936 = vmatprep.subr.bf16.mxu0 %v722
        %937 = vmatpush1.bf16.msra.mxu0 %v721
        %938 = vmatprep.subr.bf16.mxu0 %v726
        %939 = vmatpush1.bf16.msra.mxu0 %v725
        %940 = vmatprep.subr.bf16.mxu0 %v730
        %941 = vmatpush1.bf16.msra.mxu0 %v729
        %942 = vmatprep.subr.bf16.mxu0 %v734
        %943 = vmatpush1.bf16.msra.mxu0 %v733
        %944 = vmatprep.mubr.bf16.mxu0 %v378
        %945 = vmatmul.mubr.bf16.gmra.mrb[0].mxu0 %v377
        %v946 = vpop.f32.mrb[0].mxu0
        %v947 = vadd.f32 %v470, %v946
        %v948 = vpop.f32.mrb[0].mxu0
        %v949 = vadd.f32 %v474, %v948
        %v950 = vpop.f32.mrb[0].mxu0
        %v951 = vadd.f32 %v470, %v950
        %v952 = vpop.f32.mrb[0].mxu0
        %v953 = vadd.f32 %v474, %v952
        %954 = vmatprep.mubr.bf16.mxu0 %v380
        %955 = vmatmul.mubr.bf16.gmra.mrb[0].mxu0 %v379
        %v956 = vpop.f32.mrb[0].mxu0
        %v957 = vadd.f32 %v470, %v956
        %v958 = vpop.f32.mrb[0].mxu0
        %v959 = vadd.f32 %v474, %v958
        %v960 = vpop.f32.mrb[0].mxu0
        %v961 = vadd.f32 %v470, %v960
        %v962 = vpop.f32.mrb[0].mxu0
        %v963 = vadd.f32 %v474, %v962
        %964 = vmatprep.mubr.bf16.mxu0 %v382
        %965 = vmatmul.mubr.bf16.gmra.mrb[0].mxu0 %v381
        %v966 = vpop.f32.mrb[0].mxu0
        %v967 = vadd.f32 %v470, %v966
        %v968 = vpop.f32.mrb[0].mxu0
        %v969 = vadd.f32 %v474, %v968
        %v970 = vpop.f32.mrb[0].mxu0
        %v971 = vadd.f32 %v470, %v970
        %v972 = vpop.f32.mrb[0].mxu0
        %v973 = vadd.f32 %v474, %v972
        %974 = vmatprep.mubr.bf16.mxu0 %v384
        %975 = vmatmul.mubr.bf16.gmra.mrb[0].mxu0 %v383
        %v976 = vpop.f32.mrb[0].mxu0
        %v977 = vadd.f32 %v470, %v976
        %v978 = vpop.f32.mrb[0].mxu0
        %v979 = vadd.f32 %v474, %v978
        %v980 = vpop.f32.mrb[0].mxu0
        %v981 = vadd.f32 %v470, %v980
        %v982 = vpop.f32.mrb[0].mxu0
        %v983 = vadd.f32 %v474, %v982
        %984 = vmatprep.mubr.bf16.mxu0 %v386
        %985 = vmatmul.mubr.bf16.gmra.mrb[0].mxu0 %v385
        %v986 = vpop.f32.mrb[0].mxu0
        %v987 = vadd.f32 %v470, %v986
        %v988 = vpop.f32.mrb[0].mxu0
        %v989 = vadd.f32 %v474, %v988
        %v990 = vpop.f32.mrb[0].mxu0
        %v991 = vadd.f32 %v470, %v990
        %v992 = vpop.f32.mrb[0].mxu0
        %v993 = vadd.f32 %v474, %v992
        %994 = vmatprep.mubr.bf16.mxu0 %v388
        %995 = vmatmul.mubr.bf16.gmra.mrb[0].mxu0 %v387
        %v996 = vpop.f32.mrb[0].mxu0
        %v997 = vadd.f32 %v470, %v996
        %v998 = vpop.f32.mrb[0].mxu0
        %v999 = vadd.f32 %v474, %v998
        %v1000 = vpop.f32.mrb[0].mxu0
        %v1001 = vadd.f32 %v470, %v1000
        %v1002 = vpop.f32.mrb[0].mxu0
        %v1003 = vadd.f32 %v474, %v1002
        %1004 = vmatprep.mubr.bf16.mxu0 %v390
        %1005 = vmatmul.mubr.bf16.gmra.mrb[0].mxu0 %v389
        %v1006 = vpop.f32.mrb[0].mxu0
        %v1007 = vadd.f32 %v470, %v1006
        %v1008 = vpop.f32.mrb[0].mxu0
        %v1009 = vadd.f32 %v474, %v1008
        %v1010 = vpop.f32.mrb[0].mxu0
        %v1011 = vadd.f32 %v470, %v1010
        %v1012 = vpop.f32.mrb[0].mxu0
        %v1013 = vadd.f32 %v474, %v1012
        %1014 = vmatprep.mubr.bf16.mxu0 %v392
        %1015 = vmatmul.mubr.bf16.gmra.mrb[0].mxu0 %v391
        %v1016 = vpop.f32.mrb[0].mxu0
        %v1017 = vadd.f32 %v470, %v1016
        %v1018 = vpop.f32.mrb[0].mxu0
        %v1019 = vadd.f32 %v474, %v1018
        %v1020 = vpop.f32.mrb[0].mxu0
        %v1021 = vadd.f32 %v470, %v1020
        %v1022 = vpop.f32.mrb[0].mxu0
        %v1023 = vadd.f32 %v474, %v1022
        %1024 = vdwg.mxu0
        %vm1025 = vcmp.gt.f32.partialorder %v834, 0.0
        %vm1026 = vcmp.gt.f32.partialorder %v836, 0.0
        %vm1027 = vcmp.gt.f32.partialorder %v947, 0.0
        %vm1028 = vcmp.gt.f32.partialorder %v949, 0.0
        %vm1029 = vcmp.gt.f32.partialorder %v838, 0.0
        %vm1030 = vcmp.gt.f32.partialorder %v840, 0.0
        %vm1031 = vcmp.gt.f32.partialorder %v951, 0.0
        %vm1032 = vcmp.gt.f32.partialorder %v953, 0.0
        %vm1033 = vcmp.gt.f32.partialorder %v844, 0.0
        %vm1034 = vcmp.gt.f32.partialorder %v846, 0.0
        %vm1035 = vcmp.gt.f32.partialorder %v957, 0.0
        %vm1036 = vcmp.gt.f32.partialorder %v959, 0.0
        %vm1037 = vcmp.gt.f32.partialorder %v848, 0.0
        %vm1038 = vcmp.gt.f32.partialorder %v850, 0.0
        %vm1039 = vcmp.gt.f32.partialorder %v961, 0.0
        %vm1040 = vcmp.gt.f32.partialorder %v963, 0.0
        %vm1041 = vcmp.gt.f32.partialorder %v854, 0.0
        %vm1042 = vcmp.gt.f32.partialorder %v856, 0.0
        %vm1043 = vcmp.gt.f32.partialorder %v967, 0.0
        %vm1044 = vcmp.gt.f32.partialorder %v969, 0.0
        %vm1045 = vcmp.gt.f32.partialorder %v858, 0.0
        %vm1046 = vcmp.gt.f32.partialorder %v860, 0.0
        %vm1047 = vcmp.gt.f32.partialorder %v971, 0.0
        %vm1048 = vcmp.gt.f32.partialorder %v973, 0.0
        %vm1049 = vcmp.gt.f32.partialorder %v864, 0.0
        %vm1050 = vcmp.gt.f32.partialorder %v866, 0.0
        %vm1051 = vcmp.gt.f32.partialorder %v977, 0.0
        %vm1052 = vcmp.gt.f32.partialorder %v979, 0.0
        %vm1053 = vcmp.gt.f32.partialorder %v868, 0.0
        %vm1054 = vcmp.gt.f32.partialorder %v870, 0.0
        %vm1055 = vcmp.gt.f32.partialorder %v981, 0.0
        %vm1056 = vcmp.gt.f32.partialorder %v983, 0.0
        %vm1057 = vcmp.gt.f32.partialorder %v874, 0.0
        %vm1058 = vcmp.gt.f32.partialorder %v876, 0.0
        %vm1059 = vcmp.gt.f32.partialorder %v987, 0.0
        %vm1060 = vcmp.gt.f32.partialorder %v989, 0.0
        %vm1061 = vcmp.gt.f32.partialorder %v878, 0.0
        %vm1062 = vcmp.gt.f32.partialorder %v880, 0.0
        %vm1063 = vcmp.gt.f32.partialorder %v991, 0.0
        %vm1064 = vcmp.gt.f32.partialorder %v993, 0.0
        %vm1065 = vcmp.gt.f32.partialorder %v884, 0.0
        %vm1066 = vcmp.gt.f32.partialorder %v886, 0.0
        %vm1067 = vcmp.gt.f32.partialorder %v997, 0.0
        %vm1068 = vcmp.gt.f32.partialorder %v999, 0.0
        %vm1069 = vcmp.gt.f32.partialorder %v888, 0.0
        %vm1070 = vcmp.gt.f32.partialorder %v890, 0.0
        %vm1071 = vcmp.gt.f32.partialorder %v1001, 0.0
        %vm1072 = vcmp.gt.f32.partialorder %v1003, 0.0
        %vm1073 = vcmp.gt.f32.partialorder %v894, 0.0
        %vm1074 = vcmp.gt.f32.partialorder %v896, 0.0
        %vm1075 = vcmp.gt.f32.partialorder %v1007, 0.0
        %vm1076 = vcmp.gt.f32.partialorder %v1009, 0.0
        %vm1077 = vcmp.gt.f32.partialorder %v898, 0.0
        %vm1078 = vcmp.gt.f32.partialorder %v900, 0.0
        %vm1079 = vcmp.gt.f32.partialorder %v1011, 0.0
        %vm1080 = vcmp.gt.f32.partialorder %v1013, 0.0
        %vm1081 = vcmp.gt.f32.partialorder %v904, 0.0
        %vm1082 = vcmp.gt.f32.partialorder %v906, 0.0
        %vm1083 = vcmp.gt.f32.partialorder %v1017, 0.0
        %vm1084 = vcmp.gt.f32.partialorder %v1019, 0.0
        %vm1085 = vcmp.gt.f32.partialorder %v908, 0.0
        %vm1086 = vcmp.gt.f32.partialorder %v910, 0.0
        %vm1087 = vcmp.gt.f32.partialorder %v1021, 0.0
        %vm1088 = vcmp.gt.f32.partialorder %v1023, 0.0
        %v1089 = vmul.f32 %v834, 0.2
        %v1090 = vmul.f32 %v836, 0.2
        %v1091 = vmul.f32 %v947, 0.2
        %v1092 = vmul.f32 %v949, 0.2
        %v1093 = vmul.f32 %v838, 0.2
        %v1094 = vmul.f32 %v840, 0.2
        %v1095 = vmul.f32 %v951, 0.2
        %v1096 = vmul.f32 %v953, 0.2
        %v1097 = vmul.f32 %v844, 0.2
        %v1098 = vmul.f32 %v846, 0.2
        %v1099 = vmul.f32 %v957, 0.2
        %v1100 = vmul.f32 %v959, 0.2
        %v1101 = vmul.f32 %v848, 0.2
        %v1102 = vmul.f32 %v850, 0.2
        %v1103 = vmul.f32 %v961, 0.2
        %v1104 = vmul.f32 %v963, 0.2
        %v1105 = vmul.f32 %v854, 0.2
        %v1106 = vmul.f32 %v856, 0.2
        %v1107 = vmul.f32 %v967, 0.2
        %v1108 = vmul.f32 %v969, 0.2
        %v1109 = vmul.f32 %v858, 0.2
        %v1110 = vmul.f32 %v860, 0.2
        %v1111 = vmul.f32 %v971, 0.2
        %v1112 = vmul.f32 %v973, 0.2
        %v1113 = vmul.f32 %v864, 0.2
        %v1114 = vmul.f32 %v866, 0.2
        %v1115 = vmul.f32 %v977, 0.2
        %v1116 = vmul.f32 %v979, 0.2
        %v1117 = vmul.f32 %v868, 0.2
        %v1118 = vmul.f32 %v870, 0.2
        %v1119 = vmul.f32 %v981, 0.2
        %v1120 = vmul.f32 %v983, 0.2
        %v1121 = vmul.f32 %v874, 0.2
        %v1122 = vmul.f32 %v876, 0.2
        %v1123 = vmul.f32 %v987, 0.2
        %v1124 = vmul.f32 %v989, 0.2
        %v1125 = vmul.f32 %v878, 0.2
        %v1126 = vmul.f32 %v880, 0.2
        %v1127 = vmul.f32 %v991, 0.2
        %v1128 = vmul.f32 %v993, 0.2
        %v1129 = vmul.f32 %v884, 0.2
        %v1130 = vmul.f32 %v886, 0.2
        %v1131 = vmul.f32 %v997, 0.2
        %v1132 = vmul.f32 %v999, 0.2
        %v1133 = vmul.f32 %v888, 0.2
        %v1134 = vmul.f32 %v890, 0.2
        %v1135 = vmul.f32 %v1001, 0.2
        %v1136 = vmul.f32 %v1003, 0.2
        %v1137 = vmul.f32 %v894, 0.2
        %v1138 = vmul.f32 %v896, 0.2
        %v1139 = vmul.f32 %v1007, 0.2
        %v1140 = vmul.f32 %v1009, 0.2
        %v1141 = vmul.f32 %v898, 0.2
        %v1142 = vmul.f32 %v900, 0.2
        %v1143 = vmul.f32 %v1011, 0.2
        %v1144 = vmul.f32 %v1013, 0.2
        %v1145 = vmul.f32 %v904, 0.2
        %v1146 = vmul.f32 %v906, 0.2
        %v1147 = vmul.f32 %v1017, 0.2
        %v1148 = vmul.f32 %v1019, 0.2
        %v1149 = vmul.f32 %v908, 0.2
        %v1150 = vmul.f32 %v910, 0.2
        %v1151 = vmul.f32 %v1021, 0.2
        %v1152 = vmul.f32 %v1023, 0.2
        %v1153 = vsel %vm1025, %v834, %v1089
        %v1154 = vsel %vm1026, %v836, %v1090
        %v1155 = vsel %vm1027, %v947, %v1091
        %v1156 = vsel %vm1028, %v949, %v1092
        %v1157 = vsel %vm1029, %v838, %v1093
        %v1158 = vsel %vm1030, %v840, %v1094
        %v1159 = vsel %vm1031, %v951, %v1095
        %v1160 = vsel %vm1032, %v953, %v1096
        %v1161 = vsel %vm1033, %v844, %v1097
        %v1162 = vsel %vm1034, %v846, %v1098
        %v1163 = vsel %vm1035, %v957, %v1099
        %v1164 = vsel %vm1036, %v959, %v1100
        %v1165 = vsel %vm1037, %v848, %v1101
        %v1166 = vsel %vm1038, %v850, %v1102
        %v1167 = vsel %vm1039, %v961, %v1103
        %v1168 = vsel %vm1040, %v963, %v1104
        %v1169 = vsel %vm1041, %v854, %v1105
        %v1170 = vsel %vm1042, %v856, %v1106
        %v1171 = vsel %vm1043, %v967, %v1107
        %v1172 = vsel %vm1044, %v969, %v1108
        %v1173 = vsel %vm1045, %v858, %v1109
        %v1174 = vsel %vm1046, %v860, %v1110
        %v1175 = vsel %vm1047, %v971, %v1111
        %v1176 = vsel %vm1048, %v973, %v1112
        %v1177 = vsel %vm1049, %v864, %v1113
        %v1178 = vsel %vm1050, %v866, %v1114
        %v1179 = vsel %vm1051, %v977, %v1115
        %v1180 = vsel %vm1052, %v979, %v1116
        %v1181 = vsel %vm1053, %v868, %v1117
        %v1182 = vsel %vm1054, %v870, %v1118
        %v1183 = vsel %vm1055, %v981, %v1119
        %v1184 = vsel %vm1056, %v983, %v1120
        %v1185 = vsel %vm1057, %v874, %v1121
        %v1186 = vsel %vm1058, %v876, %v1122
        %v1187 = vsel %vm1059, %v987, %v1123
        %v1188 = vsel %vm1060, %v989, %v1124
        %v1189 = vsel %vm1061, %v878, %v1125
        %v1190 = vsel %vm1062, %v880, %v1126
        %v1191 = vsel %vm1063, %v991, %v1127
        %v1192 = vsel %vm1064, %v993, %v1128
        %v1193 = vsel %vm1065, %v884, %v1129
        %v1194 = vsel %vm1066, %v886, %v1130
        %v1195 = vsel %vm1067, %v997, %v1131
        %v1196 = vsel %vm1068, %v999, %v1132
        %v1197 = vsel %vm1069, %v888, %v1133
        %v1198 = vsel %vm1070, %v890, %v1134
        %v1199 = vsel %vm1071, %v1001, %v1135
        %v1200 = vsel %vm1072, %v1003, %v1136
        %v1201 = vsel %vm1073, %v894, %v1137
        %v1202 = vsel %vm1074, %v896, %v1138
        %v1203 = vsel %vm1075, %v1007, %v1139
        %v1204 = vsel %vm1076, %v1009, %v1140
        %v1205 = vsel %vm1077, %v898, %v1141
        %v1206 = vsel %vm1078, %v900, %v1142
        %v1207 = vsel %vm1079, %v1011, %v1143
        %v1208 = vsel %vm1080, %v1013, %v1144
        %v1209 = vsel %vm1081, %v904, %v1145
        %v1210 = vsel %vm1082, %v906, %v1146
        %v1211 = vsel %vm1083, %v1017, %v1147
        %v1212 = vsel %vm1084, %v1019, %v1148
        %v1213 = vsel %vm1085, %v908, %v1149
        %v1214 = vsel %vm1086, %v910, %v1150
        %v1215 = vsel %vm1087, %v1021, %v1151
        %v1216 = vsel %vm1088, %v1023, %v1152
        %v1217 = vpack.c.bf16 %v1157, %v1153
        %v1218 = vpack.c.bf16 %v1158, %v1154
        %v1219 = vpack.c.bf16 %v1159, %v1155
        %v1220 = vpack.c.bf16 %v1160, %v1156
        %v1221 = vpack.c.bf16 %v1165, %v1161
        %v1222 = vpack.c.bf16 %v1166, %v1162
        %v1223 = vpack.c.bf16 %v1167, %v1163
        %v1224 = vpack.c.bf16 %v1168, %v1164
        %v1225 = vpack.c.bf16 %v1173, %v1169
        %v1226 = vpack.c.bf16 %v1174, %v1170
        %v1227 = vpack.c.bf16 %v1175, %v1171
        %v1228 = vpack.c.bf16 %v1176, %v1172
        %v1229 = vpack.c.bf16 %v1181, %v1177
        %v1230 = vpack.c.bf16 %v1182, %v1178
        %v1231 = vpack.c.bf16 %v1183, %v1179
        %v1232 = vpack.c.bf16 %v1184, %v1180
        %v1233 = vpack.c.bf16 %v1189, %v1185
        %v1234 = vpack.c.bf16 %v1190, %v1186
        %v1235 = vpack.c.bf16 %v1191, %v1187
        %v1236 = vpack.c.bf16 %v1192, %v1188
        %v1237 = vpack.c.bf16 %v1197, %v1193
        %v1238 = vpack.c.bf16 %v1198, %v1194
        %v1239 = vpack.c.bf16 %v1199, %v1195
        %v1240 = vpack.c.bf16 %v1200, %v1196
        %v1241 = vpack.c.bf16 %v1205, %v1201
        %v1242 = vpack.c.bf16 %v1206, %v1202
        %v1243 = vpack.c.bf16 %v1207, %v1203
        %v1244 = vpack.c.bf16 %v1208, %v1204
        %v1245 = vpack.c.bf16 %v1213, %v1209
        %v1246 = vpack.c.bf16 %v1214, %v1210
        %v1247 = vpack.c.bf16 %v1215, %v1211
        %v1248 = vpack.c.bf16 %v1216, %v1212
        %v1249 = vld [vmem:[#allocation7] sm:$0xff]
        %v1250 = vld [vmem:[#allocation7 + $0x8] sm:$0xff]
        %v1251 = vld [vmem:[#allocation7 + $0x10] sm:$0xff]
        %v1252 = vld [vmem:[#allocation7 + $0x18] sm:$0xff]
        %v1253 = vld [vmem:[#allocation7 + $0x20] sm:$0xff]
        %v1254 = vld [vmem:[#allocation7 + $0x28] sm:$0xff]
        %v1255 = vld [vmem:[#allocation7 + $0x30] sm:$0xff]
        %v1256 = vld [vmem:[#allocation7 + $0x38] sm:$0xff]
        %v1257 = vld [vmem:[#allocation7 + $0x40] sm:$0xff]
        %v1258 = vld [vmem:[#allocation7 + $0x48] sm:$0xff]
        %v1259 = vld [vmem:[#allocation7 + $0x50] sm:$0xff]
        %v1260 = vld [vmem:[#allocation7 + $0x58] sm:$0xff]
        %v1261 = vld [vmem:[#allocation7 + $0x60] sm:$0xff]
        %v1262 = vld [vmem:[#allocation7 + $0x68] sm:$0xff]
        %v1263 = vld [vmem:[#allocation7 + $0x70] sm:$0xff]
        %v1264 = vld [vmem:[#allocation7 + $0x78] sm:$0xff]
        %v1265 = vld [vmem:[#allocation7 + $0x80] sm:$0xff]
        %v1266 = vld [vmem:[#allocation7 + $0x88] sm:$0xff]
        %v1267 = vld [vmem:[#allocation7 + $0x90] sm:$0xff]
        %v1268 = vld [vmem:[#allocation7 + $0x98] sm:$0xff]
        %v1269 = vld [vmem:[#allocation7 + $0xa0] sm:$0xff]
        %v1270 = vld [vmem:[#allocation7 + $0xa8] sm:$0xff]
        %v1271 = vld [vmem:[#allocation7 + $0xb0] sm:$0xff]
        %v1272 = vld [vmem:[#allocation7 + $0xb8] sm:$0xff]
        %v1273 = vld [vmem:[#allocation7 + $0xc0] sm:$0xff]
        %v1274 = vld [vmem:[#allocation7 + $0xc8] sm:$0xff]
        %v1275 = vld [vmem:[#allocation7 + $0xd0] sm:$0xff]
        %v1276 = vld [vmem:[#allocation7 + $0xd8] sm:$0xff]
        %v1277 = vld [vmem:[#allocation7 + $0xe0] sm:$0xff]
        %v1278 = vld [vmem:[#allocation7 + $0xe8] sm:$0xff]
        %v1279 = vld [vmem:[#allocation7 + $0xf0] sm:$0xff]
        %v1280 = vld [vmem:[#allocation7 + $0xf8] sm:$0xff]
        %v1281 = vld [vmem:[#allocation7 + $0x100] sm:$0xff]
        %v1282 = vld [vmem:[#allocation7 + $0x108] sm:$0xff]
        %v1283 = vld [vmem:[#allocation7 + $0x110] sm:$0xff]
        %v1284 = vld [vmem:[#allocation7 + $0x118] sm:$0xff]
        %v1285 = vld [vmem:[#allocation7 + $0x120] sm:$0xff]
        %v1286 = vld [vmem:[#allocation7 + $0x128] sm:$0xff]
        %v1287 = vld [vmem:[#allocation7 + $0x130] sm:$0xff]
        %v1288 = vld [vmem:[#allocation7 + $0x138] sm:$0xff]
        %v1289 = vld [vmem:[#allocation7 + $0x140] sm:$0xff]
        %v1290 = vld [vmem:[#allocation7 + $0x148] sm:$0xff]
        %v1291 = vld [vmem:[#allocation7 + $0x150] sm:$0xff]
        %v1292 = vld [vmem:[#allocation7 + $0x158] sm:$0xff]
        %v1293 = vld [vmem:[#allocation7 + $0x160] sm:$0xff]
        %v1294 = vld [vmem:[#allocation7 + $0x168] sm:$0xff]
        %v1295 = vld [vmem:[#allocation7 + $0x170] sm:$0xff]
        %v1296 = vld [vmem:[#allocation7 + $0x178] sm:$0xff]
        %v1297 = vld [vmem:[#allocation7 + $0x180] sm:$0xff]
        %v1298 = vld [vmem:[#allocation7 + $0x188] sm:$0xff]
        %v1299 = vld [vmem:[#allocation7 + $0x190] sm:$0xff]
        %v1300 = vld [vmem:[#allocation7 + $0x198] sm:$0xff]
        %v1301 = vld [vmem:[#allocation7 + $0x1a0] sm:$0xff]
        %v1302 = vld [vmem:[#allocation7 + $0x1a8] sm:$0xff]
        %v1303 = vld [vmem:[#allocation7 + $0x1b0] sm:$0xff]
        %v1304 = vld [vmem:[#allocation7 + $0x1b8] sm:$0xff]
        %v1305 = vld [vmem:[#allocation7 + $0x1c0] sm:$0xff]
        %v1306 = vld [vmem:[#allocation7 + $0x1c8] sm:$0xff]
        %v1307 = vld [vmem:[#allocation7 + $0x1d0] sm:$0xff]
        %v1308 = vld [vmem:[#allocation7 + $0x1d8] sm:$0xff]
        %v1309 = vld [vmem:[#allocation7 + $0x1e0] sm:$0xff]
        %v1310 = vld [vmem:[#allocation7 + $0x1e8] sm:$0xff]
        %v1311 = vld [vmem:[#allocation7 + $0x1f0] sm:$0xff]
        %v1312 = vld [vmem:[#allocation7 + $0x1f8] sm:$0xff]
        %v1313 = vld [vmem:[%s4] sm:$0x3]
        %v1315 = vlaneseq
        %v1316 = vshrl.u32 %v1315, 7
        %v1317 = vsub.s32 0, %v1316
        %v1318 = vrot.slane %v1313, %v1317
        %v1319 = vlaneseq
        %v1320 = vshrl.u32 %v1319, 7
        %v1321 = vsub.s32 1, %v1320
        %v1322 = vrot.slane %v1313, %v1321
        %v1389 = vunpack.c.l.b16 %v1249
        %v1390 = vunpack.c.h.b16 %v1249
        %v1391 = vunpack.c.l.b16 %v1250
        %v1392 = vunpack.c.h.b16 %v1250
        %v1393 = vunpack.c.l.b16 %v1251
        %v1394 = vunpack.c.h.b16 %v1251
        %v1395 = vunpack.c.l.b16 %v1252
        %v1396 = vunpack.c.h.b16 %v1252
        %v1397 = vunpack.c.l.b16 %v1253
        %v1398 = vunpack.c.h.b16 %v1253
        %v1399 = vunpack.c.l.b16 %v1254
        %v1400 = vunpack.c.h.b16 %v1254
        %v1401 = vunpack.c.l.b16 %v1255
        %v1402 = vunpack.c.h.b16 %v1255
        %v1403 = vunpack.c.l.b16 %v1256
        %v1404 = vunpack.c.h.b16 %v1256
        %v1405 = vunpack.c.l.b16 %v1257
        %v1406 = vunpack.c.h.b16 %v1257
        %v1407 = vunpack.c.l.b16 %v1258
        %v1408 = vunpack.c.h.b16 %v1258
        %v1409 = vunpack.c.l.b16 %v1259
        %v1410 = vunpack.c.h.b16 %v1259
        %v1411 = vunpack.c.l.b16 %v1260
        %v1412 = vunpack.c.h.b16 %v1260
        %v1413 = vunpack.c.l.b16 %v1261
        %v1414 = vunpack.c.h.b16 %v1261
        %v1415 = vunpack.c.l.b16 %v1262
        %v1416 = vunpack.c.h.b16 %v1262
        %v1417 = vunpack.c.l.b16 %v1263
        %v1418 = vunpack.c.h.b16 %v1263
        %v1419 = vunpack.c.l.b16 %v1264
        %v1420 = vunpack.c.h.b16 %v1264
        %v1421 = vunpack.c.l.b16 %v1265
        %v1422 = vunpack.c.h.b16 %v1265
        %v1423 = vunpack.c.l.b16 %v1266
        %v1424 = vunpack.c.h.b16 %v1266
        %v1425 = vunpack.c.l.b16 %v1267
        %v1426 = vunpack.c.h.b16 %v1267
        %v1427 = vunpack.c.l.b16 %v1268
        %v1428 = vunpack.c.h.b16 %v1268
        %v1429 = vunpack.c.l.b16 %v1269
        %v1430 = vunpack.c.h.b16 %v1269
        %v1431 = vunpack.c.l.b16 %v1270
        %v1432 = vunpack.c.h.b16 %v1270
        %v1433 = vunpack.c.l.b16 %v1271
        %v1434 = vunpack.c.h.b16 %v1271
        %v1435 = vunpack.c.l.b16 %v1272
        %v1436 = vunpack.c.h.b16 %v1272
        %v1437 = vunpack.c.l.b16 %v1273
        %v1438 = vunpack.c.h.b16 %v1273
        %v1439 = vunpack.c.l.b16 %v1274
        %v1440 = vunpack.c.h.b16 %v1274
        %v1441 = vunpack.c.l.b16 %v1275
        %v1442 = vunpack.c.h.b16 %v1275
        %v1443 = vunpack.c.l.b16 %v1276
        %v1444 = vunpack.c.h.b16 %v1276
        %v1445 = vunpack.c.l.b16 %v1277
        %v1446 = vunpack.c.h.b16 %v1277
        %v1447 = vunpack.c.l.b16 %v1278
        %v1448 = vunpack.c.h.b16 %v1278
        %v1449 = vunpack.c.l.b16 %v1279
        %v1450 = vunpack.c.h.b16 %v1279
        %v1451 = vunpack.c.l.b16 %v1280
        %v1452 = vunpack.c.h.b16 %v1280
        %v1453 = vunpack.c.l.b16 %v1281
        %v1454 = vunpack.c.h.b16 %v1281
        %v1455 = vunpack.c.l.b16 %v1282
        %v1456 = vunpack.c.h.b16 %v1282
        %v1457 = vunpack.c.l.b16 %v1283
        %v1458 = vunpack.c.h.b16 %v1283
        %v1459 = vunpack.c.l.b16 %v1284
        %v1460 = vunpack.c.h.b16 %v1284
        %v1461 = vunpack.c.l.b16 %v1285
        %v1462 = vunpack.c.h.b16 %v1285
        %v1463 = vunpack.c.l.b16 %v1286
        %v1464 = vunpack.c.h.b16 %v1286
        %v1465 = vunpack.c.l.b16 %v1287
        %v1466 = vunpack.c.h.b16 %v1287
        %v1467 = vunpack.c.l.b16 %v1288
        %v1468 = vunpack.c.h.b16 %v1288
        %v1469 = vunpack.c.l.b16 %v1289
        %v1470 = vunpack.c.h.b16 %v1289
        %v1471 = vunpack.c.l.b16 %v1290
        %v1472 = vunpack.c.h.b16 %v1290
        %v1473 = vunpack.c.l.b16 %v1291
        %v1474 = vunpack.c.h.b16 %v1291
        %v1475 = vunpack.c.l.b16 %v1292
        %v1476 = vunpack.c.h.b16 %v1292
        %v1477 = vunpack.c.l.b16 %v1293
        %v1478 = vunpack.c.h.b16 %v1293
        %v1479 = vunpack.c.l.b16 %v1294
        %v1480 = vunpack.c.h.b16 %v1294
        %v1481 = vunpack.c.l.b16 %v1295
        %v1482 = vunpack.c.h.b16 %v1295
        %v1483 = vunpack.c.l.b16 %v1296
        %v1484 = vunpack.c.h.b16 %v1296
        %v1485 = vunpack.c.l.b16 %v1297
        %v1486 = vunpack.c.h.b16 %v1297
        %v1487 = vunpack.c.l.b16 %v1298
        %v1488 = vunpack.c.h.b16 %v1298
        %v1489 = vunpack.c.l.b16 %v1299
        %v1490 = vunpack.c.h.b16 %v1299
        %v1491 = vunpack.c.l.b16 %v1300
        %v1492 = vunpack.c.h.b16 %v1300
        %v1493 = vunpack.c.l.b16 %v1301
        %v1494 = vunpack.c.h.b16 %v1301
        %v1495 = vunpack.c.l.b16 %v1302
        %v1496 = vunpack.c.h.b16 %v1302
        %v1497 = vunpack.c.l.b16 %v1303
        %v1498 = vunpack.c.h.b16 %v1303
        %v1499 = vunpack.c.l.b16 %v1304
        %v1500 = vunpack.c.h.b16 %v1304
        %v1501 = vunpack.c.l.b16 %v1305
        %v1502 = vunpack.c.h.b16 %v1305
        %v1503 = vunpack.c.l.b16 %v1306
        %v1504 = vunpack.c.h.b16 %v1306
        %v1505 = vunpack.c.l.b16 %v1307
        %v1506 = vunpack.c.h.b16 %v1307
        %v1507 = vunpack.c.l.b16 %v1308
        %v1508 = vunpack.c.h.b16 %v1308
        %v1509 = vunpack.c.l.b16 %v1309
        %v1510 = vunpack.c.h.b16 %v1309
        %v1511 = vunpack.c.l.b16 %v1310
        %v1512 = vunpack.c.h.b16 %v1310
        %v1513 = vunpack.c.l.b16 %v1311
        %v1514 = vunpack.c.h.b16 %v1311
        %v1515 = vunpack.c.l.b16 %v1312
        %v1516 = vunpack.c.h.b16 %v1312
        %v1517 = vpack.c.b16 %v1391, %v1389
        %v1518 = vpack.c.b16 %v1392, %v1390
        %v1519 = vpack.c.b16 %v1395, %v1393
        %v1520 = vpack.c.b16 %v1396, %v1394
        %v1521 = vpack.c.b16 %v1399, %v1397
        %v1522 = vpack.c.b16 %v1400, %v1398
        %v1523 = vpack.c.b16 %v1403, %v1401
        %v1524 = vpack.c.b16 %v1404, %v1402
        %v1525 = vpack.c.b16 %v1407, %v1405
        %v1526 = vpack.c.b16 %v1408, %v1406
        %v1527 = vpack.c.b16 %v1411, %v1409
        %v1528 = vpack.c.b16 %v1412, %v1410
        %v1529 = vpack.c.b16 %v1415, %v1413
        %v1530 = vpack.c.b16 %v1416, %v1414
        %v1531 = vpack.c.b16 %v1419, %v1417
        %v1532 = vpack.c.b16 %v1420, %v1418
        %v1533 = vpack.c.b16 %v1423, %v1421
        %v1534 = vpack.c.b16 %v1424, %v1422
        %v1535 = vpack.c.b16 %v1427, %v1425
        %v1536 = vpack.c.b16 %v1428, %v1426
        %v1537 = vpack.c.b16 %v1431, %v1429
        %v1538 = vpack.c.b16 %v1432, %v1430
        %v1539 = vpack.c.b16 %v1435, %v1433
        %v1540 = vpack.c.b16 %v1436, %v1434
        %v1541 = vpack.c.b16 %v1439, %v1437
        %v1542 = vpack.c.b16 %v1440, %v1438
        %v1543 = vpack.c.b16 %v1443, %v1441
        %v1544 = vpack.c.b16 %v1444, %v1442
        %v1545 = vpack.c.b16 %v1447, %v1445
        %v1546 = vpack.c.b16 %v1448, %v1446
        %v1547 = vpack.c.b16 %v1451, %v1449
        %v1548 = vpack.c.b16 %v1452, %v1450
        %v1549 = vpack.c.b16 %v1455, %v1453
        %v1550 = vpack.c.b16 %v1456, %v1454
        %v1551 = vpack.c.b16 %v1459, %v1457
        %v1552 = vpack.c.b16 %v1460, %v1458
        %v1553 = vpack.c.b16 %v1463, %v1461
        %v1554 = vpack.c.b16 %v1464, %v1462
        %v1555 = vpack.c.b16 %v1467, %v1465
        %v1556 = vpack.c.b16 %v1468, %v1466
        %v1557 = vpack.c.b16 %v1471, %v1469
        %v1558 = vpack.c.b16 %v1472, %v1470
        %v1559 = vpack.c.b16 %v1475, %v1473
        %v1560 = vpack.c.b16 %v1476, %v1474
        %v1561 = vpack.c.b16 %v1479, %v1477
        %v1562 = vpack.c.b16 %v1480, %v1478
        %v1563 = vpack.c.b16 %v1483, %v1481
        %v1564 = vpack.c.b16 %v1484, %v1482
        %v1565 = vpack.c.b16 %v1487, %v1485
        %v1566 = vpack.c.b16 %v1488, %v1486
        %v1567 = vpack.c.b16 %v1491, %v1489
        %v1568 = vpack.c.b16 %v1492, %v1490
        %v1569 = vpack.c.b16 %v1495, %v1493
        %v1570 = vpack.c.b16 %v1496, %v1494
        %v1571 = vpack.c.b16 %v1499, %v1497
        %v1572 = vpack.c.b16 %v1500, %v1498
        %v1573 = vpack.c.b16 %v1503, %v1501
        %v1574 = vpack.c.b16 %v1504, %v1502
        %v1575 = vpack.c.b16 %v1507, %v1505
        %v1576 = vpack.c.b16 %v1508, %v1506
        %v1577 = vpack.c.b16 %v1511, %v1509
        %v1578 = vpack.c.b16 %v1512, %v1510
        %v1579 = vpack.c.b16 %v1515, %v1513
        %v1580 = vpack.c.b16 %v1516, %v1514
        %1645 = vmatprep.subr.bf16.mxu0 %v1518
        %1646 = vmatpush1.bf16.msra.mxu0 %v1517
        %1647 = vmatprep.subr.bf16.mxu0 %v1520
        %1648 = vmatpush1.bf16.msra.mxu0 %v1519
        %1649 = vmatprep.subr.bf16.mxu0 %v1522
        %1650 = vmatpush1.bf16.msra.mxu0 %v1521
        %1651 = vmatprep.subr.bf16.mxu0 %v1524
        %1652 = vmatpush1.bf16.msra.mxu0 %v1523
        %1653 = vmatprep.subr.bf16.mxu0 %v1526
        %1654 = vmatpush1.bf16.msra.mxu0 %v1525
        %1655 = vmatprep.subr.bf16.mxu0 %v1528
        %1656 = vmatpush1.bf16.msra.mxu0 %v1527
        %1657 = vmatprep.subr.bf16.mxu0 %v1530
        %1658 = vmatpush1.bf16.msra.mxu0 %v1529
        %1659 = vmatprep.subr.bf16.mxu0 %v1532
        %1660 = vmatpush1.bf16.msra.mxu0 %v1531
        %1661 = vmatprep.subr.bf16.mxu0 %v1534
        %1662 = vmatpush1.bf16.msra.mxu0 %v1533
        %1663 = vmatprep.subr.bf16.mxu0 %v1536
        %1664 = vmatpush1.bf16.msra.mxu0 %v1535
        %1665 = vmatprep.subr.bf16.mxu0 %v1538
        %1666 = vmatpush1.bf16.msra.mxu0 %v1537
        %1667 = vmatprep.subr.bf16.mxu0 %v1540
        %1668 = vmatpush1.bf16.msra.mxu0 %v1539
        %1669 = vmatprep.subr.bf16.mxu0 %v1542
        %1670 = vmatpush1.bf16.msra.mxu0 %v1541
        %1671 = vmatprep.subr.bf16.mxu0 %v1544
        %1672 = vmatpush1.bf16.msra.mxu0 %v1543
        %1673 = vmatprep.subr.bf16.mxu0 %v1546
        %1674 = vmatpush1.bf16.msra.mxu0 %v1545
        %1675 = vmatprep.subr.bf16.mxu0 %v1548
        %1676 = vmatpush1.bf16.msra.mxu0 %v1547
        %1677 = vmatprep.mubr.bf16.mxu0 %v1218
        %1678 = vmatmul.mubr.bf16.gmra.mrb[0].mxu0 %v1217
        %v1679 = vpop.f32.mrb[0].mxu0
        %v1680 = vadd.f32 %v1318, %v1679
        %v1681 = vpop.f32.mrb[0].mxu0
        %v1682 = vadd.f32 %v1322, %v1681
        %v1683 = vpop.f32.mrb[0].mxu0
        %v1684 = vadd.f32 %v1318, %v1683
        %v1685 = vpop.f32.mrb[0].mxu0
        %v1686 = vadd.f32 %v1322, %v1685
        %1687 = vmatprep.mubr.bf16.mxu0 %v1222
        %1688 = vmatmul.mubr.bf16.gmra.mrb[0].mxu0 %v1221
        %v1689 = vpop.f32.mrb[0].mxu0
        %v1690 = vadd.f32 %v1318, %v1689
        %v1691 = vpop.f32.mrb[0].mxu0
        %v1692 = vadd.f32 %v1322, %v1691
        %v1693 = vpop.f32.mrb[0].mxu0
        %v1694 = vadd.f32 %v1318, %v1693
        %v1695 = vpop.f32.mrb[0].mxu0
        %v1696 = vadd.f32 %v1322, %v1695
        %1697 = vmatprep.mubr.bf16.mxu0 %v1226
        %1698 = vmatmul.mubr.bf16.gmra.mrb[0].mxu0 %v1225
        %v1699 = vpop.f32.mrb[0].mxu0
        %v1700 = vadd.f32 %v1318, %v1699
        %v1701 = vpop.f32.mrb[0].mxu0
        %v1702 = vadd.f32 %v1322, %v1701
        %v1703 = vpop.f32.mrb[0].mxu0
        %v1704 = vadd.f32 %v1318, %v1703
        %v1705 = vpop.f32.mrb[0].mxu0
        %v1706 = vadd.f32 %v1322, %v1705
        %1707 = vmatprep.mubr.bf16.mxu0 %v1230
        %1708 = vmatmul.mubr.bf16.gmra.mrb[0].mxu0 %v1229
        %v1709 = vpop.f32.mrb[0].mxu0
        %v1710 = vadd.f32 %v1318, %v1709
        %v1711 = vpop.f32.mrb[0].mxu0
        %v1712 = vadd.f32 %v1322, %v1711
        %v1713 = vpop.f32.mrb[0].mxu0
        %v1714 = vadd.f32 %v1318, %v1713
        %v1715 = vpop.f32.mrb[0].mxu0
        %v1716 = vadd.f32 %v1322, %v1715
        %1717 = vmatprep.mubr.bf16.mxu0 %v1234
        %1718 = vmatmul.mubr.bf16.gmra.mrb[0].mxu0 %v1233
        %v1719 = vpop.f32.mrb[0].mxu0
        %v1720 = vadd.f32 %v1318, %v1719
        %v1721 = vpop.f32.mrb[0].mxu0
        %v1722 = vadd.f32 %v1322, %v1721
        %v1723 = vpop.f32.mrb[0].mxu0
        %v1724 = vadd.f32 %v1318, %v1723
        %v1725 = vpop.f32.mrb[0].mxu0
        %v1726 = vadd.f32 %v1322, %v1725
        %1727 = vmatprep.mubr.bf16.mxu0 %v1238
        %1728 = vmatmul.mubr.bf16.gmra.mrb[0].mxu0 %v1237
        %v1729 = vpop.f32.mrb[0].mxu0
        %v1730 = vadd.f32 %v1318, %v1729
        %v1731 = vpop.f32.mrb[0].mxu0
        %v1732 = vadd.f32 %v1322, %v1731
        %v1733 = vpop.f32.mrb[0].mxu0
        %v1734 = vadd.f32 %v1318, %v1733
        %v1735 = vpop.f32.mrb[0].mxu0
        %v1736 = vadd.f32 %v1322, %v1735
        %1737 = vmatprep.mubr.bf16.mxu0 %v1242
        %1738 = vmatmul.mubr.bf16.gmra.mrb[0].mxu0 %v1241
        %v1739 = vpop.f32.mrb[0].mxu0
        %v1740 = vadd.f32 %v1318, %v1739
        %v1741 = vpop.f32.mrb[0].mxu0
        %v1742 = vadd.f32 %v1322, %v1741
        %v1743 = vpop.f32.mrb[0].mxu0
        %v1744 = vadd.f32 %v1318, %v1743
        %v1745 = vpop.f32.mrb[0].mxu0
        %v1746 = vadd.f32 %v1322, %v1745
        %1747 = vmatprep.mubr.bf16.mxu0 %v1246
        %1748 = vmatmul.mubr.bf16.gmra.mrb[0].mxu0 %v1245
        %v1749 = vpop.f32.mrb[0].mxu0
        %v1750 = vadd.f32 %v1318, %v1749
        %v1751 = vpop.f32.mrb[0].mxu0
        %v1752 = vadd.f32 %v1322, %v1751
        %v1753 = vpop.f32.mrb[0].mxu0
        %v1754 = vadd.f32 %v1318, %v1753
        %v1755 = vpop.f32.mrb[0].mxu0
        %v1756 = vadd.f32 %v1322, %v1755
        %1757 = vdwg.mxu0
        %1758 = vmatprep.subr.bf16.mxu0 %v1550
        %1759 = vmatpush1.bf16.msra.mxu0 %v1549
        %1760 = vmatprep.subr.bf16.mxu0 %v1552
        %1761 = vmatpush1.bf16.msra.mxu0 %v1551
        %1762 = vmatprep.subr.bf16.mxu0 %v1554
        %1763 = vmatpush1.bf16.msra.mxu0 %v1553
        %1764 = vmatprep.subr.bf16.mxu0 %v1556
        %1765 = vmatpush1.bf16.msra.mxu0 %v1555
        %1766 = vmatprep.subr.bf16.mxu0 %v1558
        %1767 = vmatpush1.bf16.msra.mxu0 %v1557
        %1768 = vmatprep.subr.bf16.mxu0 %v1560
        %1769 = vmatpush1.bf16.msra.mxu0 %v1559
        %1770 = vmatprep.subr.bf16.mxu0 %v1562
        %1771 = vmatpush1.bf16.msra.mxu0 %v1561
        %1772 = vmatprep.subr.bf16.mxu0 %v1564
        %1773 = vmatpush1.bf16.msra.mxu0 %v1563
        %1774 = vmatprep.subr.bf16.mxu0 %v1566
        %1775 = vmatpush1.bf16.msra.mxu0 %v1565
        %1776 = vmatprep.subr.bf16.mxu0 %v1568
        %1777 = vmatpush1.bf16.msra.mxu0 %v1567
        %1778 = vmatprep.subr.bf16.mxu0 %v1570
        %1779 = vmatpush1.bf16.msra.mxu0 %v1569
        %1780 = vmatprep.subr.bf16.mxu0 %v1572
        %1781 = vmatpush1.bf16.msra.mxu0 %v1571
        %1782 = vmatprep.subr.bf16.mxu0 %v1574
        %1783 = vmatpush1.bf16.msra.mxu0 %v1573
        %1784 = vmatprep.subr.bf16.mxu0 %v1576
        %1785 = vmatpush1.bf16.msra.mxu0 %v1575
        %1786 = vmatprep.subr.bf16.mxu0 %v1578
        %1787 = vmatpush1.bf16.msra.mxu0 %v1577
        %1788 = vmatprep.subr.bf16.mxu0 %v1580
        %1789 = vmatpush1.bf16.msra.mxu0 %v1579
        %1790 = vmatprep.mubr.bf16.mxu0 %v1220
        %1791 = vmatmul.mubr.bf16.gmra.mrb[0].mxu0 %v1219
        %v1792 = vpop.f32.mrb[0].mxu0
        %v1793 = vadd.f32 %v1680, %v1792
        %v1794 = vpop.f32.mrb[0].mxu0
        %v1795 = vadd.f32 %v1682, %v1794
        %v1796 = vpop.f32.mrb[0].mxu0
        %v1797 = vadd.f32 %v1684, %v1796
        %v1798 = vpop.f32.mrb[0].mxu0
        %v1799 = vadd.f32 %v1686, %v1798
        %1800 = vmatprep.mubr.bf16.mxu0 %v1224
        %1801 = vmatmul.mubr.bf16.gmra.mrb[0].mxu0 %v1223
        %v1802 = vpop.f32.mrb[0].mxu0
        %v1803 = vadd.f32 %v1690, %v1802
        %v1804 = vpop.f32.mrb[0].mxu0
        %v1805 = vadd.f32 %v1692, %v1804
        %v1806 = vpop.f32.mrb[0].mxu0
        %v1807 = vadd.f32 %v1694, %v1806
        %v1808 = vpop.f32.mrb[0].mxu0
        %v1809 = vadd.f32 %v1696, %v1808
        %1810 = vmatprep.mubr.bf16.mxu0 %v1228
        %1811 = vmatmul.mubr.bf16.gmra.mrb[0].mxu0 %v1227
        %v1812 = vpop.f32.mrb[0].mxu0
        %v1813 = vadd.f32 %v1700, %v1812
        %v1814 = vpop.f32.mrb[0].mxu0
        %v1815 = vadd.f32 %v1702, %v1814
        %v1816 = vpop.f32.mrb[0].mxu0
        %v1817 = vadd.f32 %v1704, %v1816
        %v1818 = vpop.f32.mrb[0].mxu0
        %v1819 = vadd.f32 %v1706, %v1818
        %1820 = vmatprep.mubr.bf16.mxu0 %v1232
        %1821 = vmatmul.mubr.bf16.gmra.mrb[0].mxu0 %v1231
        %v1822 = vpop.f32.mrb[0].mxu0
        %v1823 = vadd.f32 %v1710, %v1822
        %v1824 = vpop.f32.mrb[0].mxu0
        %v1825 = vadd.f32 %v1712, %v1824
        %v1826 = vpop.f32.mrb[0].mxu0
        %v1827 = vadd.f32 %v1714, %v1826
        %v1828 = vpop.f32.mrb[0].mxu0
        %v1829 = vadd.f32 %v1716, %v1828
        %1830 = vmatprep.mubr.bf16.mxu0 %v1236
        %1831 = vmatmul.mubr.bf16.gmra.mrb[0].mxu0 %v1235
        %v1832 = vpop.f32.mrb[0].mxu0
        %v1833 = vadd.f32 %v1720, %v1832
        %v1834 = vpop.f32.mrb[0].mxu0
        %v1835 = vadd.f32 %v1722, %v1834
        %v1836 = vpop.f32.mrb[0].mxu0
        %v1837 = vadd.f32 %v1724, %v1836
        %v1838 = vpop.f32.mrb[0].mxu0
        %v1839 = vadd.f32 %v1726, %v1838
        %1840 = vmatprep.mubr.bf16.mxu0 %v1240
        %1841 = vmatmul.mubr.bf16.gmra.mrb[0].mxu0 %v1239
        %v1842 = vpop.f32.mrb[0].mxu0
        %v1843 = vadd.f32 %v1730, %v1842
        %v1844 = vpop.f32.mrb[0].mxu0
        %v1845 = vadd.f32 %v1732, %v1844
        %v1846 = vpop.f32.mrb[0].mxu0
        %v1847 = vadd.f32 %v1734, %v1846
        %v1848 = vpop.f32.mrb[0].mxu0
        %v1849 = vadd.f32 %v1736, %v1848
        %1850 = vmatprep.mubr.bf16.mxu0 %v1244
        %1851 = vmatmul.mubr.bf16.gmra.mrb[0].mxu0 %v1243
        %v1852 = vpop.f32.mrb[0].mxu0
        %v1853 = vadd.f32 %v1740, %v1852
        %v1854 = vpop.f32.mrb[0].mxu0
        %v1855 = vadd.f32 %v1742, %v1854
        %v1856 = vpop.f32.mrb[0].mxu0
        %v1857 = vadd.f32 %v1744, %v1856
        %v1858 = vpop.f32.mrb[0].mxu0
        %v1859 = vadd.f32 %v1746, %v1858
        %1860 = vmatprep.mubr.bf16.mxu0 %v1248
        %1861 = vmatmul.mubr.bf16.gmra.mrb[0].mxu0 %v1247
        %v1862 = vpop.f32.mrb[0].mxu0
        %v1863 = vadd.f32 %v1750, %v1862
        %v1864 = vpop.f32.mrb[0].mxu0
        %v1865 = vadd.f32 %v1752, %v1864
        %v1866 = vpop.f32.mrb[0].mxu0
        %v1867 = vadd.f32 %v1754, %v1866
        %v1868 = vpop.f32.mrb[0].mxu0
        %v1869 = vadd.f32 %v1756, %v1868
        %1870 = vdwg.mxu0
        %vm1871 = vcmp.gt.f32.partialorder %v1793, 0.0
        %vm1872 = vcmp.gt.f32.partialorder %v1795, 0.0
        %vm1873 = vcmp.gt.f32.partialorder %v1797, 0.0
        %vm1874 = vcmp.gt.f32.partialorder %v1799, 0.0
        %vm1875 = vcmp.gt.f32.partialorder %v1803, 0.0
        %vm1876 = vcmp.gt.f32.partialorder %v1805, 0.0
        %vm1877 = vcmp.gt.f32.partialorder %v1807, 0.0
        %vm1878 = vcmp.gt.f32.partialorder %v1809, 0.0
        %vm1879 = vcmp.gt.f32.partialorder %v1813, 0.0
        %vm1880 = vcmp.gt.f32.partialorder %v1815, 0.0
        %vm1881 = vcmp.gt.f32.partialorder %v1817, 0.0
        %vm1882 = vcmp.gt.f32.partialorder %v1819, 0.0
        %vm1883 = vcmp.gt.f32.partialorder %v1823, 0.0
        %vm1884 = vcmp.gt.f32.partialorder %v1825, 0.0
        %vm1885 = vcmp.gt.f32.partialorder %v1827, 0.0
        %vm1886 = vcmp.gt.f32.partialorder %v1829, 0.0
        %vm1887 = vcmp.gt.f32.partialorder %v1833, 0.0
        %vm1888 = vcmp.gt.f32.partialorder %v1835, 0.0
        %vm1889 = vcmp.gt.f32.partialorder %v1837, 0.0
        %vm1890 = vcmp.gt.f32.partialorder %v1839, 0.0
        %vm1891 = vcmp.gt.f32.partialorder %v1843, 0.0
        %vm1892 = vcmp.gt.f32.partialorder %v1845, 0.0
        %vm1893 = vcmp.gt.f32.partialorder %v1847, 0.0
        %vm1894 = vcmp.gt.f32.partialorder %v1849, 0.0
        %vm1895 = vcmp.gt.f32.partialorder %v1853, 0.0
        %vm1896 = vcmp.gt.f32.partialorder %v1855, 0.0
        %vm1897 = vcmp.gt.f32.partialorder %v1857, 0.0
        %vm1898 = vcmp.gt.f32.partialorder %v1859, 0.0
        %vm1899 = vcmp.gt.f32.partialorder %v1863, 0.0
        %vm1900 = vcmp.gt.f32.partialorder %v1865, 0.0
        %vm1901 = vcmp.gt.f32.partialorder %v1867, 0.0
        %vm1902 = vcmp.gt.f32.partialorder %v1869, 0.0
        %v1903 = vmul.f32 %v1793, 0.2
        %v1904 = vmul.f32 %v1795, 0.2
        %v1905 = vmul.f32 %v1797, 0.2
        %v1906 = vmul.f32 %v1799, 0.2
        %v1907 = vmul.f32 %v1803, 0.2
        %v1908 = vmul.f32 %v1805, 0.2
        %v1909 = vmul.f32 %v1807, 0.2
        %v1910 = vmul.f32 %v1809, 0.2
        %v1911 = vmul.f32 %v1813, 0.2
        %v1912 = vmul.f32 %v1815, 0.2
        %v1913 = vmul.f32 %v1817, 0.2
        %v1914 = vmul.f32 %v1819, 0.2
        %v1915 = vmul.f32 %v1823, 0.2
        %v1916 = vmul.f32 %v1825, 0.2
        %v1917 = vmul.f32 %v1827, 0.2
        %v1918 = vmul.f32 %v1829, 0.2
        %v1919 = vmul.f32 %v1833, 0.2
        %v1920 = vmul.f32 %v1835, 0.2
        %v1921 = vmul.f32 %v1837, 0.2
        %v1922 = vmul.f32 %v1839, 0.2
        %v1923 = vmul.f32 %v1843, 0.2
        %v1924 = vmul.f32 %v1845, 0.2
        %v1925 = vmul.f32 %v1847, 0.2
        %v1926 = vmul.f32 %v1849, 0.2
        %v1927 = vmul.f32 %v1853, 0.2
        %v1928 = vmul.f32 %v1855, 0.2
        %v1929 = vmul.f32 %v1857, 0.2
        %v1930 = vmul.f32 %v1859, 0.2
        %v1931 = vmul.f32 %v1863, 0.2
        %v1932 = vmul.f32 %v1865, 0.2
        %v1933 = vmul.f32 %v1867, 0.2
        %v1934 = vmul.f32 %v1869, 0.2
        %v1935 = vsel %vm1871, %v1793, %v1903
        %v1936 = vsel %vm1872, %v1795, %v1904
        %v1937 = vsel %vm1873, %v1797, %v1905
        %v1938 = vsel %vm1874, %v1799, %v1906
        %v1939 = vsel %vm1875, %v1803, %v1907
        %v1940 = vsel %vm1876, %v1805, %v1908
        %v1941 = vsel %vm1877, %v1807, %v1909
        %v1942 = vsel %vm1878, %v1809, %v1910
        %v1943 = vsel %vm1879, %v1813, %v1911
        %v1944 = vsel %vm1880, %v1815, %v1912
        %v1945 = vsel %vm1881, %v1817, %v1913
        %v1946 = vsel %vm1882, %v1819, %v1914
        %v1947 = vsel %vm1883, %v1823, %v1915
        %v1948 = vsel %vm1884, %v1825, %v1916
        %v1949 = vsel %vm1885, %v1827, %v1917
        %v1950 = vsel %vm1886, %v1829, %v1918
        %v1951 = vsel %vm1887, %v1833, %v1919
        %v1952 = vsel %vm1888, %v1835, %v1920
        %v1953 = vsel %vm1889, %v1837, %v1921
        %v1954 = vsel %vm1890, %v1839, %v1922
        %v1955 = vsel %vm1891, %v1843, %v1923
        %v1956 = vsel %vm1892, %v1845, %v1924
        %v1957 = vsel %vm1893, %v1847, %v1925
        %v1958 = vsel %vm1894, %v1849, %v1926
        %v1959 = vsel %vm1895, %v1853, %v1927
        %v1960 = vsel %vm1896, %v1855, %v1928
        %v1961 = vsel %vm1897, %v1857, %v1929
        %v1962 = vsel %vm1898, %v1859, %v1930
        %v1963 = vsel %vm1899, %v1863, %v1931
        %v1964 = vsel %vm1900, %v1865, %v1932
        %v1965 = vsel %vm1901, %v1867, %v1933
        %v1966 = vsel %vm1902, %v1869, %v1934
        %v1967 = vpack.c.bf16 %v1937, %v1935
        %v1968 = vpack.c.bf16 %v1938, %v1936
        %v1969 = vpack.c.bf16 %v1941, %v1939
        %v1970 = vpack.c.bf16 %v1942, %v1940
        %v1971 = vpack.c.bf16 %v1945, %v1943
        %v1972 = vpack.c.bf16 %v1946, %v1944
        %v1973 = vpack.c.bf16 %v1949, %v1947
        %v1974 = vpack.c.bf16 %v1950, %v1948
        %v1975 = vpack.c.bf16 %v1953, %v1951
        %v1976 = vpack.c.bf16 %v1954, %v1952
        %v1977 = vpack.c.bf16 %v1957, %v1955
        %v1978 = vpack.c.bf16 %v1958, %v1956
        %v1979 = vpack.c.bf16 %v1961, %v1959
        %v1980 = vpack.c.bf16 %v1962, %v1960
        %v1981 = vpack.c.bf16 %v1965, %v1963
        %v1982 = vpack.c.bf16 %v1966, %v1964
        %v1983 = vld [vmem:[#allocation8] sm:$0xf]
        %v1984 = vld [vmem:[#allocation8 + $0x4] sm:$0xf]
        %v1985 = vld [vmem:[#allocation8 + $0x8] sm:$0xf]
        %v1986 = vld [vmem:[#allocation8 + $0xc] sm:$0xf]
        %v1987 = vld [vmem:[#allocation8 + $0x10] sm:$0xf]
        %v1988 = vld [vmem:[#allocation8 + $0x14] sm:$0xf]
        %v1989 = vld [vmem:[#allocation8 + $0x18] sm:$0xf]
        %v1990 = vld [vmem:[#allocation8 + $0x1c] sm:$0xf]
        %v1991 = vld [vmem:[#allocation8 + $0x20] sm:$0xf]
        %v1992 = vld [vmem:[#allocation8 + $0x24] sm:$0xf]
        %v1993 = vld [vmem:[#allocation8 + $0x28] sm:$0xf]
        %v1994 = vld [vmem:[#allocation8 + $0x2c] sm:$0xf]
        %v1995 = vld [vmem:[#allocation8 + $0x30] sm:$0xf]
        %v1996 = vld [vmem:[#allocation8 + $0x34] sm:$0xf]
        %v1997 = vld [vmem:[#allocation8 + $0x38] sm:$0xf]
        %v1998 = vld [vmem:[#allocation8 + $0x3c] sm:$0xf]
        %v1999 = vld [vmem:[#allocation8 + $0x40] sm:$0xf]
        %v2000 = vld [vmem:[#allocation8 + $0x44] sm:$0xf]
        %v2001 = vld [vmem:[#allocation8 + $0x48] sm:$0xf]
        %v2002 = vld [vmem:[#allocation8 + $0x4c] sm:$0xf]
        %v2003 = vld [vmem:[#allocation8 + $0x50] sm:$0xf]
        %v2004 = vld [vmem:[#allocation8 + $0x54] sm:$0xf]
        %v2005 = vld [vmem:[#allocation8 + $0x58] sm:$0xf]
        %v2006 = vld [vmem:[#allocation8 + $0x5c] sm:$0xf]
        %v2007 = vld [vmem:[#allocation8 + $0x60] sm:$0xf]
        %v2008 = vld [vmem:[#allocation8 + $0x64] sm:$0xf]
        %v2009 = vld [vmem:[#allocation8 + $0x68] sm:$0xf]
        %v2010 = vld [vmem:[#allocation8 + $0x6c] sm:$0xf]
        %v2011 = vld [vmem:[#allocation8 + $0x70] sm:$0xf]
        %v2012 = vld [vmem:[#allocation8 + $0x74] sm:$0xf]
        %v2013 = vld [vmem:[#allocation8 + $0x78] sm:$0xf]
        %v2014 = vld [vmem:[#allocation8 + $0x7c] sm:$0xf]
        %v2015 = vld [vmem:[%s6] sm:$0x1]
        %v2017 = vlaneseq
        %v2018 = vshrl.u32 %v2017, 7
        %v2019 = vsub.s32 0, %v2018
        %v2020 = vrot.slane %v2015, %v2019
        %v2054 = vunpack.c.l.b16 %v1983
        %v2055 = vunpack.c.l.b16 %v1984
        %v2056 = vunpack.c.l.b16 %v1985
        %v2057 = vunpack.c.l.b16 %v1986
        %v2058 = vunpack.c.l.b16 %v1987
        %v2059 = vunpack.c.l.b16 %v1988
        %v2060 = vunpack.c.l.b16 %v1989
        %v2061 = vunpack.c.l.b16 %v1990
        %v2062 = vunpack.c.l.b16 %v1991
        %v2063 = vunpack.c.l.b16 %v1992
        %v2064 = vunpack.c.l.b16 %v1993
        %v2065 = vunpack.c.l.b16 %v1994
        %v2066 = vunpack.c.l.b16 %v1995
        %v2067 = vunpack.c.l.b16 %v1996
        %v2068 = vunpack.c.l.b16 %v1997
        %v2069 = vunpack.c.l.b16 %v1998
        %v2070 = vunpack.c.l.b16 %v1999
        %v2071 = vunpack.c.l.b16 %v2000
        %v2072 = vunpack.c.l.b16 %v2001
        %v2073 = vunpack.c.l.b16 %v2002
        %v2074 = vunpack.c.l.b16 %v2003
        %v2075 = vunpack.c.l.b16 %v2004
        %v2076 = vunpack.c.l.b16 %v2005
        %v2077 = vunpack.c.l.b16 %v2006
        %v2078 = vunpack.c.l.b16 %v2007
        %v2079 = vunpack.c.l.b16 %v2008
        %v2080 = vunpack.c.l.b16 %v2009
        %v2081 = vunpack.c.l.b16 %v2010
        %v2082 = vunpack.c.l.b16 %v2011
        %v2083 = vunpack.c.l.b16 %v2012
        %v2084 = vunpack.c.l.b16 %v2013
        %v2085 = vunpack.c.l.b16 %v2014
        %v2086 = vpack.c.b16 %v2055, %v2054
        %v2087 = vpack.c.b16 %v2057, %v2056
        %v2088 = vpack.c.b16 %v2059, %v2058
        %v2089 = vpack.c.b16 %v2061, %v2060
        %v2090 = vpack.c.b16 %v2063, %v2062
        %v2091 = vpack.c.b16 %v2065, %v2064
        %v2092 = vpack.c.b16 %v2067, %v2066
        %v2093 = vpack.c.b16 %v2069, %v2068
        %v2094 = vpack.c.b16 %v2071, %v2070
        %v2095 = vpack.c.b16 %v2073, %v2072
        %v2096 = vpack.c.b16 %v2075, %v2074
        %v2097 = vpack.c.b16 %v2077, %v2076
        %v2098 = vpack.c.b16 %v2079, %v2078
        %v2099 = vpack.c.b16 %v2081, %v2080
        %v2100 = vpack.c.b16 %v2083, %v2082
        %v2101 = vpack.c.b16 %v2085, %v2084
        %2118 = vmatprep.subr.bf16.mxu0 0
        %2119 = vmatpush1.bf16.msra.mxu0 %v2086
        %2120 = vmatprep.subr.bf16.mxu0 0
        %2121 = vmatpush1.bf16.msra.mxu0 %v2087
        %2122 = vmatprep.subr.bf16.mxu0 0
        %2123 = vmatpush1.bf16.msra.mxu0 %v2088
        %2124 = vmatprep.subr.bf16.mxu0 0
        %2125 = vmatpush1.bf16.msra.mxu0 %v2089
        %2126 = vmatprep.subr.bf16.mxu0 0
        %2127 = vmatpush1.bf16.msra.mxu0 %v2090
        %2128 = vmatprep.subr.bf16.mxu0 0
        %2129 = vmatpush1.bf16.msra.mxu0 %v2091
        %2130 = vmatprep.subr.bf16.mxu0 0
        %2131 = vmatpush1.bf16.msra.mxu0 %v2092
        %2132 = vmatprep.subr.bf16.mxu0 0
        %2133 = vmatpush1.bf16.msra.mxu0 %v2093
        %2134 = vmatprep.subr.bf16.mxu0 0
        %2135 = vmatpush1.bf16.msra.mxu0 %v2094
        %2136 = vmatprep.subr.bf16.mxu0 0
        %2137 = vmatpush1.bf16.msra.mxu0 %v2095
        %2138 = vmatprep.subr.bf16.mxu0 0
        %2139 = vmatpush1.bf16.msra.mxu0 %v2096
        %2140 = vmatprep.subr.bf16.mxu0 0
        %2141 = vmatpush1.bf16.msra.mxu0 %v2097
        %2142 = vmatprep.subr.bf16.mxu0 0
        %2143 = vmatpush1.bf16.msra.mxu0 %v2098
        %2144 = vmatprep.subr.bf16.mxu0 0
        %2145 = vmatpush1.bf16.msra.mxu0 %v2099
        %2146 = vmatprep.subr.bf16.mxu0 0
        %2147 = vmatpush1.bf16.msra.mxu0 %v2100
        %2148 = vmatprep.subr.bf16.mxu0 0
        %2149 = vmatpush1.bf16.msra.mxu0 %v2101
        %2150 = vmatprep.mubr.bf16.mxu0 %v1968
        %2151 = vmatmul.mubr.bf16.gmra.mrb[0].mxu0 %v1967
        %v2152 = vpop.f32.mrb[0].mxu0
        %v2153 = vadd.f32 %v2020, %v2152
        %v2154 = vpop.f32.mrb[0].mxu0
        %v2155 = vpop.f32.mrb[0].mxu0
        %v2156 = vadd.f32 %v2020, %v2155
        %v2157 = vpop.f32.mrb[0].mxu0
        %2158 = vmatprep.mubr.bf16.mxu0 %v1970
        %2159 = vmatmul.mubr.bf16.gmra.mrb[0].mxu0 %v1969
        %v2160 = vpop.f32.mrb[0].mxu0
        %v2161 = vadd.f32 %v2020, %v2160
        %v2162 = vpop.f32.mrb[0].mxu0
        %v2163 = vpop.f32.mrb[0].mxu0
        %v2164 = vadd.f32 %v2020, %v2163
        %v2165 = vpop.f32.mrb[0].mxu0
        %2166 = vmatprep.mubr.bf16.mxu0 %v1972
        %2167 = vmatmul.mubr.bf16.gmra.mrb[0].mxu0 %v1971
        %v2168 = vpop.f32.mrb[0].mxu0
        %v2169 = vadd.f32 %v2020, %v2168
        %v2170 = vpop.f32.mrb[0].mxu0
        %v2171 = vpop.f32.mrb[0].mxu0
        %v2172 = vadd.f32 %v2020, %v2171
        %v2173 = vpop.f32.mrb[0].mxu0
        %2174 = vmatprep.mubr.bf16.mxu0 %v1974
        %2175 = vmatmul.mubr.bf16.gmra.mrb[0].mxu0 %v1973
        %v2176 = vpop.f32.mrb[0].mxu0
        %v2177 = vadd.f32 %v2020, %v2176
        %v2178 = vpop.f32.mrb[0].mxu0
        %v2179 = vpop.f32.mrb[0].mxu0
        %v2180 = vadd.f32 %v2020, %v2179
        %v2181 = vpop.f32.mrb[0].mxu0
        %2182 = vmatprep.mubr.bf16.mxu0 %v1976
        %2183 = vmatmul.mubr.bf16.gmra.mrb[0].mxu0 %v1975
        %v2184 = vpop.f32.mrb[0].mxu0
        %v2185 = vadd.f32 %v2020, %v2184
        %v2186 = vpop.f32.mrb[0].mxu0
        %v2187 = vpop.f32.mrb[0].mxu0
        %v2188 = vadd.f32 %v2020, %v2187
        %v2189 = vpop.f32.mrb[0].mxu0
        %2190 = vmatprep.mubr.bf16.mxu0 %v1978
        %2191 = vmatmul.mubr.bf16.gmra.mrb[0].mxu0 %v1977
        %v2192 = vpop.f32.mrb[0].mxu0
        %v2193 = vadd.f32 %v2020, %v2192
        %v2194 = vpop.f32.mrb[0].mxu0
        %v2195 = vpop.f32.mrb[0].mxu0
        %v2196 = vadd.f32 %v2020, %v2195
        %v2197 = vpop.f32.mrb[0].mxu0
        %2198 = vmatprep.mubr.bf16.mxu0 %v1980
        %2199 = vmatmul.mubr.bf16.gmra.mrb[0].mxu0 %v1979
        %v2200 = vpop.f32.mrb[0].mxu0
        %v2201 = vadd.f32 %v2020, %v2200
        %v2202 = vpop.f32.mrb[0].mxu0
        %v2203 = vpop.f32.mrb[0].mxu0
        %v2204 = vadd.f32 %v2020, %v2203
        %v2205 = vpop.f32.mrb[0].mxu0
        %2206 = vmatprep.mubr.bf16.mxu0 %v1982
        %2207 = vmatmul.mubr.bf16.gmra.mrb[0].mxu0 %v1981
        %v2208 = vpop.f32.mrb[0].mxu0
        %v2209 = vadd.f32 %v2020, %v2208
        %v2210 = vpop.f32.mrb[0].mxu0
        %v2211 = vpop.f32.mrb[0].mxu0
        %v2212 = vadd.f32 %v2020, %v2211
        %v2213 = vpop.f32.mrb[0].mxu0
        %2214 = vdwg.mxu0
        %v2215 = vxor.u32 %v2153, 2147483648
        %v2216 = vxor.u32 %v2156, 2147483648
        %v2217 = vxor.u32 %v2161, 2147483648
        %v2218 = vxor.u32 %v2164, 2147483648
        %v2219 = vxor.u32 %v2169, 2147483648
        %v2220 = vxor.u32 %v2172, 2147483648
        %v2221 = vxor.u32 %v2177, 2147483648
        %v2222 = vxor.u32 %v2180, 2147483648
        %v2223 = vxor.u32 %v2185, 2147483648
        %v2224 = vxor.u32 %v2188, 2147483648
        %v2225 = vxor.u32 %v2193, 2147483648
        %v2226 = vxor.u32 %v2196, 2147483648
        %v2227 = vxor.u32 %v2201, 2147483648
        %v2228 = vxor.u32 %v2204, 2147483648
        %v2229 = vxor.u32 %v2209, 2147483648
        %v2230 = vxor.u32 %v2212, 2147483648
        %v2231 = vmul.f32 %v2215, 1.442695
        %v2232 = vpow.pop %v2231
        %v2233 = vmul.f32 %v2216, 1.442695
        %v2234 = vpow.pop %v2233
        %v2235 = vmul.f32 %v2217, 1.442695
        %v2236 = vpow.pop %v2235
        %v2237 = vmul.f32 %v2218, 1.442695
        %v2238 = vpow.pop %v2237
        %v2239 = vmul.f32 %v2219, 1.442695
        %v2240 = vpow.pop %v2239
        %v2241 = vmul.f32 %v2220, 1.442695
        %v2242 = vpow.pop %v2241
        %v2243 = vmul.f32 %v2221, 1.442695
        %v2244 = vpow.pop %v2243
        %v2245 = vmul.f32 %v2222, 1.442695
        %v2246 = vpow.pop %v2245
        %v2247 = vmul.f32 %v2223, 1.442695
        %v2248 = vpow.pop %v2247
        %v2249 = vmul.f32 %v2224, 1.442695
        %v2250 = vpow.pop %v2249
        %v2251 = vmul.f32 %v2225, 1.442695
        %v2252 = vpow.pop %v2251
        %v2253 = vmul.f32 %v2226, 1.442695
        %v2254 = vpow.pop %v2253
        %v2255 = vmul.f32 %v2227, 1.442695
        %v2256 = vpow.pop %v2255
        %v2257 = vmul.f32 %v2228, 1.442695
        %v2258 = vpow.pop %v2257
        %v2259 = vmul.f32 %v2229, 1.442695
        %v2260 = vpow.pop %v2259
        %v2261 = vmul.f32 %v2230, 1.442695
        %v2262 = vpow.pop %v2261
        %v2263 = vadd.f32 %v2232, 1.0
        %v2264 = vadd.f32 %v2234, 1.0
        %v2265 = vadd.f32 %v2236, 1.0
        %v2266 = vadd.f32 %v2238, 1.0
        %v2267 = vadd.f32 %v2240, 1.0
        %v2268 = vadd.f32 %v2242, 1.0
        %v2269 = vadd.f32 %v2244, 1.0
        %v2270 = vadd.f32 %v2246, 1.0
        %v2271 = vadd.f32 %v2248, 1.0
        %v2272 = vadd.f32 %v2250, 1.0
        %v2273 = vadd.f32 %v2252, 1.0
        %v2274 = vadd.f32 %v2254, 1.0
        %v2275 = vadd.f32 %v2256, 1.0
        %v2276 = vadd.f32 %v2258, 1.0
        %v2277 = vadd.f32 %v2260, 1.0
        %v2278 = vadd.f32 %v2262, 1.0
        %v2279 = vrcp.pop %v2263
        %v2280 = vmul.f32 1.0, %v2279
        %v2281 = vrcp.pop %v2264
        %v2282 = vmul.f32 1.0, %v2281
        %v2283 = vrcp.pop %v2265
        %v2284 = vmul.f32 1.0, %v2283
        %v2285 = vrcp.pop %v2266
        %v2286 = vmul.f32 1.0, %v2285
        %v2287 = vrcp.pop %v2267
        %v2288 = vmul.f32 1.0, %v2287
        %v2289 = vrcp.pop %v2268
        %v2290 = vmul.f32 1.0, %v2289
        %v2291 = vrcp.pop %v2269
        %v2292 = vmul.f32 1.0, %v2291
        %v2293 = vrcp.pop %v2270
        %v2294 = vmul.f32 1.0, %v2293
        %v2295 = vrcp.pop %v2271
        %v2296 = vmul.f32 1.0, %v2295
        %v2297 = vrcp.pop %v2272
        %v2298 = vmul.f32 1.0, %v2297
        %v2299 = vrcp.pop %v2273
        %v2300 = vmul.f32 1.0, %v2299
        %v2301 = vrcp.pop %v2274
        %v2302 = vmul.f32 1.0, %v2301
        %v2303 = vrcp.pop %v2275
        %v2304 = vmul.f32 1.0, %v2303
        %v2305 = vrcp.pop %v2276
        %v2306 = vmul.f32 1.0, %v2305
        %v2307 = vrcp.pop %v2277
        %v2308 = vmul.f32 1.0, %v2307
        %v2309 = vrcp.pop %v2278
        %v2310 = vmul.f32 1.0, %v2309
        %2311 = vst [vmem:[%s341] sm:$0xff] %v2280
        %2312 = vst [vmem:[%s341 + $0x8] sm:$0xff] %v2282
        %2313 = vst [vmem:[%s341 + $0x10] sm:$0xff] %v2284
        %2314 = vst [vmem:[%s341 + $0x18] sm:$0xff] %v2286
        %2315 = vst [vmem:[%s341 + $0x20] sm:$0xff] %v2288
        %2316 = vst [vmem:[%s341 + $0x28] sm:$0xff] %v2290
        %2317 = vst [vmem:[%s341 + $0x30] sm:$0xff] %v2292
        %2318 = vst [vmem:[%s341 + $0x38] sm:$0xff] %v2294
        %2319 = vst [vmem:[%s341 + $0x40] sm:$0xff] %v2296
        %2320 = vst [vmem:[%s341 + $0x48] sm:$0xff] %v2298
        %2321 = vst [vmem:[%s341 + $0x50] sm:$0xff] %v2300
        %2322 = vst [vmem:[%s341 + $0x58] sm:$0xff] %v2302
        %2323 = vst [vmem:[%s341 + $0x60] sm:$0xff] %v2304
        %2324 = vst [vmem:[%s341 + $0x68] sm:$0xff] %v2306
        %2325 = vst [vmem:[%s341 + $0x70] sm:$0xff] %v2308
        %2326 = vst [vmem:[%s341 + $0x78] sm:$0xff] %v2310
        %s2327 = sand.u32 %s186, 1
        %s2328 = scalar_lea.sflag [#allocation4], %s2327
        %s2329 = sand.u32 %s186, 1
        %s2330 = smul.addr %s2329, 128
        %s2331 = scalar_lea.vmem [#allocation10], %s2330
        // Predicated region
        $region65: #{tpu_custom_call.1} parent=47 // pred_check
          %p2332 = pneg %p196
        $region66: #{tpu_custom_call.1} parent=47 // pred_check_branch
          %2334 = sbr.rel (%p2332) target = $region68
        $region67: #{tpu_custom_call.1} parent=47 // pred_region
          %s2335 = smul.u32 16, %s26
          %s2337 = ssub.s32 2048, 2048
          %2338 = vsyncadd %s2328, %s2337
          %s2339 = smul.addr %s2335, 128
          %s2340 = scalar_lea.hbm %s7, %s2339
          %s2341 = sshll.u32 %s2331, 4
          %s2342 = int_to_ptr.vmem [resolvable:$true] %s2341
          %2347 = dma.vmem_to_hbm [thread:$0]  %s2342, 2048, %s2340, %s2328, 128, 128, 8
        $region68: #{tpu_custom_call.1} parent=47 // pred_fallthru
          _
      $region48: #{tpu_custom_call.1} parent=5 // pred_fallthru
        _
      %p2348 = scmp.le.s32.totalorder 2, %s21
      // Predicated region
      $region69: #{tpu_custom_call.1} parent=5 // pred_check
        %p2349 = pneg %p2348
      $region70: #{tpu_custom_call.1} parent=5 // pred_check_branch
        %2351 = sbr.rel (%p2349) target = $region72
      $region71: #{tpu_custom_call.1} parent=5 // pred_region
        %s2352 = ssub.s32 %s21, 2
        // Predicated region
        $region73: #{tpu_custom_call.1} parent=71 // pred_check
          %p2353 = pneg %p202
        $region74: #{tpu_custom_call.1} parent=71 // pred_check_branch
          %2355 = sbr.rel (%p2353) target = $region76
        $region75: #{tpu_custom_call.1} parent=71 // pred_region
          %s2356 = sand.u32 %s187, 1
          %s2357 = scalar_lea.sflag [#allocation4], %s2356
          %s2358 = sand.u32 %s187, 1
          %s2359 = smul.addr %s2358, 128
          %s2360 = scalar_lea.vmem [#allocation10], %s2359
          %2361 = dma.done %s2357, 2048
        $region76: #{tpu_custom_call.1} parent=71 // pred_fallthru
          _
      $region72: #{tpu_custom_call.1} parent=5 // pred_fallthru
        _
    $region6: #{tpu_custom_call.1} parent=1 // loop_footer
      %s25 = sadd.s32 1, %s21
    $region7: #{tpu_custom_call.1} parent=1 // loop_footer_branch
      %20 = sbr.rel target = $region3
    $region8: #{tpu_custom_call.1} parent=1 // loop_exit
      _
    %2362 = vsyncpa [#allocation3], 1
    %s2363 = scalar_lea.sflag [#allocation3], 1
    %2364 = vsyncpa %s2363, 1
    %2365 = vsyncpa [#allocation6], 1
    %2366 = vsyncpa [#allocation9], 1
    %2367 = vsyncpa [#allocation4], 1
    %s2368 = scalar_lea.sflag [#allocation4], 1
    %2369 = vsyncpa %s2368, 1

</llo_original>
